<compile_context>
chip_gen: v7x
topology: tpu7x:2x2x1
jax: 0.10.0
libtpu: 0.0.40
codegen_flags: <defaults>
</compile_context>

<pallas_src>
import functools

import jax
import jax.numpy as jnp
from jax.experimental import pallas as pl
from jax.experimental.pallas import tpu as pltpu

LEAKY_SLOPE = 0.2  # ProteinGAN / tf.nn.leaky_relu default
_VMEM = pl.BlockSpec(memory_space=pltpu.MemorySpace.VMEM)
_VMEM_LIMIT = 32 * 1024 * 1024


def _leaky(x):
    return jnp.where(x >= 0, x, LEAKY_SLOPE * x)


# ----------------------------------------------------------------------------
# Fused residual SN block kernel (one grid step == one batch*height row).
#   y1[t] = leaky( sum_k x[t+k-1] @ w1[k] + b1 )            (kernel (1,3), s=1)
#   y2[m] = sum_k y1[2m+k-1] @ w2[k] + b2 + x[2m] @ wsc + bsc (kernel (1,3), s=2
#                                                             + 1x1 shortcut)
# ----------------------------------------------------------------------------
def _sn_block_kernel(x_ref, w1_ref, b1_ref, w2_ref, b2_ref, wsc_ref, bsc_ref,
                     o_ref, y1_ref, *, act_out):
    x = x_ref[...]                                   # (L, C_in)
    l = x.shape[0]
    l2 = l // 2

    # ---- conv1 (stride 1, pad 1) as 3 shifted MXU dots + fused leaky ----
    t0 = jnp.dot(x, w1_ref[0], preferred_element_type=jnp.float32)
    t1 = jnp.dot(x, w1_ref[1], preferred_element_type=jnp.float32)
    t2 = jnp.dot(x, w1_ref[2], preferred_element_type=jnp.float32)
    row = jax.lax.broadcasted_iota(jnp.int32, t0.shape, 0)
    left = jnp.where(row >= 1, pltpu.roll(t0, 1, 0), 0.0)          # x[t-1]@w1[0]
    right = jnp.where(row <= l - 2, pltpu.roll(t2, l - 1, 0), 0.0)  # x[t+1]@w1[2]
    y1 = _leaky(left + t1 + right + b1_ref[...])
    y1_ref[...] = y1

    # ---- conv2 (stride 2, pad 1) + fused strided 1x1 shortcut ----
    y_even = y1_ref[pl.ds(0, l2, stride=2), :]        # y1[2m]
    y_odd = y1_ref[pl.ds(1, l2, stride=2), :]         # y1[2m+1]
    d0 = jnp.dot(y_odd, w2_ref[0], preferred_element_type=jnp.float32)
    d1 = jnp.dot(y_even, w2_ref[1], preferred_element_type=jnp.float32)
    d2 = jnp.dot(y_odd, w2_ref[2], preferred_element_type=jnp.float32)
    row2 = jax.lax.broadcasted_iota(jnp.int32, d0.shape, 0)
    d0s = jnp.where(row2 >= 1, pltpu.roll(d0, 1, 0), 0.0)  # -> y1[2m-1]@w2[0]

    x_even = x_ref[pl.ds(0, l2, stride=2), :]          # h[::2] shortcut input
    sc = jnp.dot(x_even, wsc_ref[...],
                 preferred_element_type=jnp.float32) + bsc_ref[...]

    y2 = d0s + d1 + d2 + b2_ref[...] + sc
    if act_out:                                       # fuse end_block leaky here
        y2 = _leaky(y2)
    o_ref[...] = y2


def sn_block(h, bp, act_out=False):
    b, hh, l, c_in = h.shape
    c_out = bp["w1"].shape[-1]
    l2 = l // 2
    x = h.reshape(b * hh, l, c_in)
    out = pl.pallas_call(
        functools.partial(_sn_block_kernel, act_out=act_out),
        grid=(b * hh,),
        out_shape=jax.ShapeDtypeStruct((b * hh, l2, c_out), jnp.float32),
        in_specs=[
            pl.BlockSpec((None, l, c_in), lambda i: (i, 0, 0)),
            pl.BlockSpec((3, c_in, c_out), lambda i: (0, 0, 0)),
            pl.BlockSpec((1, c_out), lambda i: (0, 0)),
            pl.BlockSpec((3, c_out, c_out), lambda i: (0, 0, 0)),
            pl.BlockSpec((1, c_out), lambda i: (0, 0)),
            pl.BlockSpec((c_in, c_out), lambda i: (0, 0)),
            pl.BlockSpec((1, c_out), lambda i: (0, 0)),
        ],
        out_specs=pl.BlockSpec((None, l2, c_out), lambda i: (i, 0, 0)),
        scratch_shapes=[pltpu.VMEM((l, c_out), jnp.float32)],
        compiler_params=pltpu.CompilerParams(
            dimension_semantics=("parallel",),
            vmem_limit_bytes=_VMEM_LIMIT,
        ),
    )(x, bp["w1"], bp["b1"], bp["w2"], bp["b2"], bp["wsc"], bp["bsc"])
    return out.reshape(b, hh, l2, c_out)


# ----------------------------------------------------------------------------
# Fused tail kernel: minibatch-stddev (scalar channel) + final 1x1 snconv2d
# (split weight, no C+1 concat) + snlinear(flatten, 1).
# ----------------------------------------------------------------------------
def _tail_kernel(eb_ref, wm_ref, ws_ref, bf_ref, wl_ref, bl_ref, out_ref):
    x = eb_ref[...]                                   # (B, S, C)
    bsz, s, c = x.shape

    # minibatch_stddev_layer_v2: per-feature batch std, averaged to a scalar.
    mu = jnp.mean(x, axis=0, keepdims=True)
    var = jnp.mean((x - mu) ** 2, axis=0, keepdims=True)
    std = jnp.sqrt(var + 1e-8)                        # (1, S, C)
    std_mean = jnp.mean(jnp.mean(std, axis=2, keepdims=True),
                        axis=1, keepdims=True)[0]     # (1, 1)

    # final 1x1 conv on [x, std]:  x @ Wm + std * Wstd + b   (no C+1 concat)
    x2 = x.reshape(bsz * s, c)
    fc = (jnp.dot(x2, wm_ref[...], preferred_element_type=jnp.float32)
          + std_mean * ws_ref[...] + bf_ref[...])     # (B*S, C16)
    c16 = fc.shape[1]

    # snlinear(flatten(fc), 1): sum over (s, c16) of fc * w_lin (reshaped).
    fc3 = fc.reshape(bsz, s, c16)
    prod = fc3 * wl_ref[...]
    out = jnp.sum(jnp.sum(prod, axis=2), axis=1, keepdims=True)
    out_ref[...] = out + bl_ref[...]


def tail(end_block, params):
    b, hh, l, c = end_block.shape
    s = hh * l
    c16 = params["w_final_main"].shape[-1]
    eb = end_block.reshape(b, s, c)
    wl = params["w_lin"].reshape(s, c16)
    return pl.pallas_call(
        _tail_kernel,
        out_shape=jax.ShapeDtypeStruct((b, 1), jnp.float32),
        in_specs=[_VMEM] * 6,
        out_specs=_VMEM,
        compiler_params=pltpu.CompilerParams(vmem_limit_bytes=_VMEM_LIMIT),
    )(eb, params["w_final_main"], params["w_final_std"],
      params["b_final"], wl, params["b_lin"])


# ----------------------------------------------------------------------------
# Full forward pass
# ----------------------------------------------------------------------------
def gumbel_discriminator_forward(tokens, params):
    # Embedding lookup (gather) stays in glue JAX.
    h = params["embedding"][tokens]                   # (B, H, L, dim)

    num_layers = len(params["blocks"])
    for layer in range(num_layers):
        # get_block_params doubles hidden_dim per layer; stride (1, 2) halves L.
        is_last = layer == num_layers - 1
        h = sn_block(h, params["blocks"][layer], act_out=is_last)
        # NOTE: reference calls add_attention(h, ...) after layer 0 and
        # discards its return value (gamma=0), so it is dead work: skipped.

    end_block = h                                     # leaky fused into last block
    output = tail(end_block, params)
    return output, end_block


# ----------------------------------------------------------------------------
# Deterministic parameter init (+ spectral norm as parameter prep)
# ----------------------------------------------------------------------------
def spectral_norm(w, n_iter=3):
    w2 = w.reshape(-1, w.shape[-1])
    u = jnp.ones((w2.shape[0],), jnp.float32) / jnp.sqrt(w2.shape[0])
    v = jnp.zeros((w2.shape[1],), jnp.float32)
    for _ in range(n_iter):
        v = w2.T @ u
        v = v / (jnp.linalg.norm(v) + 1e-12)
        u = w2 @ v
        u = u / (jnp.linalg.norm(u) + 1e-12)
    sigma = u @ (w2 @ v)
    return w / (sigma + 1e-12)


def init_params(key, df_dim, height, length, num_layers=4):
    ks = iter(jax.random.split(key, 64))

    def randw(shape, scale=0.05):
        return spectral_norm(
            scale * jax.random.normal(next(ks), shape, dtype=jnp.float32))

    dims = [df_dim * (2 ** i) for i in range(num_layers + 1)]
    blocks = []
    for layer in range(num_layers):
        c_in, c_out = dims[layer], dims[layer + 1]
        blocks.append(dict(
            w1=randw((3, c_in, c_out)),                 # taps k=0,1,2
            b1=jnp.zeros((1, c_out), jnp.float32),
            w2=randw((3, c_out, c_out)),
            b2=jnp.zeros((1, c_out), jnp.float32),
            wsc=randw((c_in, c_out)),
            bsc=jnp.zeros((1, c_out), jnp.float32),
        ))

    c_last = dims[-1]
    c16 = c_last // 16
    w_final = randw((c_last + 1, c16))                  # last row = stddev channel
    l_final = length // (2 ** num_layers)
    feat = height * l_final * c16

    return dict(
        embedding=0.05 * jax.random.normal(next(ks), (21, df_dim), dtype=jnp.float32),
        blocks=blocks,
        w_final_main=w_final[:c_last],                  # (C, C/16)
        w_final_std=w_final[c_last:],                   # (1, C/16)
        b_final=jnp.zeros((1, c16), jnp.float32),
        w_lin=randw((feat, 1)),
        b_lin=jnp.zeros((1, 1), jnp.float32),
    )


if __name__ == "__main__":
    B, H, L, DIM = 2, 1, 32, 8  # df_dim=8, shape=(C, height=1, length=32)
    key = jax.random.PRNGKey(0)
    tok_key, param_key = jax.random.split(key)

    # integer token sequence, vocab 21 (as nn.Embedding(21, dim) implies)
    tokens = jax.random.randint(tok_key, (B, H, L), 0, 21, dtype=jnp.int32)
    params = init_params(param_key, DIM, H, L, num_layers=4)

    fwd = jax.jit(gumbel_discriminator_forward)
    output, end_block = fwd(tokens, params)
    jax.block_until_ready((output, end_block))

    L_final = L // (2 ** 4)
    assert output.shape == (B, 1), output.shape
    assert end_block.shape == (B, H, L_final, DIM * 16), end_block.shape
    assert bool(jnp.all(jnp.isfinite(output)))
    assert bool(jnp.all(jnp.isfinite(end_block)))
    print("KERNEL_OK")
</pallas_src>

<mosaic_0001>
module attributes {stable_mosaic.version = 11 : i64} {
  func.func @_sn_block_kernel(%arg0: i32, %arg1: memref<1x32x8xf32, #tpu.memory_space<vmem>>, %arg2: memref<3x8x16xf32, #tpu.memory_space<vmem>>, %arg3: memref<1x16xf32, #tpu.memory_space<vmem>>, %arg4: memref<3x16x16xf32, #tpu.memory_space<vmem>>, %arg5: memref<1x16xf32, #tpu.memory_space<vmem>>, %arg6: memref<8x16xf32, #tpu.memory_space<vmem>>, %arg7: memref<1x16xf32, #tpu.memory_space<vmem>>, %arg8: memref<1x16x16xf32, #tpu.memory_space<vmem>>, %arg9: memref<32x16xf32, #tpu.memory_space<vmem>>) attributes {dimension_semantics = [#tpu.dimension_semantics<parallel>], iteration_bounds = array<i64: 2>, scalar_prefetch = 0 : i64, scratch_operands = 1 : i64, tpu.core_type = #tpu.core_type<tc>, window_params = [{transform_indices = @transform_0, window_bounds = array<i64: 1, 32, 8>}, {pipeline_mode = #tpu.pipeline_mode<synchronous>, transform_indices = @transform_1, window_bounds = array<i64: 3, 8, 16>}, {pipeline_mode = #tpu.pipeline_mode<synchronous>, transform_indices = @transform_2, window_bounds = array<i64: 1, 16>}, {pipeline_mode = #tpu.pipeline_mode<synchronous>, transform_indices = @transform_3, window_bounds = array<i64: 3, 16, 16>}, {pipeline_mode = #tpu.pipeline_mode<synchronous>, transform_indices = @transform_4, window_bounds = array<i64: 1, 16>}, {pipeline_mode = #tpu.pipeline_mode<synchronous>, transform_indices = @transform_5, window_bounds = array<i64: 8, 16>}, {pipeline_mode = #tpu.pipeline_mode<synchronous>, transform_indices = @transform_6, window_bounds = array<i64: 1, 16>}, {transform_indices = @transform_7, window_bounds = array<i64: 1, 16, 16>}]} {
    %c0 = arith.constant 0 : index
    %c0_0 = arith.constant 0 : index
    %c0_1 = arith.constant 0 : index
    %0 = vector.load %arg1[%c0, %c0_0, %c0_1] : memref<1x32x8xf32, #tpu.memory_space<vmem>>, vector<1x32x8xf32>
    %1 = vector.shape_cast %0 : vector<1x32x8xf32> to vector<32x8xf32>
    %c0_2 = arith.constant 0 : index
    %c0_3 = arith.constant 0 : index
    %c0_4 = arith.constant 0 : index
    %2 = vector.load %arg2[%c0_2, %c0_3, %c0_4] : memref<3x8x16xf32, #tpu.memory_space<vmem>>, vector<1x8x16xf32>
    %3 = vector.shape_cast %2 : vector<1x8x16xf32> to vector<8x16xf32>
    %cst = arith.constant dense<0.000000e+00> : vector<32x16xf32>
    %4 = tpu.matmul %1, %3, %cst {dimension_numbers = #tpu.dot_dimension_numbers<[1], [0], [0], [1], [0, 0, 1, 1], [], []>} : vector<32x8xf32>, vector<8x16xf32>, vector<32x16xf32> -> vector<32x16xf32>
    %c1 = arith.constant 1 : index
    %c0_5 = arith.constant 0 : index
    %c0_6 = arith.constant 0 : index
    %5 = vector.load %arg2[%c1, %c0_5, %c0_6] : memref<3x8x16xf32, #tpu.memory_space<vmem>>, vector<1x8x16xf32>
    %6 = vector.shape_cast %5 : vector<1x8x16xf32> to vector<8x16xf32>
    %cst_7 = arith.constant dense<0.000000e+00> : vector<32x16xf32>
    %7 = tpu.matmul %1, %6, %cst_7 {dimension_numbers = #tpu.dot_dimension_numbers<[1], [0], [0], [1], [0, 0, 1, 1], [], []>} : vector<32x8xf32>, vector<8x16xf32>, vector<32x16xf32> -> vector<32x16xf32>
    %c2 = arith.constant 2 : index
    %c0_8 = arith.constant 0 : index
    %c0_9 = arith.constant 0 : index
    %8 = vector.load %arg2[%c2, %c0_8, %c0_9] : memref<3x8x16xf32, #tpu.memory_space<vmem>>, vector<1x8x16xf32>
    %9 = vector.shape_cast %8 : vector<1x8x16xf32> to vector<8x16xf32>
    %cst_10 = arith.constant dense<0.000000e+00> : vector<32x16xf32>
    %10 = tpu.matmul %1, %9, %cst_10 {dimension_numbers = #tpu.dot_dimension_numbers<[1], [0], [0], [1], [0, 0, 1, 1], [], []>} : vector<32x8xf32>, vector<8x16xf32>, vector<32x16xf32> -> vector<32x16xf32>
    %11 = tpu.iota {dimensions = array<i32: 0>} : vector<32x16xi32>
    %c1_i32 = arith.constant 1 : i32
    %12 = vector.broadcast %c1_i32 : i32 to vector<32x16xi32>
    %13 = arith.cmpi sge, %11, %12 : vector<32x16xi32>
    %c1_i32_11 = arith.constant 1 : i32
    %14 = tpu.dynamic_rotate %4 by %c1_i32_11 dim 0 : vector<32x16xf32>, i32 -> vector<32x16xf32>
    %cst_12 = arith.constant 0.000000e+00 : f32
    %15 = vector.broadcast %cst_12 : f32 to vector<32x16xf32>
    %16 = arith.select %13, %14, %15 : vector<32x16xi1>, vector<32x16xf32>
    %c30_i32 = arith.constant 30 : i32
    %17 = vector.broadcast %c30_i32 : i32 to vector<32x16xi32>
    %18 = arith.cmpi sle, %11, %17 : vector<32x16xi32>
    %c31_i32 = arith.constant 31 : i32
    %19 = tpu.dynamic_rotate %10 by %c31_i32 dim 0 : vector<32x16xf32>, i32 -> vector<32x16xf32>
    %cst_13 = arith.constant 0.000000e+00 : f32
    %20 = vector.broadcast %cst_13 : f32 to vector<32x16xf32>
    %21 = arith.select %18, %19, %20 : vector<32x16xi1>, vector<32x16xf32>
    %22 = arith.addf %16, %7 : vector<32x16xf32>
    %23 = arith.addf %22, %21 : vector<32x16xf32>
    %c0_14 = arith.constant 0 : index
    %c0_15 = arith.constant 0 : index
    %24 = vector.load %arg3[%c0_14, %c0_15] : memref<1x16xf32, #tpu.memory_space<vmem>>, vector<1x16xf32>
    %25 = vector.broadcast %24 : vector<1x16xf32> to vector<32x16xf32>
    %26 = arith.addf %23, %25 : vector<32x16xf32>
    %cst_16 = arith.constant 0.000000e+00 : f32
    %27 = vector.broadcast %cst_16 : f32 to vector<32x16xf32>
    %28 = arith.cmpf oge, %26, %27 : vector<32x16xf32>
    %cst_17 = arith.constant 2.000000e-01 : f32
    %29 = vector.broadcast %cst_17 : f32 to vector<32x16xf32>
    %30 = arith.mulf %29, %26 : vector<32x16xf32>
    %31 = arith.select %28, %26, %30 : vector<32x16xi1>, vector<32x16xf32>
    %c0_18 = arith.constant 0 : index
    %c0_19 = arith.constant 0 : index
    %32 = vector.load %arg9[%c0_18, %c0_19] : memref<32x16xf32, #tpu.memory_space<vmem>>, vector<32x16xf32>
    tpu.vector_store %arg9[%c0_18, %c0_19], %31 {strides = array<i32>} : memref<32x16xf32, #tpu.memory_space<vmem>>, vector<32x16xf32>,
    %c0_20 = arith.constant 0 : index
    %c0_21 = arith.constant 0 : index
    %33 = tpu.strided_load %arg9[%c0_20, %c0_21] {strides = array<i32: 2, 1>} : memref<32x16xf32, #tpu.memory_space<vmem>>, vector<16x16xf32>
    %c1_22 = arith.constant 1 : index
    %c0_23 = arith.constant 0 : index
    %34 = tpu.strided_load %arg9[%c1_22, %c0_23] {strides = array<i32: 2, 1>} : memref<32x16xf32, #tpu.memory_space<vmem>>, vector<16x16xf32>
    %c0_24 = arith.constant 0 : index
    %c0_25 = arith.constant 0 : index
    %c0_26 = arith.constant 0 : index
    %35 = vector.load %arg4[%c0_24, %c0_25, %c0_26] : memref<3x16x16xf32, #tpu.memory_space<vmem>>, vector<1x16x16xf32>
    %36 = vector.shape_cast %35 : vector<1x16x16xf32> to vector<16x16xf32>
    %cst_27 = arith.constant dense<0.000000e+00> : vector<16x16xf32>
    %37 = tpu.matmul %34, %36, %cst_27 {dimension_numbers = #tpu.dot_dimension_numbers<[1], [0], [0], [1], [0, 0, 1, 1], [], []>} : vector<16x16xf32>, vector<16x16xf32>, vector<16x16xf32> -> vector<16x16xf32>
    %c1_28 = arith.constant 1 : index
    %c0_29 = arith.constant 0 : index
    %c0_30 = arith.constant 0 : index
    %38 = vector.load %arg4[%c1_28, %c0_29, %c0_30] : memref<3x16x16xf32, #tpu.memory_space<vmem>>, vector<1x16x16xf32>
    %39 = vector.shape_cast %38 : vector<1x16x16xf32> to vector<16x16xf32>
    %cst_31 = arith.constant dense<0.000000e+00> : vector<16x16xf32>
    %40 = tpu.matmul %33, %39, %cst_31 {dimension_numbers = #tpu.dot_dimension_numbers<[1], [0], [0], [1], [0, 0, 1, 1], [], []>} : vector<16x16xf32>, vector<16x16xf32>, vector<16x16xf32> -> vector<16x16xf32>
    %c2_32 = arith.constant 2 : index
    %c0_33 = arith.constant 0 : index
    %c0_34 = arith.constant 0 : index
    %41 = vector.load %arg4[%c2_32, %c0_33, %c0_34] : memref<3x16x16xf32, #tpu.memory_space<vmem>>, vector<1x16x16xf32>
    %42 = vector.shape_cast %41 : vector<1x16x16xf32> to vector<16x16xf32>
    %cst_35 = arith.constant dense<0.000000e+00> : vector<16x16xf32>
    %43 = tpu.matmul %34, %42, %cst_35 {dimension_numbers = #tpu.dot_dimension_numbers<[1], [0], [0], [1], [0, 0, 1, 1], [], []>} : vector<16x16xf32>, vector<16x16xf32>, vector<16x16xf32> -> vector<16x16xf32>
    %44 = tpu.iota {dimensions = array<i32: 0>} : vector<16x16xi32>
    %c1_i32_36 = arith.constant 1 : i32
    %45 = vector.broadcast %c1_i32_36 : i32 to vector<16x16xi32>
    %46 = arith.cmpi sge, %44, %45 : vector<16x16xi32>
    %c1_i32_37 = arith.constant 1 : i32
    %47 = tpu.dynamic_rotate %37 by %c1_i32_37 dim 0 : vector<16x16xf32>, i32 -> vector<16x16xf32>
    %cst_38 = arith.constant 0.000000e+00 : f32
    %48 = vector.broadcast %cst_38 : f32 to vector<16x16xf32>
    %49 = arith.select %46, %47, %48 : vector<16x16xi1>, vector<16x16xf32>
    %c0_39 = arith.constant 0 : index
    %c0_40 = arith.constant 0 : index
    %c0_41 = arith.constant 0 : index
    %50 = tpu.strided_load %arg1[%c0_39, %c0_40, %c0_41] {strides = array<i32: 1, 2, 1>} : memref<1x32x8xf32, #tpu.memory_space<vmem>>, vector<1x16x8xf32>
    %51 = vector.shape_cast %50 : vector<1x16x8xf32> to vector<16x8xf32>
    %c0_42 = arith.constant 0 : index
    %c0_43 = arith.constant 0 : index
    %52 = vector.load %arg6[%c0_42, %c0_43] : memref<8x16xf32, #tpu.memory_space<vmem>>, vector<8x16xf32>
    %cst_44 = arith.constant dense<0.000000e+00> : vector<16x16xf32>
    %53 = tpu.matmul %51, %52, %cst_44 {dimension_numbers = #tpu.dot_dimension_numbers<[1], [0], [0], [1], [0, 0, 1, 1], [], []>} : vector<16x8xf32>, vector<8x16xf32>, vector<16x16xf32> -> vector<16x16xf32>
    %c0_45 = arith.constant 0 : index
    %c0_46 = arith.constant 0 : index
    %54 = vector.load %arg7[%c0_45, %c0_46] : memref<1x16xf32, #tpu.memory_space<vmem>>, vector<1x16xf32>
    %55 = vector.broadcast %54 : vector<1x16xf32> to vector<16x16xf32>
    %56 = arith.addf %53, %55 : vector<16x16xf32>
    %57 = arith.addf %49, %40 : vector<16x16xf32>
    %58 = arith.addf %57, %43 : vector<16x16xf32>
    %c0_47 = arith.constant 0 : index
    %c0_48 = arith.constant 0 : index
    %59 = vector.load %arg5[%c0_47, %c0_48] : memref<1x16xf32, #tpu.memory_space<vmem>>, vector<1x16xf32>
    %60 = vector.broadcast %59 : vector<1x16xf32> to vector<16x16xf32>
    %61 = arith.addf %58, %60 : vector<16x16xf32>
    %62 = arith.addf %61, %56 : vector<16x16xf32>
    %c0_49 = arith.constant 0 : index
    %c0_50 = arith.constant 0 : index
    %c0_51 = arith.constant 0 : index
    %63 = vector.load %arg8[%c0_49, %c0_50, %c0_51] : memref<1x16x16xf32, #tpu.memory_space<vmem>>, vector<1x16x16xf32>
    %64 = vector.shape_cast %63 : vector<1x16x16xf32> to vector<16x16xf32>
    %65 = vector.shape_cast %62 : vector<16x16xf32> to vector<1x16x16xf32>
    tpu.vector_store %arg8[%c0_49, %c0_50, %c0_51], %65 {strides = array<i32>} : memref<1x16x16xf32, #tpu.memory_space<vmem>>, vector<1x16x16xf32>,
    return
  }
  func.func @transform_0(%arg0: i32) -> (i32, i32, i32) {
    %c0_i32 = arith.constant 0 : i32
    %c0_i32_0 = arith.constant 0 : i32
    %c0_i32_1 = arith.constant 0 : i32
    return %arg0, %c0_i32, %c0_i32_0 : i32, i32, i32
  }
  func.func @transform_1(%arg0: i32) -> (i32, i32, i32) {
    %c0_i32 = arith.constant 0 : i32
    %c0_i32_0 = arith.constant 0 : i32
    %c0_i32_1 = arith.constant 0 : i32
    %c0_i32_2 = arith.constant 0 : i32
    return %c0_i32, %c0_i32_0, %c0_i32_1 : i32, i32, i32
  }
  func.func @transform_2(%arg0: i32) -> (i32, i32) {
    %c0_i32 = arith.constant 0 : i32
    %c0_i32_0 = arith.constant 0 : i32
    %c0_i32_1 = arith.constant 0 : i32
    return %c0_i32, %c0_i32_0 : i32, i32
  }
  func.func @transform_3(%arg0: i32) -> (i32, i32, i32) {
    %c0_i32 = arith.constant 0 : i32
    %c0_i32_0 = arith.constant 0 : i32
    %c0_i32_1 = arith.constant 0 : i32
    %c0_i32_2 = arith.constant 0 : i32
    return %c0_i32, %c0_i32_0, %c0_i32_1 : i32, i32, i32
  }
  func.func @transform_4(%arg0: i32) -> (i32, i32) {
    %c0_i32 = arith.constant 0 : i32
    %c0_i32_0 = arith.constant 0 : i32
    %c0_i32_1 = arith.constant 0 : i32
    return %c0_i32, %c0_i32_0 : i32, i32
  }
  func.func @transform_5(%arg0: i32) -> (i32, i32) {
    %c0_i32 = arith.constant 0 : i32
    %c0_i32_0 = arith.constant 0 : i32
    %c0_i32_1 = arith.constant 0 : i32
    return %c0_i32, %c0_i32_0 : i32, i32
  }
  func.func @transform_6(%arg0: i32) -> (i32, i32) {
    %c0_i32 = arith.constant 0 : i32
    %c0_i32_0 = arith.constant 0 : i32
    %c0_i32_1 = arith.constant 0 : i32
    return %c0_i32, %c0_i32_0 : i32, i32
  }
  func.func @transform_7(%arg0: i32) -> (i32, i32, i32) {
    %c0_i32 = arith.constant 0 : i32
    %c0_i32_0 = arith.constant 0 : i32
    %c0_i32_1 = arith.constant 0 : i32
    return %arg0, %c0_i32, %c0_i32_0 : i32, i32, i32
  }
}

module attributes {stable_mosaic.version = 11 : i64} {
  func.func @_sn_block_kernel(%arg0: i32, %arg1: memref<1x16x16xf32, #tpu.memory_space<vmem>>, %arg2: memref<3x16x32xf32, #tpu.memory_space<vmem>>, %arg3: memref<1x32xf32, #tpu.memory_space<vmem>>, %arg4: memref<3x32x32xf32, #tpu.memory_space<vmem>>, %arg5: memref<1x32xf32, #tpu.memory_space<vmem>>, %arg6: memref<16x32xf32, #tpu.memory_space<vmem>>, %arg7: memref<1x32xf32, #tpu.memory_space<vmem>>, %arg8: memref<1x8x32xf32, #tpu.memory_space<vmem>>, %arg9: memref<16x32xf32, #tpu.memory_space<vmem>>) attributes {dimension_semantics = [#tpu.dimension_semantics<parallel>], iteration_bounds = array<i64: 2>, scalar_prefetch = 0 : i64, scratch_operands = 1 : i64, tpu.core_type = #tpu.core_type<tc>, window_params = [{transform_indices = @transform_0, window_bounds = array<i64: 1, 16, 16>}, {pipeline_mode = #tpu.pipeline_mode<synchronous>, transform_indices = @transform_1, window_bounds = array<i64: 3, 16, 32>}, {pipeline_mode = #tpu.pipeline_mode<synchronous>, transform_indices = @transform_2, window_bounds = array<i64: 1, 32>}, {pipeline_mode = #tpu.pipeline_mode<synchronous>, transform_indices = @transform_3, window_bounds = array<i64: 3, 32, 32>}, {pipeline_mode = #tpu.pipeline_mode<synchronous>, transform_indices = @transform_4, window_bounds = array<i64: 1, 32>}, {pipeline_mode = #tpu.pipeline_mode<synchronous>, transform_indices = @transform_5, window_bounds = array<i64: 16, 32>}, {pipeline_mode = #tpu.pipeline_mode<synchronous>, transform_indices = @transform_6, window_bounds = array<i64: 1, 32>}, {transform_indices = @transform_7, window_bounds = array<i64: 1, 8, 32>}]} {
    %c0 = arith.constant 0 : index
    %c0_0 = arith.constant 0 : index
    %c0_1 = arith.constant 0 : index
    %0 = vector.load %arg1[%c0, %c0_0, %c0_1] : memref<1x16x16xf32, #tpu.memory_space<vmem>>, vector<1x16x16xf32>
    %1 = vector.shape_cast %0 : vector<1x16x16xf32> to vector<16x16xf32>
    %c0_2 = arith.constant 0 : index
    %c0_3 = arith.constant 0 : index
    %c0_4 = arith.constant 0 : index
    %2 = vector.load %arg2[%c0_2, %c0_3, %c0_4] : memref<3x16x32xf32, #tpu.memory_space<vmem>>, vector<1x16x32xf32>
    %3 = vector.shape_cast %2 : vector<1x16x32xf32> to vector<16x32xf32>
    %cst = arith.constant dense<0.000000e+00> : vector<16x32xf32>
    %4 = tpu.matmul %1, %3, %cst {dimension_numbers = #tpu.dot_dimension_numbers<[1], [0], [0], [1], [0, 0, 1, 1], [], []>} : vector<16x16xf32>, vector<16x32xf32>, vector<16x32xf32> -> vector<16x32xf32>
    %c1 = arith.constant 1 : index
    %c0_5 = arith.constant 0 : index
    %c0_6 = arith.constant 0 : index
    %5 = vector.load %arg2[%c1, %c0_5, %c0_6] : memref<3x16x32xf32, #tpu.memory_space<vmem>>, vector<1x16x32xf32>
    %6 = vector.shape_cast %5 : vector<1x16x32xf32> to vector<16x32xf32>
    %cst_7 = arith.constant dense<0.000000e+00> : vector<16x32xf32>
    %7 = tpu.matmul %1, %6, %cst_7 {dimension_numbers = #tpu.dot_dimension_numbers<[1], [0], [0], [1], [0, 0, 1, 1], [], []>} : vector<16x16xf32>, vector<16x32xf32>, vector<16x32xf32> -> vector<16x32xf32>
    %c2 = arith.constant 2 : index
    %c0_8 = arith.constant 0 : index
    %c0_9 = arith.constant 0 : index
    %8 = vector.load %arg2[%c2, %c0_8, %c0_9] : memref<3x16x32xf32, #tpu.memory_space<vmem>>, vector<1x16x32xf32>
    %9 = vector.shape_cast %8 : vector<1x16x32xf32> to vector<16x32xf32>
    %cst_10 = arith.constant dense<0.000000e+00> : vector<16x32xf32>
    %10 = tpu.matmul %1, %9, %cst_10 {dimension_numbers = #tpu.dot_dimension_numbers<[1], [0], [0], [1], [0, 0, 1, 1], [], []>} : vector<16x16xf32>, vector<16x32xf32>, vector<16x32xf32> -> vector<16x32xf32>
    %11 = tpu.iota {dimensions = array<i32: 0>} : vector<16x32xi32>
    %c1_i32 = arith.constant 1 : i32
    %12 = vector.broadcast %c1_i32 : i32 to vector<16x32xi32>
    %13 = arith.cmpi sge, %11, %12 : vector<16x32xi32>
    %c1_i32_11 = arith.constant 1 : i32
    %14 = tpu.dynamic_rotate %4 by %c1_i32_11 dim 0 : vector<16x32xf32>, i32 -> vector<16x32xf32>
    %cst_12 = arith.constant 0.000000e+00 : f32
    %15 = vector.broadcast %cst_12 : f32 to vector<16x32xf32>
    %16 = arith.select %13, %14, %15 : vector<16x32xi1>, vector<16x32xf32>
    %c14_i32 = arith.constant 14 : i32
    %17 = vector.broadcast %c14_i32 : i32 to vector<16x32xi32>
    %18 = arith.cmpi sle, %11, %17 : vector<16x32xi32>
    %c15_i32 = arith.constant 15 : i32
    %19 = tpu.dynamic_rotate %10 by %c15_i32 dim 0 : vector<16x32xf32>, i32 -> vector<16x32xf32>
    %cst_13 = arith.constant 0.000000e+00 : f32
    %20 = vector.broadcast %cst_13 : f32 to vector<16x32xf32>
    %21 = arith.select %18, %19, %20 : vector<16x32xi1>, vector<16x32xf32>
    %22 = arith.addf %16, %7 : vector<16x32xf32>
    %23 = arith.addf %22, %21 : vector<16x32xf32>
    %c0_14 = arith.constant 0 : index
    %c0_15 = arith.constant 0 : index
    %24 = vector.load %arg3[%c0_14, %c0_15] : memref<1x32xf32, #tpu.memory_space<vmem>>, vector<1x32xf32>
    %25 = vector.broadcast %24 : vector<1x32xf32> to vector<16x32xf32>
    %26 = arith.addf %23, %25 : vector<16x32xf32>
    %cst_16 = arith.constant 0.000000e+00 : f32
    %27 = vector.broadcast %cst_16 : f32 to vector<16x32xf32>
    %28 = arith.cmpf oge, %26, %27 : vector<16x32xf32>
    %cst_17 = arith.constant 2.000000e-01 : f32
    %29 = vector.broadcast %cst_17 : f32 to vector<16x32xf32>
    %30 = arith.mulf %29, %26 : vector<16x32xf32>
    %31 = arith.select %28, %26, %30 : vector<16x32xi1>, vector<16x32xf32>
    %c0_18 = arith.constant 0 : index
    %c0_19 = arith.constant 0 : index
    %32 = vector.load %arg9[%c0_18, %c0_19] : memref<16x32xf32, #tpu.memory_space<vmem>>, vector<16x32xf32>
    tpu.vector_store %arg9[%c0_18, %c0_19], %31 {strides = array<i32>} : memref<16x32xf32, #tpu.memory_space<vmem>>, vector<16x32xf32>,
    %c0_20 = arith.constant 0 : index
    %c0_21 = arith.constant 0 : index
    %33 = tpu.strided_load %arg9[%c0_20, %c0_21] {strides = array<i32: 2, 1>} : memref<16x32xf32, #tpu.memory_space<vmem>>, vector<8x32xf32>
    %c1_22 = arith.constant 1 : index
    %c0_23 = arith.constant 0 : index
    %34 = tpu.strided_load %arg9[%c1_22, %c0_23] {strides = array<i32: 2, 1>} : memref<16x32xf32, #tpu.memory_space<vmem>>, vector<8x32xf32>
    %c0_24 = arith.constant 0 : index
    %c0_25 = arith.constant 0 : index
    %c0_26 = arith.constant 0 : index
    %35 = vector.load %arg4[%c0_24, %c0_25, %c0_26] : memref<3x32x32xf32, #tpu.memory_space<vmem>>, vector<1x32x32xf32>
    %36 = vector.shape_cast %35 : vector<1x32x32xf32> to vector<32x32xf32>
    %cst_27 = arith.constant dense<0.000000e+00> : vector<8x32xf32>
    %37 = tpu.matmul %34, %36, %cst_27 {dimension_numbers = #tpu.dot_dimension_numbers<[1], [0], [0], [1], [0, 0, 1, 1], [], []>} : vector<8x32xf32>, vector<32x32xf32>, vector<8x32xf32> -> vector<8x32xf32>
    %c1_28 = arith.constant 1 : index
    %c0_29 = arith.constant 0 : index
    %c0_30 = arith.constant 0 : index
    %38 = vector.load %arg4[%c1_28, %c0_29, %c0_30] : memref<3x32x32xf32, #tpu.memory_space<vmem>>, vector<1x32x32xf32>
    %39 = vector.shape_cast %38 : vector<1x32x32xf32> to vector<32x32xf32>
    %cst_31 = arith.constant dense<0.000000e+00> : vector<8x32xf32>
    %40 = tpu.matmul %33, %39, %cst_31 {dimension_numbers = #tpu.dot_dimension_numbers<[1], [0], [0], [1], [0, 0, 1, 1], [], []>} : vector<8x32xf32>, vector<32x32xf32>, vector<8x32xf32> -> vector<8x32xf32>
    %c2_32 = arith.constant 2 : index
    %c0_33 = arith.constant 0 : index
    %c0_34 = arith.constant 0 : index
    %41 = vector.load %arg4[%c2_32, %c0_33, %c0_34] : memref<3x32x32xf32, #tpu.memory_space<vmem>>, vector<1x32x32xf32>
    %42 = vector.shape_cast %41 : vector<1x32x32xf32> to vector<32x32xf32>
    %cst_35 = arith.constant dense<0.000000e+00> : vector<8x32xf32>
    %43 = tpu.matmul %34, %42, %cst_35 {dimension_numbers = #tpu.dot_dimension_numbers<[1], [0], [0], [1], [0, 0, 1, 1], [], []>} : vector<8x32xf32>, vector<32x32xf32>, vector<8x32xf32> -> vector<8x32xf32>
    %44 = tpu.iota {dimensions = array<i32: 0>} : vector<8x32xi32>
    %c1_i32_36 = arith.constant 1 : i32
    %45 = vector.broadcast %c1_i32_36 : i32 to vector<8x32xi32>
    %46 = arith.cmpi sge, %44, %45 : vector<8x32xi32>
    %c1_i32_37 = arith.constant 1 : i32
    %47 = tpu.dynamic_rotate %37 by %c1_i32_37 dim 0 : vector<8x32xf32>, i32 -> vector<8x32xf32>
    %cst_38 = arith.constant 0.000000e+00 : f32
    %48 = vector.broadcast %cst_38 : f32 to vector<8x32xf32>
    %49 = arith.select %46, %47, %48 : vector<8x32xi1>, vector<8x32xf32>
    %c0_39 = arith.constant 0 : index
    %c0_40 = arith.constant 0 : index
    %c0_41 = arith.constant 0 : index
    %50 = tpu.strided_load %arg1[%c0_39, %c0_40, %c0_41] {strides = array<i32: 1, 2, 1>} : memref<1x16x16xf32, #tpu.memory_space<vmem>>, vector<1x8x16xf32>
    %51 = vector.shape_cast %50 : vector<1x8x16xf32> to vector<8x16xf32>
    %c0_42 = arith.constant 0 : index
    %c0_43 = arith.constant 0 : index
    %52 = vector.load %arg6[%c0_42, %c0_43] : memref<16x32xf32, #tpu.memory_space<vmem>>, vector<16x32xf32>
    %cst_44 = arith.constant dense<0.000000e+00> : vector<8x32xf32>
    %53 = tpu.matmul %51, %52, %cst_44 {dimension_numbers = #tpu.dot_dimension_numbers<[1], [0], [0], [1], [0, 0, 1, 1], [], []>} : vector<8x16xf32>, vector<16x32xf32>, vector<8x32xf32> -> vector<8x32xf32>
    %c0_45 = arith.constant 0 : index
    %c0_46 = arith.constant 0 : index
    %54 = vector.load %arg7[%c0_45, %c0_46] : memref<1x32xf32, #tpu.memory_space<vmem>>, vector<1x32xf32>
    %55 = vector.broadcast %54 : vector<1x32xf32> to vector<8x32xf32>
    %56 = arith.addf %53, %55 : vector<8x32xf32>
    %57 = arith.addf %49, %40 : vector<8x32xf32>
    %58 = arith.addf %57, %43 : vector<8x32xf32>
    %c0_47 = arith.constant 0 : index
    %c0_48 = arith.constant 0 : index
    %59 = vector.load %arg5[%c0_47, %c0_48] : memref<1x32xf32, #tpu.memory_space<vmem>>, vector<1x32xf32>
    %60 = vector.broadcast %59 : vector<1x32xf32> to vector<8x32xf32>
    %61 = arith.addf %58, %60 : vector<8x32xf32>
    %62 = arith.addf %61, %56 : vector<8x32xf32>
    %c0_49 = arith.constant 0 : index
    %c0_50 = arith.constant 0 : index
    %c0_51 = arith.constant 0 : index
    %63 = vector.load %arg8[%c0_49, %c0_50, %c0_51] : memref<1x8x32xf32, #tpu.memory_space<vmem>>, vector<1x8x32xf32>
    %64 = vector.shape_cast %63 : vector<1x8x32xf32> to vector<8x32xf32>
    %65 = vector.shape_cast %62 : vector<8x32xf32> to vector<1x8x32xf32>
    tpu.vector_store %arg8[%c0_49, %c0_50, %c0_51], %65 {strides = array<i32>} : memref<1x8x32xf32, #tpu.memory_space<vmem>>, vector<1x8x32xf32>,
    return
  }
  func.func @transform_0(%arg0: i32) -> (i32, i32, i32) {
    %c0_i32 = arith.constant 0 : i32
    %c0_i32_0 = arith.constant 0 : i32
    %c0_i32_1 = arith.constant 0 : i32
    return %arg0, %c0_i32, %c0_i32_0 : i32, i32, i32
  }
  func.func @transform_1(%arg0: i32) -> (i32, i32, i32) {
    %c0_i32 = arith.constant 0 : i32
    %c0_i32_0 = arith.constant 0 : i32
    %c0_i32_1 = arith.constant 0 : i32
    %c0_i32_2 = arith.constant 0 : i32
    return %c0_i32, %c0_i32_0, %c0_i32_1 : i32, i32, i32
  }
  func.func @transform_2(%arg0: i32) -> (i32, i32) {
    %c0_i32 = arith.constant 0 : i32
    %c0_i32_0 = arith.constant 0 : i32
    %c0_i32_1 = arith.constant 0 : i32
    return %c0_i32, %c0_i32_0 : i32, i32
  }
  func.func @transform_3(%arg0: i32) -> (i32, i32, i32) {
    %c0_i32 = arith.constant 0 : i32
    %c0_i32_0 = arith.constant 0 : i32
    %c0_i32_1 = arith.constant 0 : i32
    %c0_i32_2 = arith.constant 0 : i32
    return %c0_i32, %c0_i32_0, %c0_i32_1 : i32, i32, i32
  }
  func.func @transform_4(%arg0: i32) -> (i32, i32) {
    %c0_i32 = arith.constant 0 : i32
    %c0_i32_0 = arith.constant 0 : i32
    %c0_i32_1 = arith.constant 0 : i32
    return %c0_i32, %c0_i32_0 : i32, i32
  }
  func.func @transform_5(%arg0: i32) -> (i32, i32) {
    %c0_i32 = arith.constant 0 : i32
    %c0_i32_0 = arith.constant 0 : i32
    %c0_i32_1 = arith.constant 0 : i32
    return %c0_i32, %c0_i32_0 : i32, i32
  }
  func.func @transform_6(%arg0: i32) -> (i32, i32) {
    %c0_i32 = arith.constant 0 : i32
    %c0_i32_0 = arith.constant 0 : i32
    %c0_i32_1 = arith.constant 0 : i32
    return %c0_i32, %c0_i32_0 : i32, i32
  }
  func.func @transform_7(%arg0: i32) -> (i32, i32, i32) {
    %c0_i32 = arith.constant 0 : i32
    %c0_i32_0 = arith.constant 0 : i32
    %c0_i32_1 = arith.constant 0 : i32
    return %arg0, %c0_i32, %c0_i32_0 : i32, i32, i32
  }
}

module attributes {stable_mosaic.version = 11 : i64} {
  func.func @_sn_block_kernel(%arg0: i32, %arg1: memref<1x8x32xf32, #tpu.memory_space<vmem>>, %arg2: memref<3x32x64xf32, #tpu.memory_space<vmem>>, %arg3: memref<1x64xf32, #tpu.memory_space<vmem>>, %arg4: memref<3x64x64xf32, #tpu.memory_space<vmem>>, %arg5: memref<1x64xf32, #tpu.memory_space<vmem>>, %arg6: memref<32x64xf32, #tpu.memory_space<vmem>>, %arg7: memref<1x64xf32, #tpu.memory_space<vmem>>, %arg8: memref<1x4x64xf32, #tpu.memory_space<vmem>>, %arg9: memref<8x64xf32, #tpu.memory_space<vmem>>) attributes {dimension_semantics = [#tpu.dimension_semantics<parallel>], iteration_bounds = array<i64: 2>, scalar_prefetch = 0 : i64, scratch_operands = 1 : i64, tpu.core_type = #tpu.core_type<tc>, window_params = [{transform_indices = @transform_0, window_bounds = array<i64: 1, 8, 32>}, {pipeline_mode = #tpu.pipeline_mode<synchronous>, transform_indices = @transform_1, window_bounds = array<i64: 3, 32, 64>}, {pipeline_mode = #tpu.pipeline_mode<synchronous>, transform_indices = @transform_2, window_bounds = array<i64: 1, 64>}, {pipeline_mode = #tpu.pipeline_mode<synchronous>, transform_indices = @transform_3, window_bounds = array<i64: 3, 64, 64>}, {pipeline_mode = #tpu.pipeline_mode<synchronous>, transform_indices = @transform_4, window_bounds = array<i64: 1, 64>}, {pipeline_mode = #tpu.pipeline_mode<synchronous>, transform_indices = @transform_5, window_bounds = array<i64: 32, 64>}, {pipeline_mode = #tpu.pipeline_mode<synchronous>, transform_indices = @transform_6, window_bounds = array<i64: 1, 64>}, {transform_indices = @transform_7, window_bounds = array<i64: 1, 4, 64>}]} {
    %c0 = arith.constant 0 : index
    %c0_0 = arith.constant 0 : index
    %c0_1 = arith.constant 0 : index
    %0 = vector.load %arg1[%c0, %c0_0, %c0_1] : memref<1x8x32xf32, #tpu.memory_space<vmem>>, vector<1x8x32xf32>
    %1 = vector.shape_cast %0 : vector<1x8x32xf32> to vector<8x32xf32>
    %c0_2 = arith.constant 0 : index
    %c0_3 = arith.constant 0 : index
    %c0_4 = arith.constant 0 : index
    %2 = vector.load %arg2[%c0_2, %c0_3, %c0_4] : memref<3x32x64xf32, #tpu.memory_space<vmem>>, vector<1x32x64xf32>
    %3 = vector.shape_cast %2 : vector<1x32x64xf32> to vector<32x64xf32>
    %cst = arith.constant dense<0.000000e+00> : vector<8x64xf32>
    %4 = tpu.matmul %1, %3, %cst {dimension_numbers = #tpu.dot_dimension_numbers<[1], [0], [0], [1], [0, 0, 1, 1], [], []>} : vector<8x32xf32>, vector<32x64xf32>, vector<8x64xf32> -> vector<8x64xf32>
    %c1 = arith.constant 1 : index
    %c0_5 = arith.constant 0 : index
    %c0_6 = arith.constant 0 : index
    %5 = vector.load %arg2[%c1, %c0_5, %c0_6] : memref<3x32x64xf32, #tpu.memory_space<vmem>>, vector<1x32x64xf32>
    %6 = vector.shape_cast %5 : vector<1x32x64xf32> to vector<32x64xf32>
    %cst_7 = arith.constant dense<0.000000e+00> : vector<8x64xf32>
    %7 = tpu.matmul %1, %6, %cst_7 {dimension_numbers = #tpu.dot_dimension_numbers<[1], [0], [0], [1], [0, 0, 1, 1], [], []>} : vector<8x32xf32>, vector<32x64xf32>, vector<8x64xf32> -> vector<8x64xf32>
    %c2 = arith.constant 2 : index
    %c0_8 = arith.constant 0 : index
    %c0_9 = arith.constant 0 : index
    %8 = vector.load %arg2[%c2, %c0_8, %c0_9] : memref<3x32x64xf32, #tpu.memory_space<vmem>>, vector<1x32x64xf32>
    %9 = vector.shape_cast %8 : vector<1x32x64xf32> to vector<32x64xf32>
    %cst_10 = arith.constant dense<0.000000e+00> : vector<8x64xf32>
    %10 = tpu.matmul %1, %9, %cst_10 {dimension_numbers = #tpu.dot_dimension_numbers<[1], [0], [0], [1], [0, 0, 1, 1], [], []>} : vector<8x32xf32>, vector<32x64xf32>, vector<8x64xf32> -> vector<8x64xf32>
    %11 = tpu.iota {dimensions = array<i32: 0>} : vector<8x64xi32>
    %c1_i32 = arith.constant 1 : i32
    %12 = vector.broadcast %c1_i32 : i32 to vector<8x64xi32>
    %13 = arith.cmpi sge, %11, %12 : vector<8x64xi32>
    %c1_i32_11 = arith.constant 1 : i32
    %14 = tpu.dynamic_rotate %4 by %c1_i32_11 dim 0 : vector<8x64xf32>, i32 -> vector<8x64xf32>
    %cst_12 = arith.constant 0.000000e+00 : f32
    %15 = vector.broadcast %cst_12 : f32 to vector<8x64xf32>
    %16 = arith.select %13, %14, %15 : vector<8x64xi1>, vector<8x64xf32>
    %c6_i32 = arith.constant 6 : i32
    %17 = vector.broadcast %c6_i32 : i32 to vector<8x64xi32>
    %18 = arith.cmpi sle, %11, %17 : vector<8x64xi32>
    %c7_i32 = arith.constant 7 : i32
    %19 = tpu.dynamic_rotate %10 by %c7_i32 dim 0 : vector<8x64xf32>, i32 -> vector<8x64xf32>
    %cst_13 = arith.constant 0.000000e+00 : f32
    %20 = vector.broadcast %cst_13 : f32 to vector<8x64xf32>
    %21 = arith.select %18, %19, %20 : vector<8x64xi1>, vector<8x64xf32>
    %22 = arith.addf %16, %7 : vector<8x64xf32>
    %23 = arith.addf %22, %21 : vector<8x64xf32>
    %c0_14 = arith.constant 0 : index
    %c0_15 = arith.constant 0 : index
    %24 = vector.load %arg3[%c0_14, %c0_15] : memref<1x64xf32, #tpu.memory_space<vmem>>, vector<1x64xf32>
    %25 = vector.broadcast %24 : vector<1x64xf32> to vector<8x64xf32>
    %26 = arith.addf %23, %25 : vector<8x64xf32>
    %cst_16 = arith.constant 0.000000e+00 : f32
    %27 = vector.broadcast %cst_16 : f32 to vector<8x64xf32>
    %28 = arith.cmpf oge, %26, %27 : vector<8x64xf32>
    %cst_17 = arith.constant 2.000000e-01 : f32
    %29 = vector.broadcast %cst_17 : f32 to vector<8x64xf32>
    %30 = arith.mulf %29, %26 : vector<8x64xf32>
    %31 = arith.select %28, %26, %30 : vector<8x64xi1>, vector<8x64xf32>
    %c0_18 = arith.constant 0 : index
    %c0_19 = arith.constant 0 : index
    %32 = vector.load %arg9[%c0_18, %c0_19] : memref<8x64xf32, #tpu.memory_space<vmem>>, vector<8x64xf32>
    tpu.vector_store %arg9[%c0_18, %c0_19], %31 {strides = array<i32>} : memref<8x64xf32, #tpu.memory_space<vmem>>, vector<8x64xf32>,
    %c0_20 = arith.constant 0 : index
    %c0_21 = arith.constant 0 : index
    %33 = tpu.strided_load %arg9[%c0_20, %c0_21] {strides = array<i32: 2, 1>} : memref<8x64xf32, #tpu.memory_space<vmem>>, vector<4x64xf32>
    %c1_22 = arith.constant 1 : index
    %c0_23 = arith.constant 0 : index
    %34 = tpu.strided_load %arg9[%c1_22, %c0_23] {strides = array<i32: 2, 1>} : memref<8x64xf32, #tpu.memory_space<vmem>>, vector<4x64xf32>
    %c0_24 = arith.constant 0 : index
    %c0_25 = arith.constant 0 : index
    %c0_26 = arith.constant 0 : index
    %35 = vector.load %arg4[%c0_24, %c0_25, %c0_26] : memref<3x64x64xf32, #tpu.memory_space<vmem>>, vector<1x64x64xf32>
    %36 = vector.shape_cast %35 : vector<1x64x64xf32> to vector<64x64xf32>
    %cst_27 = arith.constant dense<0.000000e+00> : vector<4x64xf32>
    %37 = tpu.matmul %34, %36, %cst_27 {dimension_numbers = #tpu.dot_dimension_numbers<[1], [0], [0], [1], [0, 0, 1, 1], [], []>} : vector<4x64xf32>, vector<64x64xf32>, vector<4x64xf32> -> vector<4x64xf32>
    %c1_28 = arith.constant 1 : index
    %c0_29 = arith.constant 0 : index
    %c0_30 = arith.constant 0 : index
    %38 = vector.load %arg4[%c1_28, %c0_29, %c0_30] : memref<3x64x64xf32, #tpu.memory_space<vmem>>, vector<1x64x64xf32>
    %39 = vector.shape_cast %38 : vector<1x64x64xf32> to vector<64x64xf32>
    %cst_31 = arith.constant dense<0.000000e+00> : vector<4x64xf32>
    %40 = tpu.matmul %33, %39, %cst_31 {dimension_numbers = #tpu.dot_dimension_numbers<[1], [0], [0], [1], [0, 0, 1, 1], [], []>} : vector<4x64xf32>, vector<64x64xf32>, vector<4x64xf32> -> vector<4x64xf32>
    %c2_32 = arith.constant 2 : index
    %c0_33 = arith.constant 0 : index
    %c0_34 = arith.constant 0 : index
    %41 = vector.load %arg4[%c2_32, %c0_33, %c0_34] : memref<3x64x64xf32, #tpu.memory_space<vmem>>, vector<1x64x64xf32>
    %42 = vector.shape_cast %41 : vector<1x64x64xf32> to vector<64x64xf32>
    %cst_35 = arith.constant dense<0.000000e+00> : vector<4x64xf32>
    %43 = tpu.matmul %34, %42, %cst_35 {dimension_numbers = #tpu.dot_dimension_numbers<[1], [0], [0], [1], [0, 0, 1, 1], [], []>} : vector<4x64xf32>, vector<64x64xf32>, vector<4x64xf32> -> vector<4x64xf32>
    %44 = tpu.iota {dimensions = array<i32: 0>} : vector<4x64xi32>
    %c1_i32_36 = arith.constant 1 : i32
    %45 = vector.broadcast %c1_i32_36 : i32 to vector<4x64xi32>
    %46 = arith.cmpi sge, %44, %45 : vector<4x64xi32>
    %c1_i32_37 = arith.constant 1 : i32
    %47 = tpu.dynamic_rotate %37 by %c1_i32_37 dim 0 : vector<4x64xf32>, i32 -> vector<4x64xf32>
    %cst_38 = arith.constant 0.000000e+00 : f32
    %48 = vector.broadcast %cst_38 : f32 to vector<4x64xf32>
    %49 = arith.select %46, %47, %48 : vector<4x64xi1>, vector<4x64xf32>
    %c0_39 = arith.constant 0 : index
    %c0_40 = arith.constant 0 : index
    %c0_41 = arith.constant 0 : index
    %50 = tpu.strided_load %arg1[%c0_39, %c0_40, %c0_41] {strides = array<i32: 1, 2, 1>} : memref<1x8x32xf32, #tpu.memory_space<vmem>>, vector<1x4x32xf32>
    %51 = vector.shape_cast %50 : vector<1x4x32xf32> to vector<4x32xf32>
    %c0_42 = arith.constant 0 : index
    %c0_43 = arith.constant 0 : index
    %52 = vector.load %arg6[%c0_42, %c0_43] : memref<32x64xf32, #tpu.memory_space<vmem>>, vector<32x64xf32>
    %cst_44 = arith.constant dense<0.000000e+00> : vector<4x64xf32>
    %53 = tpu.matmul %51, %52, %cst_44 {dimension_numbers = #tpu.dot_dimension_numbers<[1], [0], [0], [1], [0, 0, 1, 1], [], []>} : vector<4x32xf32>, vector<32x64xf32>, vector<4x64xf32> -> vector<4x64xf32>
    %c0_45 = arith.constant 0 : index
    %c0_46 = arith.constant 0 : index
    %54 = vector.load %arg7[%c0_45, %c0_46] : memref<1x64xf32, #tpu.memory_space<vmem>>, vector<1x64xf32>
    %55 = vector.broadcast %54 : vector<1x64xf32> to vector<4x64xf32>
    %56 = arith.addf %53, %55 : vector<4x64xf32>
    %57 = arith.addf %49, %40 : vector<4x64xf32>
    %58 = arith.addf %57, %43 : vector<4x64xf32>
    %c0_47 = arith.constant 0 : index
    %c0_48 = arith.constant 0 : index
    %59 = vector.load %arg5[%c0_47, %c0_48] : memref<1x64xf32, #tpu.memory_space<vmem>>, vector<1x64xf32>
    %60 = vector.broadcast %59 : vector<1x64xf32> to vector<4x64xf32>
    %61 = arith.addf %58, %60 : vector<4x64xf32>
    %62 = arith.addf %61, %56 : vector<4x64xf32>
    %c0_49 = arith.constant 0 : index
    %c0_50 = arith.constant 0 : index
    %c0_51 = arith.constant 0 : index
    %63 = vector.load %arg8[%c0_49, %c0_50, %c0_51] : memref<1x4x64xf32, #tpu.memory_space<vmem>>, vector<1x4x64xf32>
    %64 = vector.shape_cast %63 : vector<1x4x64xf32> to vector<4x64xf32>
    %65 = vector.shape_cast %62 : vector<4x64xf32> to vector<1x4x64xf32>
    tpu.vector_store %arg8[%c0_49, %c0_50, %c0_51], %65 {strides = array<i32>} : memref<1x4x64xf32, #tpu.memory_space<vmem>>, vector<1x4x64xf32>,
    return
  }
  func.func @transform_0(%arg0: i32) -> (i32, i32, i32) {
    %c0_i32 = arith.constant 0 : i32
    %c0_i32_0 = arith.constant 0 : i32
    %c0_i32_1 = arith.constant 0 : i32
    return %arg0, %c0_i32, %c0_i32_0 : i32, i32, i32
  }
  func.func @transform_1(%arg0: i32) -> (i32, i32, i32) {
    %c0_i32 = arith.constant 0 : i32
    %c0_i32_0 = arith.constant 0 : i32
    %c0_i32_1 = arith.constant 0 : i32
    %c0_i32_2 = arith.constant 0 : i32
    return %c0_i32, %c0_i32_0, %c0_i32_1 : i32, i32, i32
  }
  func.func @transform_2(%arg0: i32) -> (i32, i32) {
    %c0_i32 = arith.constant 0 : i32
    %c0_i32_0 = arith.constant 0 : i32
    %c0_i32_1 = arith.constant 0 : i32
    return %c0_i32, %c0_i32_0 : i32, i32
  }
  func.func @transform_3(%arg0: i32) -> (i32, i32, i32) {
    %c0_i32 = arith.constant 0 : i32
    %c0_i32_0 = arith.constant 0 : i32
    %c0_i32_1 = arith.constant 0 : i32
    %c0_i32_2 = arith.constant 0 : i32
    return %c0_i32, %c0_i32_0, %c0_i32_1 : i32, i32, i32
  }
  func.func @transform_4(%arg0: i32) -> (i32, i32) {
    %c0_i32 = arith.constant 0 : i32
    %c0_i32_0 = arith.constant 0 : i32
    %c0_i32_1 = arith.constant 0 : i32
    return %c0_i32, %c0_i32_0 : i32, i32
  }
  func.func @transform_5(%arg0: i32) -> (i32, i32) {
    %c0_i32 = arith.constant 0 : i32
    %c0_i32_0 = arith.constant 0 : i32
    %c0_i32_1 = arith.constant 0 : i32
    return %c0_i32, %c0_i32_0 : i32, i32
  }
  func.func @transform_6(%arg0: i32) -> (i32, i32) {
    %c0_i32 = arith.constant 0 : i32
    %c0_i32_0 = arith.constant 0 : i32
    %c0_i32_1 = arith.constant 0 : i32
    return %c0_i32, %c0_i32_0 : i32, i32
  }
  func.func @transform_7(%arg0: i32) -> (i32, i32, i32) {
    %c0_i32 = arith.constant 0 : i32
    %c0_i32_0 = arith.constant 0 : i32
    %c0_i32_1 = arith.constant 0 : i32
    return %arg0, %c0_i32, %c0_i32_0 : i32, i32, i32
  }
}

module attributes {stable_mosaic.version = 11 : i64} {
  func.func @_sn_block_kernel(%arg0: i32, %arg1: memref<1x4x64xf32, #tpu.memory_space<vmem>>, %arg2: memref<3x64x128xf32, #tpu.memory_space<vmem>>, %arg3: memref<1x128xf32, #tpu.memory_space<vmem>>, %arg4: memref<3x128x128xf32, #tpu.memory_space<vmem>>, %arg5: memref<1x128xf32, #tpu.memory_space<vmem>>, %arg6: memref<64x128xf32, #tpu.memory_space<vmem>>, %arg7: memref<1x128xf32, #tpu.memory_space<vmem>>, %arg8: memref<1x2x128xf32, #tpu.memory_space<vmem>>, %arg9: memref<4x128xf32, #tpu.memory_space<vmem>>) attributes {dimension_semantics = [#tpu.dimension_semantics<parallel>], iteration_bounds = array<i64: 2>, scalar_prefetch = 0 : i64, scratch_operands = 1 : i64, tpu.core_type = #tpu.core_type<tc>, window_params = [{transform_indices = @transform_0, window_bounds = array<i64: 1, 4, 64>}, {pipeline_mode = #tpu.pipeline_mode<synchronous>, transform_indices = @transform_1, window_bounds = array<i64: 3, 64, 128>}, {pipeline_mode = #tpu.pipeline_mode<synchronous>, transform_indices = @transform_2, window_bounds = array<i64: 1, 128>}, {pipeline_mode = #tpu.pipeline_mode<synchronous>, transform_indices = @transform_3, window_bounds = array<i64: 3, 128, 128>}, {pipeline_mode = #tpu.pipeline_mode<synchronous>, transform_indices = @transform_4, window_bounds = array<i64: 1, 128>}, {pipeline_mode = #tpu.pipeline_mode<synchronous>, transform_indices = @transform_5, window_bounds = array<i64: 64, 128>}, {pipeline_mode = #tpu.pipeline_mode<synchronous>, transform_indices = @transform_6, window_bounds = array<i64: 1, 128>}, {transform_indices = @transform_7, window_bounds = array<i64: 1, 2, 128>}]} {
    %c0 = arith.constant 0 : index
    %c0_0 = arith.constant 0 : index
    %c0_1 = arith.constant 0 : index
    %0 = vector.load %arg1[%c0, %c0_0, %c0_1] : memref<1x4x64xf32, #tpu.memory_space<vmem>>, vector<1x4x64xf32>
    %1 = vector.shape_cast %0 : vector<1x4x64xf32> to vector<4x64xf32>
    %c0_2 = arith.constant 0 : index
    %c0_3 = arith.constant 0 : index
    %c0_4 = arith.constant 0 : index
    %2 = vector.load %arg2[%c0_2, %c0_3, %c0_4] : memref<3x64x128xf32, #tpu.memory_space<vmem>>, vector<1x64x128xf32>
    %3 = vector.shape_cast %2 : vector<1x64x128xf32> to vector<64x128xf32>
    %cst = arith.constant dense<0.000000e+00> : vector<4x128xf32>
    %4 = tpu.matmul %1, %3, %cst {dimension_numbers = #tpu.dot_dimension_numbers<[1], [0], [0], [1], [0, 0, 1, 1], [], []>} : vector<4x64xf32>, vector<64x128xf32>, vector<4x128xf32> -> vector<4x128xf32>
    %c1 = arith.constant 1 : index
    %c0_5 = arith.constant 0 : index
    %c0_6 = arith.constant 0 : index
    %5 = vector.load %arg2[%c1, %c0_5, %c0_6] : memref<3x64x128xf32, #tpu.memory_space<vmem>>, vector<1x64x128xf32>
    %6 = vector.shape_cast %5 : vector<1x64x128xf32> to vector<64x128xf32>
    %cst_7 = arith.constant dense<0.000000e+00> : vector<4x128xf32>
    %7 = tpu.matmul %1, %6, %cst_7 {dimension_numbers = #tpu.dot_dimension_numbers<[1], [0], [0], [1], [0, 0, 1, 1], [], []>} : vector<4x64xf32>, vector<64x128xf32>, vector<4x128xf32> -> vector<4x128xf32>
    %c2 = arith.constant 2 : index
    %c0_8 = arith.constant 0 : index
    %c0_9 = arith.constant 0 : index
    %8 = vector.load %arg2[%c2, %c0_8, %c0_9] : memref<3x64x128xf32, #tpu.memory_space<vmem>>, vector<1x64x128xf32>
    %9 = vector.shape_cast %8 : vector<1x64x128xf32> to vector<64x128xf32>
    %cst_10 = arith.constant dense<0.000000e+00> : vector<4x128xf32>
    %10 = tpu.matmul %1, %9, %cst_10 {dimension_numbers = #tpu.dot_dimension_numbers<[1], [0], [0], [1], [0, 0, 1, 1], [], []>} : vector<4x64xf32>, vector<64x128xf32>, vector<4x128xf32> -> vector<4x128xf32>
    %11 = tpu.iota {dimensions = array<i32: 0>} : vector<4x128xi32>
    %c1_i32 = arith.constant 1 : i32
    %12 = vector.broadcast %c1_i32 : i32 to vector<4x128xi32>
    %13 = arith.cmpi sge, %11, %12 : vector<4x128xi32>
    %c1_i32_11 = arith.constant 1 : i32
    %14 = tpu.dynamic_rotate %4 by %c1_i32_11 dim 0 : vector<4x128xf32>, i32 -> vector<4x128xf32>
    %cst_12 = arith.constant 0.000000e+00 : f32
    %15 = vector.broadcast %cst_12 : f32 to vector<4x128xf32>
    %16 = arith.select %13, %14, %15 : vector<4x128xi1>, vector<4x128xf32>
    %c2_i32 = arith.constant 2 : i32
    %17 = vector.broadcast %c2_i32 : i32 to vector<4x128xi32>
    %18 = arith.cmpi sle, %11, %17 : vector<4x128xi32>
    %c3_i32 = arith.constant 3 : i32
    %19 = tpu.dynamic_rotate %10 by %c3_i32 dim 0 : vector<4x128xf32>, i32 -> vector<4x128xf32>
    %cst_13 = arith.constant 0.000000e+00 : f32
    %20 = vector.broadcast %cst_13 : f32 to vector<4x128xf32>
    %21 = arith.select %18, %19, %20 : vector<4x128xi1>, vector<4x128xf32>
    %22 = arith.addf %16, %7 : vector<4x128xf32>
    %23 = arith.addf %22, %21 : vector<4x128xf32>
    %c0_14 = arith.constant 0 : index
    %c0_15 = arith.constant 0 : index
    %24 = vector.load %arg3[%c0_14, %c0_15] : memref<1x128xf32, #tpu.memory_space<vmem>>, vector<1x128xf32>
    %25 = vector.broadcast %24 : vector<1x128xf32> to vector<4x128xf32>
    %26 = arith.addf %23, %25 : vector<4x128xf32>
    %cst_16 = arith.constant 0.000000e+00 : f32
    %27 = vector.broadcast %cst_16 : f32 to vector<4x128xf32>
    %28 = arith.cmpf oge, %26, %27 : vector<4x128xf32>
    %cst_17 = arith.constant 2.000000e-01 : f32
    %29 = vector.broadcast %cst_17 : f32 to vector<4x128xf32>
    %30 = arith.mulf %29, %26 : vector<4x128xf32>
    %31 = arith.select %28, %26, %30 : vector<4x128xi1>, vector<4x128xf32>
    %c0_18 = arith.constant 0 : index
    %c0_19 = arith.constant 0 : index
    %32 = vector.load %arg9[%c0_18, %c0_19] : memref<4x128xf32, #tpu.memory_space<vmem>>, vector<4x128xf32>
    tpu.vector_store %arg9[%c0_18, %c0_19], %31 {strides = array<i32>} : memref<4x128xf32, #tpu.memory_space<vmem>>, vector<4x128xf32>,
    %c0_20 = arith.constant 0 : index
    %c0_21 = arith.constant 0 : index
    %33 = tpu.strided_load %arg9[%c0_20, %c0_21] {strides = array<i32: 2, 1>} : memref<4x128xf32, #tpu.memory_space<vmem>>, vector<2x128xf32>
    %c1_22 = arith.constant 1 : index
    %c0_23 = arith.constant 0 : index
    %34 = tpu.strided_load %arg9[%c1_22, %c0_23] {strides = array<i32: 2, 1>} : memref<4x128xf32, #tpu.memory_space<vmem>>, vector<2x128xf32>
    %c0_24 = arith.constant 0 : index
    %c0_25 = arith.constant 0 : index
    %c0_26 = arith.constant 0 : index
    %35 = vector.load %arg4[%c0_24, %c0_25, %c0_26] : memref<3x128x128xf32, #tpu.memory_space<vmem>>, vector<1x128x128xf32>
    %36 = vector.shape_cast %35 : vector<1x128x128xf32> to vector<128x128xf32>
    %cst_27 = arith.constant dense<0.000000e+00> : vector<2x128xf32>
    %37 = tpu.matmul %34, %36, %cst_27 {dimension_numbers = #tpu.dot_dimension_numbers<[1], [0], [0], [1], [0, 0, 1, 1], [], []>} : vector<2x128xf32>, vector<128x128xf32>, vector<2x128xf32> -> vector<2x128xf32>
    %c1_28 = arith.constant 1 : index
    %c0_29 = arith.constant 0 : index
    %c0_30 = arith.constant 0 : index
    %38 = vector.load %arg4[%c1_28, %c0_29, %c0_30] : memref<3x128x128xf32, #tpu.memory_space<vmem>>, vector<1x128x128xf32>
    %39 = vector.shape_cast %38 : vector<1x128x128xf32> to vector<128x128xf32>
    %cst_31 = arith.constant dense<0.000000e+00> : vector<2x128xf32>
    %40 = tpu.matmul %33, %39, %cst_31 {dimension_numbers = #tpu.dot_dimension_numbers<[1], [0], [0], [1], [0, 0, 1, 1], [], []>} : vector<2x128xf32>, vector<128x128xf32>, vector<2x128xf32> -> vector<2x128xf32>
    %c2_32 = arith.constant 2 : index
    %c0_33 = arith.constant 0 : index
    %c0_34 = arith.constant 0 : index
    %41 = vector.load %arg4[%c2_32, %c0_33, %c0_34] : memref<3x128x128xf32, #tpu.memory_space<vmem>>, vector<1x128x128xf32>
    %42 = vector.shape_cast %41 : vector<1x128x128xf32> to vector<128x128xf32>
    %cst_35 = arith.constant dense<0.000000e+00> : vector<2x128xf32>
    %43 = tpu.matmul %34, %42, %cst_35 {dimension_numbers = #tpu.dot_dimension_numbers<[1], [0], [0], [1], [0, 0, 1, 1], [], []>} : vector<2x128xf32>, vector<128x128xf32>, vector<2x128xf32> -> vector<2x128xf32>
    %44 = tpu.iota {dimensions = array<i32: 0>} : vector<2x128xi32>
    %c1_i32_36 = arith.constant 1 : i32
    %45 = vector.broadcast %c1_i32_36 : i32 to vector<2x128xi32>
    %46 = arith.cmpi sge, %44, %45 : vector<2x128xi32>
    %c1_i32_37 = arith.constant 1 : i32
    %47 = tpu.dynamic_rotate %37 by %c1_i32_37 dim 0 : vector<2x128xf32>, i32 -> vector<2x128xf32>
    %cst_38 = arith.constant 0.000000e+00 : f32
    %48 = vector.broadcast %cst_38 : f32 to vector<2x128xf32>
    %49 = arith.select %46, %47, %48 : vector<2x128xi1>, vector<2x128xf32>
    %c0_39 = arith.constant 0 : index
    %c0_40 = arith.constant 0 : index
    %c0_41 = arith.constant 0 : index
    %50 = tpu.strided_load %arg1[%c0_39, %c0_40, %c0_41] {strides = array<i32: 1, 2, 1>} : memref<1x4x64xf32, #tpu.memory_space<vmem>>, vector<1x2x64xf32>
    %51 = vector.shape_cast %50 : vector<1x2x64xf32> to vector<2x64xf32>
    %c0_42 = arith.constant 0 : index
    %c0_43 = arith.constant 0 : index
    %52 = vector.load %arg6[%c0_42, %c0_43] : memref<64x128xf32, #tpu.memory_space<vmem>>, vector<64x128xf32>
    %cst_44 = arith.constant dense<0.000000e+00> : vector<2x128xf32>
    %53 = tpu.matmul %51, %52, %cst_44 {dimension_numbers = #tpu.dot_dimension_numbers<[1], [0], [0], [1], [0, 0, 1, 1], [], []>} : vector<2x64xf32>, vector<64x128xf32>, vector<2x128xf32> -> vector<2x128xf32>
    %c0_45 = arith.constant 0 : index
    %c0_46 = arith.constant 0 : index
    %54 = vector.load %arg7[%c0_45, %c0_46] : memref<1x128xf32, #tpu.memory_space<vmem>>, vector<1x128xf32>
    %55 = vector.broadcast %54 : vector<1x128xf32> to vector<2x128xf32>
    %56 = arith.addf %53, %55 : vector<2x128xf32>
    %57 = arith.addf %49, %40 : vector<2x128xf32>
    %58 = arith.addf %57, %43 : vector<2x128xf32>
    %c0_47 = arith.constant 0 : index
    %c0_48 = arith.constant 0 : index
    %59 = vector.load %arg5[%c0_47, %c0_48] : memref<1x128xf32, #tpu.memory_space<vmem>>, vector<1x128xf32>
    %60 = vector.broadcast %59 : vector<1x128xf32> to vector<2x128xf32>
    %61 = arith.addf %58, %60 : vector<2x128xf32>
    %62 = arith.addf %61, %56 : vector<2x128xf32>
    %cst_49 = arith.constant 0.000000e+00 : f32
    %63 = vector.broadcast %cst_49 : f32 to vector<2x128xf32>
    %64 = arith.cmpf oge, %62, %63 : vector<2x128xf32>
    %cst_50 = arith.constant 2.000000e-01 : f32
    %65 = vector.broadcast %cst_50 : f32 to vector<2x128xf32>
    %66 = arith.mulf %65, %62 : vector<2x128xf32>
    %67 = arith.select %64, %62, %66 : vector<2x128xi1>, vector<2x128xf32>
    %c0_51 = arith.constant 0 : index
    %c0_52 = arith.constant 0 : index
    %c0_53 = arith.constant 0 : index
    %68 = vector.load %arg8[%c0_51, %c0_52, %c0_53] : memref<1x2x128xf32, #tpu.memory_space<vmem>>, vector<1x2x128xf32>
    %69 = vector.shape_cast %68 : vector<1x2x128xf32> to vector<2x128xf32>
    %70 = vector.shape_cast %67 : vector<2x128xf32> to vector<1x2x128xf32>
    tpu.vector_store %arg8[%c0_51, %c0_52, %c0_53], %70 {strides = array<i32>} : memref<1x2x128xf32, #tpu.memory_space<vmem>>, vector<1x2x128xf32>,
    return
  }
  func.func @transform_0(%arg0: i32) -> (i32, i32, i32) {
    %c0_i32 = arith.constant 0 : i32
    %c0_i32_0 = arith.constant 0 : i32
    %c0_i32_1 = arith.constant 0 : i32
    return %arg0, %c0_i32, %c0_i32_0 : i32, i32, i32
  }
  func.func @transform_1(%arg0: i32) -> (i32, i32, i32) {
    %c0_i32 = arith.constant 0 : i32
    %c0_i32_0 = arith.constant 0 : i32
    %c0_i32_1 = arith.constant 0 : i32
    %c0_i32_2 = arith.constant 0 : i32
    return %c0_i32, %c0_i32_0, %c0_i32_1 : i32, i32, i32
  }
  func.func @transform_2(%arg0: i32) -> (i32, i32) {
    %c0_i32 = arith.constant 0 : i32
    %c0_i32_0 = arith.constant 0 : i32
    %c0_i32_1 = arith.constant 0 : i32
    return %c0_i32, %c0_i32_0 : i32, i32
  }
  func.func @transform_3(%arg0: i32) -> (i32, i32, i32) {
    %c0_i32 = arith.constant 0 : i32
    %c0_i32_0 = arith.constant 0 : i32
    %c0_i32_1 = arith.constant 0 : i32
    %c0_i32_2 = arith.constant 0 : i32
    return %c0_i32, %c0_i32_0, %c0_i32_1 : i32, i32, i32
  }
  func.func @transform_4(%arg0: i32) -> (i32, i32) {
    %c0_i32 = arith.constant 0 : i32
    %c0_i32_0 = arith.constant 0 : i32
    %c0_i32_1 = arith.constant 0 : i32
    return %c0_i32, %c0_i32_0 : i32, i32
  }
  func.func @transform_5(%arg0: i32) -> (i32, i32) {
    %c0_i32 = arith.constant 0 : i32
    %c0_i32_0 = arith.constant 0 : i32
    %c0_i32_1 = arith.constant 0 : i32
    return %c0_i32, %c0_i32_0 : i32, i32
  }
  func.func @transform_6(%arg0: i32) -> (i32, i32) {
    %c0_i32 = arith.constant 0 : i32
    %c0_i32_0 = arith.constant 0 : i32
    %c0_i32_1 = arith.constant 0 : i32
    return %c0_i32, %c0_i32_0 : i32, i32
  }
  func.func @transform_7(%arg0: i32) -> (i32, i32, i32) {
    %c0_i32 = arith.constant 0 : i32
    %c0_i32_0 = arith.constant 0 : i32
    %c0_i32_1 = arith.constant 0 : i32
    return %arg0, %c0_i32, %c0_i32_0 : i32, i32, i32
  }
}

module attributes {stable_mosaic.version = 11 : i64} {
  func.func @_tail_kernel(%arg0: memref<2x2x128xf32, #tpu.memory_space<vmem>>, %arg1: memref<128x8xf32, #tpu.memory_space<vmem>>, %arg2: memref<1x8xf32, #tpu.memory_space<vmem>>, %arg3: memref<1x8xf32, #tpu.memory_space<vmem>>, %arg4: memref<2x8xf32, #tpu.memory_space<vmem>>, %arg5: memref<1x1xf32, #tpu.memory_space<vmem>>, %arg6: memref<2x1xf32, #tpu.memory_space<vmem>>) attributes {dimension_semantics = [], scalar_prefetch = 0 : i64, scratch_operands = 0 : i64, tpu.core_type = #tpu.core_type<tc>} {
    %c0 = arith.constant 0 : index
    %c0_0 = arith.constant 0 : index
    %c0_1 = arith.constant 0 : index
    %0 = vector.load %arg0[%c0, %c0_0, %c0_1] : memref<2x2x128xf32, #tpu.memory_space<vmem>>, vector<2x2x128xf32>
    %cst = arith.constant dense<0.000000e+00> : vector<2x128xf32>
    %1 = vector.multi_reduction <add>, %0, %cst [0] : vector<2x2x128xf32> to vector<2x128xf32>
    %2 = vector.shape_cast %1 : vector<2x128xf32> to vector<1x2x128xf32>
    %cst_2 = arith.constant 2.000000e+00 : f32
    %3 = vector.broadcast %cst_2 : f32 to vector<1x2x128xf32>
    %4 = arith.divf %2, %3 : vector<1x2x128xf32>
    %5 = vector.broadcast %4 : vector<1x2x128xf32> to vector<2x2x128xf32>
    %6 = arith.subf %0, %5 : vector<2x2x128xf32>
    %7 = arith.mulf %6, %6 : vector<2x2x128xf32>
    %cst_3 = arith.constant dense<0.000000e+00> : vector<2x128xf32>
    %8 = vector.multi_reduction <add>, %7, %cst_3 [0] : vector<2x2x128xf32> to vector<2x128xf32>
    %9 = vector.shape_cast %8 : vector<2x128xf32> to vector<1x2x128xf32>
    %cst_4 = arith.constant 2.000000e+00 : f32
    %10 = vector.broadcast %cst_4 : f32 to vector<1x2x128xf32>
    %11 = arith.divf %9, %10 : vector<1x2x128xf32>
    %cst_5 = arith.constant 9.99999993E-9 : f32
    %12 = vector.broadcast %cst_5 : f32 to vector<1x2x128xf32>
    %13 = arith.addf %11, %12 : vector<1x2x128xf32>
    %14 = math.sqrt %13 : vector<1x2x128xf32>
    %cst_6 = arith.constant dense<0.000000e+00> : vector<1x2xf32>
    %15 = vector.multi_reduction <add>, %14, %cst_6 [2] : vector<1x2x128xf32> to vector<1x2xf32>
    %16 = vector.shape_cast %15 : vector<1x2xf32> to vector<1x2x1xf32>
    %cst_7 = arith.constant 1.280000e+02 : f32
    %17 = vector.broadcast %cst_7 : f32 to vector<1x2x1xf32>
    %18 = arith.divf %16, %17 : vector<1x2x1xf32>
    %cst_8 = arith.constant dense<0.000000e+00> : vector<1x1xf32>
    %19 = vector.multi_reduction <add>, %18, %cst_8 [1] : vector<1x2x1xf32> to vector<1x1xf32>
    %20 = vector.shape_cast %19 : vector<1x1xf32> to vector<1x1x1xf32>
    %cst_9 = arith.constant 2.000000e+00 : f32
    %21 = vector.broadcast %cst_9 : f32 to vector<1x1x1xf32>
    %22 = arith.divf %20, %21 : vector<1x1x1xf32>
    %23 = vector.shape_cast %22 : vector<1x1x1xf32> to vector<1x1xf32>
    %24 = vector.shape_cast %0 : vector<2x2x128xf32> to vector<4x128xf32>
    %c0_10 = arith.constant 0 : index
    %c0_11 = arith.constant 0 : index
    %25 = vector.load %arg1[%c0_10, %c0_11] : memref<128x8xf32, #tpu.memory_space<vmem>>, vector<128x8xf32>
    %cst_12 = arith.constant dense<0.000000e+00> : vector<4x8xf32>
    %26 = tpu.matmul %24, %25, %cst_12 {dimension_numbers = #tpu.dot_dimension_numbers<[1], [0], [0], [1], [0, 0, 1, 1], [], []>} : vector<4x128xf32>, vector<128x8xf32>, vector<4x8xf32> -> vector<4x8xf32>
    %c0_13 = arith.constant 0 : index
    %c0_14 = arith.constant 0 : index
    %27 = vector.load %arg2[%c0_13, %c0_14] : memref<1x8xf32, #tpu.memory_space<vmem>>, vector<1x8xf32>
    %28 = vector.broadcast %23 : vector<1x1xf32> to vector<1x8xf32>
    %29 = arith.mulf %28, %27 : vector<1x8xf32>
    %30 = vector.broadcast %29 : vector<1x8xf32> to vector<4x8xf32>
    %31 = arith.addf %26, %30 : vector<4x8xf32>
    %c0_15 = arith.constant 0 : index
    %c0_16 = arith.constant 0 : index
    %32 = vector.load %arg3[%c0_15, %c0_16] : memref<1x8xf32, #tpu.memory_space<vmem>>, vector<1x8xf32>
    %33 = vector.broadcast %32 : vector<1x8xf32> to vector<4x8xf32>
    %34 = arith.addf %31, %33 : vector<4x8xf32>
    %35 = vector.shape_cast %34 : vector<4x8xf32> to vector<2x2x8xf32>
    %c0_17 = arith.constant 0 : index
    %c0_18 = arith.constant 0 : index
    %36 = vector.load %arg4[%c0_17, %c0_18] : memref<2x8xf32, #tpu.memory_space<vmem>>, vector<2x8xf32>
    %37 = vector.shape_cast %36 : vector<2x8xf32> to vector<1x2x8xf32>
    %38 = vector.broadcast %37 : vector<1x2x8xf32> to vector<2x2x8xf32>
    %39 = arith.mulf %35, %38 : vector<2x2x8xf32>
    %cst_19 = arith.constant dense<0.000000e+00> : vector<2x2xf32>
    %40 = vector.multi_reduction <add>, %39, %cst_19 [2] : vector<2x2x8xf32> to vector<2x2xf32>
    %cst_20 = arith.constant dense<0.000000e+00> : vector<2xf32>
    %41 = vector.multi_reduction <add>, %40, %cst_20 [1] : vector<2x2xf32> to vector<2xf32>
    %42 = vector.shape_cast %41 : vector<2xf32> to vector<2x1xf32>
    %c0_21 = arith.constant 0 : index
    %c0_22 = arith.constant 0 : index
    %43 = vector.load %arg5[%c0_21, %c0_22] : memref<1x1xf32, #tpu.memory_space<vmem>>, vector<1x1xf32>
    %44 = vector.broadcast %43 : vector<1x1xf32> to vector<2x1xf32>
    %45 = arith.addf %42, %44 : vector<2x1xf32>
    %c0_23 = arith.constant 0 : index
    %c0_24 = arith.constant 0 : index
    %46 = vector.load %arg6[%c0_23, %c0_24] : memref<2x1xf32, #tpu.memory_space<vmem>>, vector<2x1xf32>
    tpu.vector_store %arg6[%c0_23, %c0_24], %45 {strides = array<i32>} : memref<2x1xf32, #tpu.memory_space<vmem>>, vector<2x1xf32>,
    return
  }
}

</mosaic_0001>

<llo_original>
// kernel: gumbel_discriminator_forward.8
$region0: #{gumbel_discriminator_forward.8}
  #allocation0 [shape = 'u32[]', space=smem, size = 0x4, offset = 0x4, fixed_abs, tag = 'smem constant byte address 0x4 - core index']
  #allocation1 [shape = 'u32[144,128]{1,0:T(1,128)}', space=vmem, size = 0x12000, scoped, tag = 'internal scratch']
  #allocation2 [shape = 'f32[4,128]{1,0:T(4,128)}', space=vmem, size = 0x800, scoped, tag = 'scratch operand']
  %s0 = inlined_call_operand.vmem [shape: f32[2,4,64], index: 0, kind: input, shape index: {}]
  %s1 = inlined_call_operand.vmem [shape: f32[3,64,128], index: 1, kind: input, shape index: {}]
  %s2 = inlined_call_operand.vmem [shape: f32[1,128], index: 2, kind: input, shape index: {}]
  %s3 = inlined_call_operand.vmem [shape: f32[3,128,128], index: 3, kind: input, shape index: {}]
  %s4 = inlined_call_operand.vmem [shape: f32[1,128], index: 4, kind: input, shape index: {}]
  %s5 = inlined_call_operand.vmem [shape: f32[64,128], index: 5, kind: input, shape index: {}]
  %s6 = inlined_call_operand.vmem [shape: f32[1,128], index: 6, kind: input, shape index: {}]
  %s7 = inlined_call_operand.vmem [shape: f32[2,2,128], index: 7, kind: output, shape index: {}]
  %s8 = sld [smem:[#allocation0]]
  $region61: #{gumbel_discriminator_forward.8} parent=0
    _
  %s10 = ssub.s32 1, %s8
  %s11 = scalar_select 0, %s10, %s8
  loop: start=0, step=1, limit=4
  $region2: #{gumbel_discriminator_forward.8} parent=0 // loop_pre_header
    _
  $region3: #{gumbel_discriminator_forward.8} parent=0 // loop_header
    %s13 = sphi 0, %s17
    %p14 = scmp.ge.s32.totalorder %s13, 4
    %s23 = sphi 0, %s25
    %s26 = sphi 0, %s23
    %s27 = sphi 0, %s26
    %s43 = sphi 0, %s27
    %s47 = sphi 0, %s47
    %s49 = sphi 0, %s47
    %s50 = sphi 0, %s49
    %s64 = sphi 0, %s50
    %s68 = sphi 0, %s68
    %s70 = sphi 0, %s68
    %s71 = sphi 0, %s70
    %s85 = sphi 0, %s71
    %s89 = sphi 0, %s89
    %s91 = sphi 0, %s89
    %s92 = sphi 0, %s91
    %s106 = sphi 0, %s92
    %s110 = sphi 0, %s110
    %s112 = sphi 0, %s110
    %s113 = sphi 0, %s112
    %s127 = sphi 0, %s113
    %s131 = sphi 0, %s131
    %s133 = sphi 0, %s131
    %s134 = sphi 0, %s133
    %s148 = sphi 0, %s134
    %s152 = sphi 0, %s152
    %s154 = sphi 0, %s152
    %s155 = sphi 0, %s154
    %s169 = sphi 0, %s155
    %s175 = sphi 0, %s177
    %s178 = sphi 0, %s175
    %s179 = sphi 0, %s178
    %s195 = sphi 0, %s179
  $region4: #{gumbel_discriminator_forward.8} parent=0 // loop_header_branch
    %16 = sbr.rel (%p14) target = $region8
  $region5: #{gumbel_discriminator_forward.8} parent=0 // loop_body
    %s18 = ssub.s32 %s13, 1
    %s19 = ssub.s32 %s13, 2
    %s20 = sadd.s32 %s13, 1
    %s21 = ssub.s32 %s13, %s20
    %p22 = scmp.eq.s32.totalorder %s21, 0
    %s24 = sadd.s32 %s23, 1
    %s25 = scalar_select %p22, %s23, %s24
    %p28 = pneg %p22
    %p29 = scmp.eq.s32.totalorder %s13, 1
    %p30 = por %p28, %p29
    %p31 = scmp.ne.s32.totalorder %s23, %s26
    %p32 = scmp.eq.s32.totalorder %s13, 0
    %p33 = por %p31, %p32
    %p34 = scmp.ne.s32.totalorder %s23, %s26
    %p35 = scmp.eq.s32.totalorder %s18, 1
    %p36 = por %p34, %p35
    %p37 = scmp.ne.s32.totalorder %s26, %s27
    %p38 = scmp.eq.s32.totalorder %s18, 0
    %p39 = por %p37, %p38
    %p40 = scmp.ne.s32.totalorder %s26, %s27
    %p41 = scmp.eq.s32.totalorder %s19, 1
    %p42 = por %p40, %p41
    %p44 = scmp.ne.s32.totalorder %s27, %s43
    %p45 = scmp.eq.s32.totalorder %s19, 0
    %p46 = por %p44, %p45
    %s48 = sadd.s32 %s47, 1
    %p51 = scmp.eq.s32.totalorder %s13, 1
    %p52 = scmp.ne.s32.totalorder %s47, %s49
    %p53 = scmp.eq.s32.totalorder %s13, 0
    %p54 = por %p52, %p53
    %p55 = scmp.ne.s32.totalorder %s47, %s49
    %p56 = scmp.eq.s32.totalorder %s18, 1
    %p57 = por %p55, %p56
    %p58 = scmp.ne.s32.totalorder %s49, %s50
    %p59 = scmp.eq.s32.totalorder %s18, 0
    %p60 = por %p58, %p59
    %p61 = scmp.ne.s32.totalorder %s49, %s50
    %p62 = scmp.eq.s32.totalorder %s19, 1
    %p63 = por %p61, %p62
    %p65 = scmp.ne.s32.totalorder %s50, %s64
    %p66 = scmp.eq.s32.totalorder %s19, 0
    %p67 = por %p65, %p66
    %s69 = sadd.s32 %s68, 1
    %p72 = scmp.eq.s32.totalorder %s13, 1
    %p73 = scmp.ne.s32.totalorder %s68, %s70
    %p74 = scmp.eq.s32.totalorder %s13, 0
    %p75 = por %p73, %p74
    %p76 = scmp.ne.s32.totalorder %s68, %s70
    %p77 = scmp.eq.s32.totalorder %s18, 1
    %p78 = por %p76, %p77
    %p79 = scmp.ne.s32.totalorder %s70, %s71
    %p80 = scmp.eq.s32.totalorder %s18, 0
    %p81 = por %p79, %p80
    %p82 = scmp.ne.s32.totalorder %s70, %s71
    %p83 = scmp.eq.s32.totalorder %s19, 1
    %p84 = por %p82, %p83
    %p86 = scmp.ne.s32.totalorder %s71, %s85
    %p87 = scmp.eq.s32.totalorder %s19, 0
    %p88 = por %p86, %p87
    %s90 = sadd.s32 %s89, 1
    %p93 = scmp.eq.s32.totalorder %s13, 1
    %p94 = scmp.ne.s32.totalorder %s89, %s91
    %p95 = scmp.eq.s32.totalorder %s13, 0
    %p96 = por %p94, %p95
    %p97 = scmp.ne.s32.totalorder %s89, %s91
    %p98 = scmp.eq.s32.totalorder %s18, 1
    %p99 = por %p97, %p98
    %p100 = scmp.ne.s32.totalorder %s91, %s92
    %p101 = scmp.eq.s32.totalorder %s18, 0
    %p102 = por %p100, %p101
    %p103 = scmp.ne.s32.totalorder %s91, %s92
    %p104 = scmp.eq.s32.totalorder %s19, 1
    %p105 = por %p103, %p104
    %p107 = scmp.ne.s32.totalorder %s92, %s106
    %p108 = scmp.eq.s32.totalorder %s19, 0
    %p109 = por %p107, %p108
    %s111 = sadd.s32 %s110, 1
    %p114 = scmp.eq.s32.totalorder %s13, 1
    %p115 = scmp.ne.s32.totalorder %s110, %s112
    %p116 = scmp.eq.s32.totalorder %s13, 0
    %p117 = por %p115, %p116
    %p118 = scmp.ne.s32.totalorder %s110, %s112
    %p119 = scmp.eq.s32.totalorder %s18, 1
    %p120 = por %p118, %p119
    %p121 = scmp.ne.s32.totalorder %s112, %s113
    %p122 = scmp.eq.s32.totalorder %s18, 0
    %p123 = por %p121, %p122
    %p124 = scmp.ne.s32.totalorder %s112, %s113
    %p125 = scmp.eq.s32.totalorder %s19, 1
    %p126 = por %p124, %p125
    %p128 = scmp.ne.s32.totalorder %s113, %s127
    %p129 = scmp.eq.s32.totalorder %s19, 0
    %p130 = por %p128, %p129
    %s132 = sadd.s32 %s131, 1
    %p135 = scmp.eq.s32.totalorder %s13, 1
    %p136 = scmp.ne.s32.totalorder %s131, %s133
    %p137 = scmp.eq.s32.totalorder %s13, 0
    %p138 = por %p136, %p137
    %p139 = scmp.ne.s32.totalorder %s131, %s133
    %p140 = scmp.eq.s32.totalorder %s18, 1
    %p141 = por %p139, %p140
    %p142 = scmp.ne.s32.totalorder %s133, %s134
    %p143 = scmp.eq.s32.totalorder %s18, 0
    %p144 = por %p142, %p143
    %p145 = scmp.ne.s32.totalorder %s133, %s134
    %p146 = scmp.eq.s32.totalorder %s19, 1
    %p147 = por %p145, %p146
    %p149 = scmp.ne.s32.totalorder %s134, %s148
    %p150 = scmp.eq.s32.totalorder %s19, 0
    %p151 = por %p149, %p150
    %s153 = sadd.s32 %s152, 1
    %p156 = scmp.eq.s32.totalorder %s13, 1
    %p157 = scmp.ne.s32.totalorder %s152, %s154
    %p158 = scmp.eq.s32.totalorder %s13, 0
    %p159 = por %p157, %p158
    %p160 = scmp.ne.s32.totalorder %s152, %s154
    %p161 = scmp.eq.s32.totalorder %s18, 1
    %p162 = por %p160, %p161
    %p163 = scmp.ne.s32.totalorder %s154, %s155
    %p164 = scmp.eq.s32.totalorder %s18, 0
    %p165 = por %p163, %p164
    %p166 = scmp.ne.s32.totalorder %s154, %s155
    %p167 = scmp.eq.s32.totalorder %s19, 1
    %p168 = por %p166, %p167
    %p170 = scmp.ne.s32.totalorder %s155, %s169
    %p171 = scmp.eq.s32.totalorder %s19, 0
    %p172 = por %p170, %p171
    %s173 = ssub.s32 %s13, %s20
    %p174 = scmp.eq.s32.totalorder %s173, 0
    %s176 = sadd.s32 %s175, 1
    %s177 = scalar_select %p174, %s175, %s176
    %p180 = pneg %p174
    %p181 = scmp.eq.s32.totalorder %s13, 1
    %p182 = por %p180, %p181
    %p183 = scmp.ne.s32.totalorder %s175, %s178
    %p184 = scmp.eq.s32.totalorder %s13, 0
    %p185 = por %p183, %p184
    %p186 = scmp.ne.s32.totalorder %s175, %s178
    %p187 = scmp.eq.s32.totalorder %s18, 1
    %p188 = por %p186, %p187
    %p189 = scmp.ne.s32.totalorder %s178, %s179
    %p190 = scmp.eq.s32.totalorder %s18, 0
    %p191 = por %p189, %p190
    %p192 = scmp.ne.s32.totalorder %s178, %s179
    %p193 = scmp.eq.s32.totalorder %s19, 1
    %p194 = por %p192, %p193
    %p196 = scmp.ne.s32.totalorder %s179, %s195
    %p197 = scmp.eq.s32.totalorder %s19, 0
    %p198 = por %p196, %p197
    %p199 = scmp.le.s32.totalorder 1, %s13
    %p200 = scmp.lt.s32.totalorder %s13, 3
    %p201 = pnand %p199, %p200
    %p202 = pneg %p201
    // Predicated region
    $region9: #{gumbel_discriminator_forward.8} parent=5 // pred_check
      _
    $region10: #{gumbel_discriminator_forward.8} parent=5 // pred_check_branch
      %204 = sbr.rel (%p201) target = $region12
    $region11: #{gumbel_discriminator_forward.8} parent=5 // pred_region
      %s205 = ssub.s32 %s13, 1
      // Predicated region
      $region13: #{gumbel_discriminator_forward.8} parent=11 // pred_check
        %p206 = pneg %p60
      $region14: #{gumbel_discriminator_forward.8} parent=11 // pred_check_branch
        %208 = sbr.rel (%p206) target = $region16
      $region15: #{gumbel_discriminator_forward.8} parent=11 // pred_region
        _
      $region16: #{gumbel_discriminator_forward.8} parent=11 // pred_fallthru
        _
      // Predicated region
      $region17: #{gumbel_discriminator_forward.8} parent=11 // pred_check
        %p209 = pneg %p81
      $region18: #{gumbel_discriminator_forward.8} parent=11 // pred_check_branch
        %211 = sbr.rel (%p209) target = $region20
      $region19: #{gumbel_discriminator_forward.8} parent=11 // pred_region
        _
      $region20: #{gumbel_discriminator_forward.8} parent=11 // pred_fallthru
        _
      // Predicated region
      $region21: #{gumbel_discriminator_forward.8} parent=11 // pred_check
        %p212 = pneg %p102
      $region22: #{gumbel_discriminator_forward.8} parent=11 // pred_check_branch
        %214 = sbr.rel (%p212) target = $region24
      $region23: #{gumbel_discriminator_forward.8} parent=11 // pred_region
        _
      $region24: #{gumbel_discriminator_forward.8} parent=11 // pred_fallthru
        _
      // Predicated region
      $region25: #{gumbel_discriminator_forward.8} parent=11 // pred_check
        %p215 = pneg %p123
      $region26: #{gumbel_discriminator_forward.8} parent=11 // pred_check_branch
        %217 = sbr.rel (%p215) target = $region28
      $region27: #{gumbel_discriminator_forward.8} parent=11 // pred_region
        _
      $region28: #{gumbel_discriminator_forward.8} parent=11 // pred_fallthru
        _
      // Predicated region
      $region29: #{gumbel_discriminator_forward.8} parent=11 // pred_check
        %p218 = pneg %p144
      $region30: #{gumbel_discriminator_forward.8} parent=11 // pred_check_branch
        %220 = sbr.rel (%p218) target = $region32
      $region31: #{gumbel_discriminator_forward.8} parent=11 // pred_region
        _
      $region32: #{gumbel_discriminator_forward.8} parent=11 // pred_fallthru
        _
      // Predicated region
      $region33: #{gumbel_discriminator_forward.8} parent=11 // pred_check
        %p221 = pneg %p165
      $region34: #{gumbel_discriminator_forward.8} parent=11 // pred_check_branch
        %223 = sbr.rel (%p221) target = $region36
      $region35: #{gumbel_discriminator_forward.8} parent=11 // pred_region
        _
      $region36: #{gumbel_discriminator_forward.8} parent=11 // pred_fallthru
        _
    $region12: #{gumbel_discriminator_forward.8} parent=5 // pred_fallthru
      _
    %p224 = scmp.lt.s32.totalorder %s13, 2
    // Predicated region
    $region37: #{gumbel_discriminator_forward.8} parent=5 // pred_check
      %p225 = pneg %p224
    $region38: #{gumbel_discriminator_forward.8} parent=5 // pred_check_branch
      %227 = sbr.rel (%p225) target = $region40
    $region39: #{gumbel_discriminator_forward.8} parent=5 // pred_region
      // Predicated region
      $region41: #{gumbel_discriminator_forward.8} parent=39 // pred_check
        %p228 = pneg %p33
      $region42: #{gumbel_discriminator_forward.8} parent=39 // pred_check_branch
        %230 = sbr.rel (%p228) target = $region44
      $region43: #{gumbel_discriminator_forward.8} parent=39 // pred_region
        %p231 = scmp.lt.s32.totalorder %s13, 1
        %s232 = scalar_select %p231, %s13, 1
        %s233 = smul.addr %s232, 4
        %s234 = scalar_lea.vmem %s0, %s233
      $region44: #{gumbel_discriminator_forward.8} parent=39 // pred_fallthru
        _
    $region40: #{gumbel_discriminator_forward.8} parent=5 // pred_fallthru
      _
    %p235 = scmp.le.s32.totalorder 1, %s13
    %p236 = scmp.lt.s32.totalorder %s13, 3
    %p237 = pnand %p235, %p236
    %p238 = pneg %p237
    // Predicated region
    $region45: #{gumbel_discriminator_forward.8} parent=5 // pred_check
      _
    $region46: #{gumbel_discriminator_forward.8} parent=5 // pred_check_branch
      %240 = sbr.rel (%p237) target = $region48
    $region47: #{gumbel_discriminator_forward.8} parent=5 // pred_region
      %s241 = ssub.s32 %s13, 1
      %p242 = scmp.lt.s32.totalorder %s18, 1
      %s243 = scalar_select %p242, %s18, 1
      %s244 = smul.addr %s243, 4
      %s245 = scalar_lea.vmem %s0, %s244
      %p246 = pneg %p39
      %p247 = pneg %p36
      %p248 = pneg %p60
      %p249 = pneg %p57
      %p250 = pneg %p81
      %p251 = pneg %p78
      %p252 = pneg %p102
      %p253 = pneg %p99
      %p254 = pneg %p123
      %p255 = pneg %p120
      %p256 = pneg %p144
      %p257 = pneg %p141
      %p258 = pneg %p165
      %p259 = pneg %p162
      %p260 = pneg %p191
      %p261 = pneg %p188
      %p262 = scmp.lt.s32.totalorder %s18, 1
      %s263 = scalar_select %p262, %s18, 1
      %s264 = smul.addr %s263, 2
      %s265 = scalar_lea.vmem %s7, %s264
      %p266 = scmp.lt.s32.totalorder %s18, 1
      %s267 = scalar_select %p266, %s18, 1
      %s268 = smul.addr %s267, 4
      %s269 = scalar_lea.vmem %s0, %s268
      %p270 = scmp.lt.s32.totalorder %s18, 1
      %s271 = scalar_select %p270, %s18, 1
      %s272 = smul.addr %s271, 2
      %s273 = scalar_lea.vmem %s7, %s272
      %v274 = vld [vmem:[%s269] sm:$0xf]
      %v275 = vld [vmem:[%s1] sm:$0xff]
      %v276 = vld [vmem:[%s1 + $0x8] sm:$0xff]
      %v277 = vld [vmem:[%s1 + $0x10] sm:$0xff]
      %v278 = vld [vmem:[%s1 + $0x18] sm:$0xff]
      %v279 = vld [vmem:[%s1 + $0x20] sm:$0xff]
      %v280 = vld [vmem:[%s1 + $0x28] sm:$0xff]
      %v281 = vld [vmem:[%s1 + $0x30] sm:$0xff]
      %v282 = vld [vmem:[%s1 + $0x38] sm:$0xff]
      %vm283 = vcmask 523264
      %v285 = vsel %vm283, %v274, 0
      %287 = vmatprep.subr.mxu0 0.0
      %288 = vmatpush1.msra.mxu0 %v275
      %289 = vmatprep.subr.mxu0 0.0
      %290 = vmatpush1.msra.mxu0 %v276
      %291 = vmatprep.subr.mxu0 0.0
      %292 = vmatpush1.msra.mxu0 %v277
      %293 = vmatprep.subr.mxu0 0.0
      %294 = vmatpush1.msra.mxu0 %v278
      %295 = vmatprep.subr.mxu0 0.0
      %296 = vmatpush1.msra.mxu0 %v279
      %297 = vmatprep.subr.mxu0 0.0
      %298 = vmatpush1.msra.mxu0 %v280
      %299 = vmatprep.subr.mxu0 0.0
      %300 = vmatpush1.msra.mxu0 %v281
      %301 = vmatprep.subr.mxu0 0.0
      %302 = vmatpush1.msra.mxu0 %v282
      %303 = vmatprep.subr.mxu0 0.0
      %304 = vmatpush1.msra.mxu0 0.0
      %305 = vmatprep.subr.mxu0 0.0
      %306 = vmatpush1.msra.mxu0 0.0
      %307 = vmatprep.subr.mxu0 0.0
      %308 = vmatpush1.msra.mxu0 0.0
      %309 = vmatprep.subr.mxu0 0.0
      %310 = vmatpush1.msra.mxu0 0.0
      %311 = vmatprep.subr.mxu0 0.0
      %312 = vmatpush1.msra.mxu0 0.0
      %313 = vmatprep.subr.mxu0 0.0
      %314 = vmatpush1.msra.mxu0 0.0
      %315 = vmatprep.subr.mxu0 0.0
      %316 = vmatpush1.msra.mxu0 0.0
      %317 = vmatprep.subr.mxu0 0.0
      %318 = vmatpush1.msra.mxu0 0.0
      %319 = vmatprep.subr.mxu0 0.0
      %320 = vmatpush1.msra.mxu0 0.0
      %321 = vmatprep.subr.mxu0 0.0
      %322 = vmatpush1.msra.mxu0 0.0
      %323 = vmatprep.subr.mxu0 0.0
      %324 = vmatpush1.msra.mxu0 0.0
      %325 = vmatprep.subr.mxu0 0.0
      %326 = vmatpush1.msra.mxu0 0.0
      %327 = vmatprep.subr.mxu0 0.0
      %328 = vmatpush1.msra.mxu0 0.0
      %329 = vmatprep.subr.mxu0 0.0
      %330 = vmatpush1.msra.mxu0 0.0
      %331 = vmatprep.subr.mxu0 0.0
      %332 = vmatpush1.msra.mxu0 0.0
      %333 = vmatprep.subr.mxu0 0.0
      %334 = vmatpush1.msra.mxu0 0.0
      %335 = vmatprep.subr.mxu0 0.0
      %336 = vmatpush1.msra.mxu0 0.0
      %337 = vmatprep.subr.mxu0 0.0
      %338 = vmatpush1.msra.mxu0 0.0
      %339 = vmatprep.subr.mxu0 0.0
      %340 = vmatpush1.msra.mxu0 0.0
      %341 = vmatprep.subr.mxu0 0.0
      %342 = vmatpush1.msra.mxu0 0.0
      %343 = vmatprep.subr.mxu0 0.0
      %344 = vmatpush1.msra.mxu0 0.0
      %345 = vmatprep.subr.mxu0 0.0
      %346 = vmatpush1.msra.mxu0 0.0
      %347 = vmatprep.subr.mxu0 0.0
      %348 = vmatpush1.msra.mxu0 0.0
      %349 = vmatprep.subr.mxu0 0.0
      %350 = vmatpush1.msra.mxu0 0.0
      %351 = vmatprep.mubr.f32.mxu0 0.0
      %352 = vmatmul.mubr.f32.gmra.mrb[0].mxu0 %v285
      %v353 = vpop.f32.mrb[0].mxu0
      %v354 = vadd.f32 0.0, %v353
      %v355 = vpop.f32.mrb[0].mxu0
      %356 = vdwg.mxu0
      %s357 = scalar_lea.vmem %s1, 64
      %v358 = vld [vmem:[%s357] sm:$0xff]
      %v359 = vld [vmem:[%s357 + $0x8] sm:$0xff]
      %v360 = vld [vmem:[%s357 + $0x10] sm:$0xff]
      %v361 = vld [vmem:[%s357 + $0x18] sm:$0xff]
      %v362 = vld [vmem:[%s357 + $0x20] sm:$0xff]
      %v363 = vld [vmem:[%s357 + $0x28] sm:$0xff]
      %v364 = vld [vmem:[%s357 + $0x30] sm:$0xff]
      %v365 = vld [vmem:[%s357 + $0x38] sm:$0xff]
      %366 = vmatprep.subr.mxu0 0.0
      %367 = vmatpush1.msra.mxu0 %v358
      %368 = vmatprep.subr.mxu0 0.0
      %369 = vmatpush1.msra.mxu0 %v359
      %370 = vmatprep.subr.mxu0 0.0
      %371 = vmatpush1.msra.mxu0 %v360
      %372 = vmatprep.subr.mxu0 0.0
      %373 = vmatpush1.msra.mxu0 %v361
      %374 = vmatprep.subr.mxu0 0.0
      %375 = vmatpush1.msra.mxu0 %v362
      %376 = vmatprep.subr.mxu0 0.0
      %377 = vmatpush1.msra.mxu0 %v363
      %378 = vmatprep.subr.mxu0 0.0
      %379 = vmatpush1.msra.mxu0 %v364
      %380 = vmatprep.subr.mxu0 0.0
      %381 = vmatpush1.msra.mxu0 %v365
      %382 = vmatprep.subr.mxu0 0.0
      %383 = vmatpush1.msra.mxu0 0.0
      %384 = vmatprep.subr.mxu0 0.0
      %385 = vmatpush1.msra.mxu0 0.0
      %386 = vmatprep.subr.mxu0 0.0
      %387 = vmatpush1.msra.mxu0 0.0
      %388 = vmatprep.subr.mxu0 0.0
      %389 = vmatpush1.msra.mxu0 0.0
      %390 = vmatprep.subr.mxu0 0.0
      %391 = vmatpush1.msra.mxu0 0.0
      %392 = vmatprep.subr.mxu0 0.0
      %393 = vmatpush1.msra.mxu0 0.0
      %394 = vmatprep.subr.mxu0 0.0
      %395 = vmatpush1.msra.mxu0 0.0
      %396 = vmatprep.subr.mxu0 0.0
      %397 = vmatpush1.msra.mxu0 0.0
      %398 = vmatprep.subr.mxu0 0.0
      %399 = vmatpush1.msra.mxu0 0.0
      %400 = vmatprep.subr.mxu0 0.0
      %401 = vmatpush1.msra.mxu0 0.0
      %402 = vmatprep.subr.mxu0 0.0
      %403 = vmatpush1.msra.mxu0 0.0
      %404 = vmatprep.subr.mxu0 0.0
      %405 = vmatpush1.msra.mxu0 0.0
      %406 = vmatprep.subr.mxu0 0.0
      %407 = vmatpush1.msra.mxu0 0.0
      %408 = vmatprep.subr.mxu0 0.0
      %409 = vmatpush1.msra.mxu0 0.0
      %410 = vmatprep.subr.mxu0 0.0
      %411 = vmatpush1.msra.mxu0 0.0
      %412 = vmatprep.subr.mxu0 0.0
      %413 = vmatpush1.msra.mxu0 0.0
      %414 = vmatprep.subr.mxu0 0.0
      %415 = vmatpush1.msra.mxu0 0.0
      %416 = vmatprep.subr.mxu0 0.0
      %417 = vmatpush1.msra.mxu0 0.0
      %418 = vmatprep.subr.mxu0 0.0
      %419 = vmatpush1.msra.mxu0 0.0
      %420 = vmatprep.subr.mxu0 0.0
      %421 = vmatpush1.msra.mxu0 0.0
      %422 = vmatprep.subr.mxu0 0.0
      %423 = vmatpush1.msra.mxu0 0.0
      %424 = vmatprep.subr.mxu0 0.0
      %425 = vmatpush1.msra.mxu0 0.0
      %426 = vmatprep.subr.mxu0 0.0
      %427 = vmatpush1.msra.mxu0 0.0
      %428 = vmatprep.subr.mxu0 0.0
      %429 = vmatpush1.msra.mxu0 0.0
      %430 = vmatprep.mubr.f32.mxu0 0.0
      %431 = vmatmul.mubr.f32.gmra.mrb[0].mxu0 %v285
      %v432 = vpop.f32.mrb[0].mxu0
      %v433 = vadd.f32 0.0, %v432
      %v434 = vpop.f32.mrb[0].mxu0
      %435 = vdwg.mxu0
      %s436 = scalar_lea.vmem %s1, 128
      %v437 = vld [vmem:[%s436] sm:$0xff]
      %v438 = vld [vmem:[%s436 + $0x8] sm:$0xff]
      %v439 = vld [vmem:[%s436 + $0x10] sm:$0xff]
      %v440 = vld [vmem:[%s436 + $0x18] sm:$0xff]
      %v441 = vld [vmem:[%s436 + $0x20] sm:$0xff]
      %v442 = vld [vmem:[%s436 + $0x28] sm:$0xff]
      %v443 = vld [vmem:[%s436 + $0x30] sm:$0xff]
      %v444 = vld [vmem:[%s436 + $0x38] sm:$0xff]
      %445 = vmatprep.subr.mxu0 0.0
      %446 = vmatpush1.msra.mxu0 %v437
      %447 = vmatprep.subr.mxu0 0.0
      %448 = vmatpush1.msra.mxu0 %v438
      %449 = vmatprep.subr.mxu0 0.0
      %450 = vmatpush1.msra.mxu0 %v439
      %451 = vmatprep.subr.mxu0 0.0
      %452 = vmatpush1.msra.mxu0 %v440
      %453 = vmatprep.subr.mxu0 0.0
      %454 = vmatpush1.msra.mxu0 %v441
      %455 = vmatprep.subr.mxu0 0.0
      %456 = vmatpush1.msra.mxu0 %v442
      %457 = vmatprep.subr.mxu0 0.0
      %458 = vmatpush1.msra.mxu0 %v443
      %459 = vmatprep.subr.mxu0 0.0
      %460 = vmatpush1.msra.mxu0 %v444
      %461 = vmatprep.subr.mxu0 0.0
      %462 = vmatpush1.msra.mxu0 0.0
      %463 = vmatprep.subr.mxu0 0.0
      %464 = vmatpush1.msra.mxu0 0.0
      %465 = vmatprep.subr.mxu0 0.0
      %466 = vmatpush1.msra.mxu0 0.0
      %467 = vmatprep.subr.mxu0 0.0
      %468 = vmatpush1.msra.mxu0 0.0
      %469 = vmatprep.subr.mxu0 0.0
      %470 = vmatpush1.msra.mxu0 0.0
      %471 = vmatprep.subr.mxu0 0.0
      %472 = vmatpush1.msra.mxu0 0.0
      %473 = vmatprep.subr.mxu0 0.0
      %474 = vmatpush1.msra.mxu0 0.0
      %475 = vmatprep.subr.mxu0 0.0
      %476 = vmatpush1.msra.mxu0 0.0
      %477 = vmatprep.subr.mxu0 0.0
      %478 = vmatpush1.msra.mxu0 0.0
      %479 = vmatprep.subr.mxu0 0.0
      %480 = vmatpush1.msra.mxu0 0.0
      %481 = vmatprep.subr.mxu0 0.0
      %482 = vmatpush1.msra.mxu0 0.0
      %483 = vmatprep.subr.mxu0 0.0
      %484 = vmatpush1.msra.mxu0 0.0
      %485 = vmatprep.subr.mxu0 0.0
      %486 = vmatpush1.msra.mxu0 0.0
      %487 = vmatprep.subr.mxu0 0.0
      %488 = vmatpush1.msra.mxu0 0.0
      %489 = vmatprep.subr.mxu0 0.0
      %490 = vmatpush1.msra.mxu0 0.0
      %491 = vmatprep.subr.mxu0 0.0
      %492 = vmatpush1.msra.mxu0 0.0
      %493 = vmatprep.subr.mxu0 0.0
      %494 = vmatpush1.msra.mxu0 0.0
      %495 = vmatprep.subr.mxu0 0.0
      %496 = vmatpush1.msra.mxu0 0.0
      %497 = vmatprep.subr.mxu0 0.0
      %498 = vmatpush1.msra.mxu0 0.0
      %499 = vmatprep.subr.mxu0 0.0
      %500 = vmatpush1.msra.mxu0 0.0
      %501 = vmatprep.subr.mxu0 0.0
      %502 = vmatpush1.msra.mxu0 0.0
      %503 = vmatprep.subr.mxu0 0.0
      %504 = vmatpush1.msra.mxu0 0.0
      %505 = vmatprep.subr.mxu0 0.0
      %506 = vmatpush1.msra.mxu0 0.0
      %507 = vmatprep.subr.mxu0 0.0
      %508 = vmatpush1.msra.mxu0 0.0
      %509 = vmatprep.mubr.f32.mxu0 0.0
      %510 = vmatmul.mubr.f32.gmra.mrb[0].mxu0 %v285
      %v511 = vpop.f32.mrb[0].mxu0
      %v512 = vadd.f32 0.0, %v511
      %v513 = vpop.f32.mrb[0].mxu0
      %514 = vdwg.mxu0
      %v515 = vlaneseq
      %v516 = vshrl.u32 %v515, 7
      %vm517 = vcmp.ge.s32.totalorder %v516, 1
      %vm518 = vcmask 1047556
      %v519 = vrot.slane %v354, 4
      %v520 = vsel %vm518, %v519, %v354
      %v521 = vrot.slane %v520, 4
      %v522 = vsel %vm518, %v521, %v354
      %v524 = vrot.slane %v522, 3
      %v526 = vsel %vm517, %v524, 0.0
      %vm527 = vcmp.le.s32.totalorder %v516, 2
      %v528 = vrot.slane %v512, 4
      %v529 = vsel %vm518, %v528, %v512
      %v530 = vrot.slane %v529, 4
      %v531 = vsel %vm518, %v530, %v512
      %v533 = vrot.slane %v531, 1
      %v535 = vsel %vm527, %v533, 0.0
      %v536 = vadd.f32 %v526, %v433
      %v537 = vadd.f32 %v536, %v535
      %v538 = vld [vmem:[%s2] sm:$0x1]
      %v540 = vlaneseq
      %v541 = vshrl.u32 %v540, 7
      %v542 = vsub.s32 0, %v541
      %v543 = vrot.slane %v538, %v542
      %v545 = vadd.f32 %v537, %v543
      %vm546 = vcmp.ge.f32.partialorder %v545, 0.0
      %v547 = vmul.f32 %v545, 0.2
      %v548 = vsel %vm546, %v545, %v547
      %549 = vst [vmem:[#allocation2] sm:$0xf] %v548
      %v550 = vld [vmem:[#allocation2] ss:$2 sm:$0x3]
      %s551 = scalar_lea.vmem [#allocation2], 1
      %v552 = vld [vmem:[%s551] ss:$2 sm:$0x3]
      %v553 = vld [vmem:[%s3] sm:$0xff]
      %v554 = vld [vmem:[%s3 + $0x8] sm:$0xff]
      %v555 = vld [vmem:[%s3 + $0x10] sm:$0xff]
      %v556 = vld [vmem:[%s3 + $0x18] sm:$0xff]
      %v557 = vld [vmem:[%s3 + $0x20] sm:$0xff]
      %v558 = vld [vmem:[%s3 + $0x28] sm:$0xff]
      %v559 = vld [vmem:[%s3 + $0x30] sm:$0xff]
      %v560 = vld [vmem:[%s3 + $0x38] sm:$0xff]
      %v561 = vld [vmem:[%s3 + $0x40] sm:$0xff]
      %v562 = vld [vmem:[%s3 + $0x48] sm:$0xff]
      %v563 = vld [vmem:[%s3 + $0x50] sm:$0xff]
      %v564 = vld [vmem:[%s3 + $0x58] sm:$0xff]
      %v565 = vld [vmem:[%s3 + $0x60] sm:$0xff]
      %v566 = vld [vmem:[%s3 + $0x68] sm:$0xff]
      %v567 = vld [vmem:[%s3 + $0x70] sm:$0xff]
      %v568 = vld [vmem:[%s3 + $0x78] sm:$0xff]
      %569 = vmatprep.subr.mxu0 0.0
      %570 = vmatpush1.msra.mxu0 %v553
      %571 = vmatprep.subr.mxu0 0.0
      %572 = vmatpush1.msra.mxu0 %v554
      %573 = vmatprep.subr.mxu0 0.0
      %574 = vmatpush1.msra.mxu0 %v555
      %575 = vmatprep.subr.mxu0 0.0
      %576 = vmatpush1.msra.mxu0 %v556
      %577 = vmatprep.subr.mxu0 0.0
      %578 = vmatpush1.msra.mxu0 %v557
      %579 = vmatprep.subr.mxu0 0.0
      %580 = vmatpush1.msra.mxu0 %v558
      %581 = vmatprep.subr.mxu0 0.0
      %582 = vmatpush1.msra.mxu0 %v559
      %583 = vmatprep.subr.mxu0 0.0
      %584 = vmatpush1.msra.mxu0 %v560
      %585 = vmatprep.subr.mxu0 0.0
      %586 = vmatpush1.msra.mxu0 %v561
      %587 = vmatprep.subr.mxu0 0.0
      %588 = vmatpush1.msra.mxu0 %v562
      %589 = vmatprep.subr.mxu0 0.0
      %590 = vmatpush1.msra.mxu0 %v563
      %591 = vmatprep.subr.mxu0 0.0
      %592 = vmatpush1.msra.mxu0 %v564
      %593 = vmatprep.subr.mxu0 0.0
      %594 = vmatpush1.msra.mxu0 %v565
      %595 = vmatprep.subr.mxu0 0.0
      %596 = vmatpush1.msra.mxu0 %v566
      %597 = vmatprep.subr.mxu0 0.0
      %598 = vmatpush1.msra.mxu0 %v567
      %599 = vmatprep.subr.mxu0 0.0
      %600 = vmatpush1.msra.mxu0 %v568
      %601 = vmatprep.subr.mxu0 0.0
      %602 = vmatpush1.msra.mxu0 0.0
      %603 = vmatprep.subr.mxu0 0.0
      %604 = vmatpush1.msra.mxu0 0.0
      %605 = vmatprep.subr.mxu0 0.0
      %606 = vmatpush1.msra.mxu0 0.0
      %607 = vmatprep.subr.mxu0 0.0
      %608 = vmatpush1.msra.mxu0 0.0
      %609 = vmatprep.subr.mxu0 0.0
      %610 = vmatpush1.msra.mxu0 0.0
      %611 = vmatprep.subr.mxu0 0.0
      %612 = vmatpush1.msra.mxu0 0.0
      %613 = vmatprep.subr.mxu0 0.0
      %614 = vmatpush1.msra.mxu0 0.0
      %615 = vmatprep.subr.mxu0 0.0
      %616 = vmatpush1.msra.mxu0 0.0
      %617 = vmatprep.subr.mxu0 0.0
      %618 = vmatpush1.msra.mxu0 0.0
      %619 = vmatprep.subr.mxu0 0.0
      %620 = vmatpush1.msra.mxu0 0.0
      %621 = vmatprep.subr.mxu0 0.0
      %622 = vmatpush1.msra.mxu0 0.0
      %623 = vmatprep.subr.mxu0 0.0
      %624 = vmatpush1.msra.mxu0 0.0
      %625 = vmatprep.subr.mxu0 0.0
      %626 = vmatpush1.msra.mxu0 0.0
      %627 = vmatprep.subr.mxu0 0.0
      %628 = vmatpush1.msra.mxu0 0.0
      %629 = vmatprep.subr.mxu0 0.0
      %630 = vmatpush1.msra.mxu0 0.0
      %631 = vmatprep.subr.mxu0 0.0
      %632 = vmatpush1.msra.mxu0 0.0
      %633 = vmatprep.mubr.f32.mxu0 0.0
      %634 = vmatmul.mubr.f32.gmra.mrb[0].mxu0 %v552
      %v635 = vpop.f32.mrb[0].mxu0
      %v636 = vadd.f32 0.0, %v635
      %v637 = vpop.f32.mrb[0].mxu0
      %638 = vdwg.mxu0
      %s639 = scalar_lea.vmem %s3, 128
      %v640 = vld [vmem:[%s639] sm:$0xff]
      %v641 = vld [vmem:[%s639 + $0x8] sm:$0xff]
      %v642 = vld [vmem:[%s639 + $0x10] sm:$0xff]
      %v643 = vld [vmem:[%s639 + $0x18] sm:$0xff]
      %v644 = vld [vmem:[%s639 + $0x20] sm:$0xff]
      %v645 = vld [vmem:[%s639 + $0x28] sm:$0xff]
      %v646 = vld [vmem:[%s639 + $0x30] sm:$0xff]
      %v647 = vld [vmem:[%s639 + $0x38] sm:$0xff]
      %v648 = vld [vmem:[%s639 + $0x40] sm:$0xff]
      %v649 = vld [vmem:[%s639 + $0x48] sm:$0xff]
      %v650 = vld [vmem:[%s639 + $0x50] sm:$0xff]
      %v651 = vld [vmem:[%s639 + $0x58] sm:$0xff]
      %v652 = vld [vmem:[%s639 + $0x60] sm:$0xff]
      %v653 = vld [vmem:[%s639 + $0x68] sm:$0xff]
      %v654 = vld [vmem:[%s639 + $0x70] sm:$0xff]
      %v655 = vld [vmem:[%s639 + $0x78] sm:$0xff]
      %656 = vmatprep.subr.mxu0 0.0
      %657 = vmatpush1.msra.mxu0 %v640
      %658 = vmatprep.subr.mxu0 0.0
      %659 = vmatpush1.msra.mxu0 %v641
      %660 = vmatprep.subr.mxu0 0.0
      %661 = vmatpush1.msra.mxu0 %v642
      %662 = vmatprep.subr.mxu0 0.0
      %663 = vmatpush1.msra.mxu0 %v643
      %664 = vmatprep.subr.mxu0 0.0
      %665 = vmatpush1.msra.mxu0 %v644
      %666 = vmatprep.subr.mxu0 0.0
      %667 = vmatpush1.msra.mxu0 %v645
      %668 = vmatprep.subr.mxu0 0.0
      %669 = vmatpush1.msra.mxu0 %v646
      %670 = vmatprep.subr.mxu0 0.0
      %671 = vmatpush1.msra.mxu0 %v647
      %672 = vmatprep.subr.mxu0 0.0
      %673 = vmatpush1.msra.mxu0 %v648
      %674 = vmatprep.subr.mxu0 0.0
      %675 = vmatpush1.msra.mxu0 %v649
      %676 = vmatprep.subr.mxu0 0.0
      %677 = vmatpush1.msra.mxu0 %v650
      %678 = vmatprep.subr.mxu0 0.0
      %679 = vmatpush1.msra.mxu0 %v651
      %680 = vmatprep.subr.mxu0 0.0
      %681 = vmatpush1.msra.mxu0 %v652
      %682 = vmatprep.subr.mxu0 0.0
      %683 = vmatpush1.msra.mxu0 %v653
      %684 = vmatprep.subr.mxu0 0.0
      %685 = vmatpush1.msra.mxu0 %v654
      %686 = vmatprep.subr.mxu0 0.0
      %687 = vmatpush1.msra.mxu0 %v655
      %688 = vmatprep.subr.mxu0 0.0
      %689 = vmatpush1.msra.mxu0 0.0
      %690 = vmatprep.subr.mxu0 0.0
      %691 = vmatpush1.msra.mxu0 0.0
      %692 = vmatprep.subr.mxu0 0.0
      %693 = vmatpush1.msra.mxu0 0.0
      %694 = vmatprep.subr.mxu0 0.0
      %695 = vmatpush1.msra.mxu0 0.0
      %696 = vmatprep.subr.mxu0 0.0
      %697 = vmatpush1.msra.mxu0 0.0
      %698 = vmatprep.subr.mxu0 0.0
      %699 = vmatpush1.msra.mxu0 0.0
      %700 = vmatprep.subr.mxu0 0.0
      %701 = vmatpush1.msra.mxu0 0.0
      %702 = vmatprep.subr.mxu0 0.0
      %703 = vmatpush1.msra.mxu0 0.0
      %704 = vmatprep.subr.mxu0 0.0
      %705 = vmatpush1.msra.mxu0 0.0
      %706 = vmatprep.subr.mxu0 0.0
      %707 = vmatpush1.msra.mxu0 0.0
      %708 = vmatprep.subr.mxu0 0.0
      %709 = vmatpush1.msra.mxu0 0.0
      %710 = vmatprep.subr.mxu0 0.0
      %711 = vmatpush1.msra.mxu0 0.0
      %712 = vmatprep.subr.mxu0 0.0
      %713 = vmatpush1.msra.mxu0 0.0
      %714 = vmatprep.subr.mxu0 0.0
      %715 = vmatpush1.msra.mxu0 0.0
      %716 = vmatprep.subr.mxu0 0.0
      %717 = vmatpush1.msra.mxu0 0.0
      %718 = vmatprep.subr.mxu0 0.0
      %719 = vmatpush1.msra.mxu0 0.0
      %720 = vmatprep.mubr.f32.mxu0 0.0
      %721 = vmatmul.mubr.f32.gmra.mrb[0].mxu0 %v550
      %v722 = vpop.f32.mrb[0].mxu0
      %v723 = vadd.f32 0.0, %v722
      %v724 = vpop.f32.mrb[0].mxu0
      %725 = vdwg.mxu0
      %s726 = scalar_lea.vmem %s3, 256
      %v727 = vld [vmem:[%s726] sm:$0xff]
      %v728 = vld [vmem:[%s726 + $0x8] sm:$0xff]
      %v729 = vld [vmem:[%s726 + $0x10] sm:$0xff]
      %v730 = vld [vmem:[%s726 + $0x18] sm:$0xff]
      %v731 = vld [vmem:[%s726 + $0x20] sm:$0xff]
      %v732 = vld [vmem:[%s726 + $0x28] sm:$0xff]
      %v733 = vld [vmem:[%s726 + $0x30] sm:$0xff]
      %v734 = vld [vmem:[%s726 + $0x38] sm:$0xff]
      %v735 = vld [vmem:[%s726 + $0x40] sm:$0xff]
      %v736 = vld [vmem:[%s726 + $0x48] sm:$0xff]
      %v737 = vld [vmem:[%s726 + $0x50] sm:$0xff]
      %v738 = vld [vmem:[%s726 + $0x58] sm:$0xff]
      %v739 = vld [vmem:[%s726 + $0x60] sm:$0xff]
      %v740 = vld [vmem:[%s726 + $0x68] sm:$0xff]
      %v741 = vld [vmem:[%s726 + $0x70] sm:$0xff]
      %v742 = vld [vmem:[%s726 + $0x78] sm:$0xff]
      %743 = vmatprep.subr.mxu0 0.0
      %744 = vmatpush1.msra.mxu0 %v727
      %745 = vmatprep.subr.mxu0 0.0
      %746 = vmatpush1.msra.mxu0 %v728
      %747 = vmatprep.subr.mxu0 0.0
      %748 = vmatpush1.msra.mxu0 %v729
      %749 = vmatprep.subr.mxu0 0.0
      %750 = vmatpush1.msra.mxu0 %v730
      %751 = vmatprep.subr.mxu0 0.0
      %752 = vmatpush1.msra.mxu0 %v731
      %753 = vmatprep.subr.mxu0 0.0
      %754 = vmatpush1.msra.mxu0 %v732
      %755 = vmatprep.subr.mxu0 0.0
      %756 = vmatpush1.msra.mxu0 %v733
      %757 = vmatprep.subr.mxu0 0.0
      %758 = vmatpush1.msra.mxu0 %v734
      %759 = vmatprep.subr.mxu0 0.0
      %760 = vmatpush1.msra.mxu0 %v735
      %761 = vmatprep.subr.mxu0 0.0
      %762 = vmatpush1.msra.mxu0 %v736
      %763 = vmatprep.subr.mxu0 0.0
      %764 = vmatpush1.msra.mxu0 %v737
      %765 = vmatprep.subr.mxu0 0.0
      %766 = vmatpush1.msra.mxu0 %v738
      %767 = vmatprep.subr.mxu0 0.0
      %768 = vmatpush1.msra.mxu0 %v739
      %769 = vmatprep.subr.mxu0 0.0
      %770 = vmatpush1.msra.mxu0 %v740
      %771 = vmatprep.subr.mxu0 0.0
      %772 = vmatpush1.msra.mxu0 %v741
      %773 = vmatprep.subr.mxu0 0.0
      %774 = vmatpush1.msra.mxu0 %v742
      %775 = vmatprep.subr.mxu0 0.0
      %776 = vmatpush1.msra.mxu0 0.0
      %777 = vmatprep.subr.mxu0 0.0
      %778 = vmatpush1.msra.mxu0 0.0
      %779 = vmatprep.subr.mxu0 0.0
      %780 = vmatpush1.msra.mxu0 0.0
      %781 = vmatprep.subr.mxu0 0.0
      %782 = vmatpush1.msra.mxu0 0.0
      %783 = vmatprep.subr.mxu0 0.0
      %784 = vmatpush1.msra.mxu0 0.0
      %785 = vmatprep.subr.mxu0 0.0
      %786 = vmatpush1.msra.mxu0 0.0
      %787 = vmatprep.subr.mxu0 0.0
      %788 = vmatpush1.msra.mxu0 0.0
      %789 = vmatprep.subr.mxu0 0.0
      %790 = vmatpush1.msra.mxu0 0.0
      %791 = vmatprep.subr.mxu0 0.0
      %792 = vmatpush1.msra.mxu0 0.0
      %793 = vmatprep.subr.mxu0 0.0
      %794 = vmatpush1.msra.mxu0 0.0
      %795 = vmatprep.subr.mxu0 0.0
      %796 = vmatpush1.msra.mxu0 0.0
      %797 = vmatprep.subr.mxu0 0.0
      %798 = vmatpush1.msra.mxu0 0.0
      %799 = vmatprep.subr.mxu0 0.0
      %800 = vmatpush1.msra.mxu0 0.0
      %801 = vmatprep.subr.mxu0 0.0
      %802 = vmatpush1.msra.mxu0 0.0
      %803 = vmatprep.subr.mxu0 0.0
      %804 = vmatpush1.msra.mxu0 0.0
      %805 = vmatprep.subr.mxu0 0.0
      %806 = vmatpush1.msra.mxu0 0.0
      %807 = vmatprep.mubr.f32.mxu0 0.0
      %808 = vmatmul.mubr.f32.gmra.mrb[0].mxu0 %v552
      %v809 = vpop.f32.mrb[0].mxu0
      %v810 = vadd.f32 0.0, %v809
      %v811 = vpop.f32.mrb[0].mxu0
      %812 = vdwg.mxu0
      %vm813 = vcmask 1047554
      %v814 = vrot.slane %v636, 6
      %v815 = vsel %vm813, %v814, %v636
      %v816 = vrot.slane %v815, 6
      %v817 = vsel %vm813, %v816, %v636
      %v819 = vrot.slane %v817, 1
      %v821 = vsel %vm517, %v819, 0.0
      %v822 = vld [vmem:[%s269] ss:$2 sm:$0x3]
      %v823 = vld [vmem:[%s5] sm:$0xff]
      %v824 = vld [vmem:[%s5 + $0x8] sm:$0xff]
      %v825 = vld [vmem:[%s5 + $0x10] sm:$0xff]
      %v826 = vld [vmem:[%s5 + $0x18] sm:$0xff]
      %v827 = vld [vmem:[%s5 + $0x20] sm:$0xff]
      %v828 = vld [vmem:[%s5 + $0x28] sm:$0xff]
      %v829 = vld [vmem:[%s5 + $0x30] sm:$0xff]
      %v830 = vld [vmem:[%s5 + $0x38] sm:$0xff]
      %v831 = vld [vmem:[%s6] sm:$0x1]
      %v833 = vlaneseq
      %v834 = vshrl.u32 %v833, 7
      %v835 = vsub.s32 0, %v834
      %v836 = vrot.slane %v831, %v835
      %v839 = vsel %vm283, %v822, 0
      %841 = vmatprep.subr.mxu0 0.0
      %842 = vmatpush1.msra.mxu0 %v823
      %843 = vmatprep.subr.mxu0 0.0
      %844 = vmatpush1.msra.mxu0 %v824
      %845 = vmatprep.subr.mxu0 0.0
      %846 = vmatpush1.msra.mxu0 %v825
      %847 = vmatprep.subr.mxu0 0.0
      %848 = vmatpush1.msra.mxu0 %v826
      %849 = vmatprep.subr.mxu0 0.0
      %850 = vmatpush1.msra.mxu0 %v827
      %851 = vmatprep.subr.mxu0 0.0
      %852 = vmatpush1.msra.mxu0 %v828
      %853 = vmatprep.subr.mxu0 0.0
      %854 = vmatpush1.msra.mxu0 %v829
      %855 = vmatprep.subr.mxu0 0.0
      %856 = vmatpush1.msra.mxu0 %v830
      %857 = vmatprep.subr.mxu0 0.0
      %858 = vmatpush1.msra.mxu0 0.0
      %859 = vmatprep.subr.mxu0 0.0
      %860 = vmatpush1.msra.mxu0 0.0
      %861 = vmatprep.subr.mxu0 0.0
      %862 = vmatpush1.msra.mxu0 0.0
      %863 = vmatprep.subr.mxu0 0.0
      %864 = vmatpush1.msra.mxu0 0.0
      %865 = vmatprep.subr.mxu0 0.0
      %866 = vmatpush1.msra.mxu0 0.0
      %867 = vmatprep.subr.mxu0 0.0
      %868 = vmatpush1.msra.mxu0 0.0
      %869 = vmatprep.subr.mxu0 0.0
      %870 = vmatpush1.msra.mxu0 0.0
      %871 = vmatprep.subr.mxu0 0.0
      %872 = vmatpush1.msra.mxu0 0.0
      %873 = vmatprep.subr.mxu0 0.0
      %874 = vmatpush1.msra.mxu0 0.0
      %875 = vmatprep.subr.mxu0 0.0
      %876 = vmatpush1.msra.mxu0 0.0
      %877 = vmatprep.subr.mxu0 0.0
      %878 = vmatpush1.msra.mxu0 0.0
      %879 = vmatprep.subr.mxu0 0.0
      %880 = vmatpush1.msra.mxu0 0.0
      %881 = vmatprep.subr.mxu0 0.0
      %882 = vmatpush1.msra.mxu0 0.0
      %883 = vmatprep.subr.mxu0 0.0
      %884 = vmatpush1.msra.mxu0 0.0
      %885 = vmatprep.subr.mxu0 0.0
      %886 = vmatpush1.msra.mxu0 0.0
      %887 = vmatprep.subr.mxu0 0.0
      %888 = vmatpush1.msra.mxu0 0.0
      %889 = vmatprep.subr.mxu0 0.0
      %890 = vmatpush1.msra.mxu0 0.0
      %891 = vmatprep.subr.mxu0 0.0
      %892 = vmatpush1.msra.mxu0 0.0
      %893 = vmatprep.subr.mxu0 0.0
      %894 = vmatpush1.msra.mxu0 0.0
      %895 = vmatprep.subr.mxu0 0.0
      %896 = vmatpush1.msra.mxu0 0.0
      %897 = vmatprep.subr.mxu0 0.0
      %898 = vmatpush1.msra.mxu0 0.0
      %899 = vmatprep.subr.mxu0 0.0
      %900 = vmatpush1.msra.mxu0 0.0
      %901 = vmatprep.subr.mxu0 0.0
      %902 = vmatpush1.msra.mxu0 0.0
      %903 = vmatprep.subr.mxu0 0.0
      %904 = vmatpush1.msra.mxu0 0.0
      %905 = vmatprep.mubr.f32.mxu0 0.0
      %906 = vmatmul.mubr.f32.gmra.mrb[0].mxu0 %v839
      %v907 = vpop.f32.mrb[0].mxu0
      %v908 = vadd.f32 %v836, %v907
      %v909 = vpop.f32.mrb[0].mxu0
      %910 = vdwg.mxu0
      %v911 = vadd.f32 %v821, %v723
      %v912 = vadd.f32 %v911, %v810
      %v913 = vld [vmem:[%s4] sm:$0x1]
      %v915 = vlaneseq
      %v916 = vshrl.u32 %v915, 7
      %v917 = vsub.s32 0, %v916
      %v918 = vrot.slane %v913, %v917
      %v920 = vadd.f32 %v912, %v918
      %v921 = vadd.f32 %v920, %v908
      %vm922 = vcmp.ge.f32.partialorder %v921, 0.0
      %v923 = vmul.f32 %v921, 0.2
      %v924 = vsel %vm922, %v921, %v923
      %925 = vst [vmem:[%s273] sm:$0x3] %v924
      %p926 = scmp.lt.s32.totalorder %s18, 1
      %s927 = scalar_select %p926, %s18, 1
      %s928 = smul.addr %s927, 2
      %s929 = scalar_lea.vmem %s7, %s928
      // Predicated region
      $region49: #{gumbel_discriminator_forward.8} parent=47 // pred_check
        %p930 = pneg %p188
      $region50: #{gumbel_discriminator_forward.8} parent=47 // pred_check_branch
        %932 = sbr.rel (%p930) target = $region52
      $region51: #{gumbel_discriminator_forward.8} parent=47 // pred_region
        _
      $region52: #{gumbel_discriminator_forward.8} parent=47 // pred_fallthru
        _
    $region48: #{gumbel_discriminator_forward.8} parent=5 // pred_fallthru
      _
    %p933 = scmp.le.s32.totalorder 2, %s13
    // Predicated region
    $region53: #{gumbel_discriminator_forward.8} parent=5 // pred_check
      %p934 = pneg %p933
    $region54: #{gumbel_discriminator_forward.8} parent=5 // pred_check_branch
      %936 = sbr.rel (%p934) target = $region56
    $region55: #{gumbel_discriminator_forward.8} parent=5 // pred_region
      %s937 = ssub.s32 %s13, 2
      // Predicated region
      $region57: #{gumbel_discriminator_forward.8} parent=55 // pred_check
        %p938 = pneg %p194
      $region58: #{gumbel_discriminator_forward.8} parent=55 // pred_check_branch
        %940 = sbr.rel (%p938) target = $region60
      $region59: #{gumbel_discriminator_forward.8} parent=55 // pred_region
        %p941 = scmp.lt.s32.totalorder %s19, 1
        %s942 = scalar_select %p941, %s19, 1
        %s943 = smul.addr %s942, 2
        %s944 = scalar_lea.vmem %s7, %s943
      $region60: #{gumbel_discriminator_forward.8} parent=55 // pred_fallthru
        _
    $region56: #{gumbel_discriminator_forward.8} parent=5 // pred_fallthru
      _
  $region6: #{gumbel_discriminator_forward.8} parent=0 // loop_footer
    %s17 = sadd.s32 1, %s13
  $region7: #{gumbel_discriminator_forward.8} parent=0 // loop_footer_branch
    %12 = sbr.rel target = $region3
  $region8: #{gumbel_discriminator_forward.8} parent=0 // loop_exit
    _

// kernel: gumbel_discriminator_forward.7
$region0: #{gumbel_discriminator_forward.7}
  #allocation0 [shape = 'u32[]', space=smem, size = 0x4, offset = 0x4, fixed_abs, tag = 'smem constant byte address 0x4 - core index']
  #allocation1 [shape = 'u32[144,128]{1,0:T(1,128)}', space=vmem, size = 0x12000, scoped, tag = 'internal scratch']
  #allocation2 [shape = 'f32[8,64]{1,0:T(8,128)}', space=vmem, size = 0x1000, scoped, tag = 'scratch operand']
  %s0 = inlined_call_operand.vmem [shape: f32[2,8,32], index: 0, kind: input, shape index: {}]
  %s1 = inlined_call_operand.vmem [shape: f32[3,32,64], index: 1, kind: input, shape index: {}]
  %s2 = inlined_call_operand.vmem [shape: f32[1,64], index: 2, kind: input, shape index: {}]
  %s3 = inlined_call_operand.vmem [shape: f32[3,64,64], index: 3, kind: input, shape index: {}]
  %s4 = inlined_call_operand.vmem [shape: f32[1,64], index: 4, kind: input, shape index: {}]
  %s5 = inlined_call_operand.vmem [shape: f32[32,64], index: 5, kind: input, shape index: {}]
  %s6 = inlined_call_operand.vmem [shape: f32[1,64], index: 6, kind: input, shape index: {}]
  %s7 = inlined_call_operand.vmem [shape: f32[2,4,64], index: 7, kind: output, shape index: {}]
  %s8 = sld [smem:[#allocation0]]
  $region61: #{gumbel_discriminator_forward.7} parent=0
    _
  %s10 = ssub.s32 1, %s8
  %s11 = scalar_select 0, %s10, %s8
  loop: start=0, step=1, limit=4
  $region2: #{gumbel_discriminator_forward.7} parent=0 // loop_pre_header
    _
  $region3: #{gumbel_discriminator_forward.7} parent=0 // loop_header
    %s13 = sphi 0, %s17
    %p14 = scmp.ge.s32.totalorder %s13, 4
    %s23 = sphi 0, %s25
    %s26 = sphi 0, %s23
    %s27 = sphi 0, %s26
    %s43 = sphi 0, %s27
    %s47 = sphi 0, %s47
    %s49 = sphi 0, %s47
    %s50 = sphi 0, %s49
    %s64 = sphi 0, %s50
    %s68 = sphi 0, %s68
    %s70 = sphi 0, %s68
    %s71 = sphi 0, %s70
    %s85 = sphi 0, %s71
    %s89 = sphi 0, %s89
    %s91 = sphi 0, %s89
    %s92 = sphi 0, %s91
    %s106 = sphi 0, %s92
    %s110 = sphi 0, %s110
    %s112 = sphi 0, %s110
    %s113 = sphi 0, %s112
    %s127 = sphi 0, %s113
    %s131 = sphi 0, %s131
    %s133 = sphi 0, %s131
    %s134 = sphi 0, %s133
    %s148 = sphi 0, %s134
    %s152 = sphi 0, %s152
    %s154 = sphi 0, %s152
    %s155 = sphi 0, %s154
    %s169 = sphi 0, %s155
    %s175 = sphi 0, %s177
    %s178 = sphi 0, %s175
    %s179 = sphi 0, %s178
    %s195 = sphi 0, %s179
  $region4: #{gumbel_discriminator_forward.7} parent=0 // loop_header_branch
    %16 = sbr.rel (%p14) target = $region8
  $region5: #{gumbel_discriminator_forward.7} parent=0 // loop_body
    %s18 = ssub.s32 %s13, 1
    %s19 = ssub.s32 %s13, 2
    %s20 = sadd.s32 %s13, 1
    %s21 = ssub.s32 %s13, %s20
    %p22 = scmp.eq.s32.totalorder %s21, 0
    %s24 = sadd.s32 %s23, 1
    %s25 = scalar_select %p22, %s23, %s24
    %p28 = pneg %p22
    %p29 = scmp.eq.s32.totalorder %s13, 1
    %p30 = por %p28, %p29
    %p31 = scmp.ne.s32.totalorder %s23, %s26
    %p32 = scmp.eq.s32.totalorder %s13, 0
    %p33 = por %p31, %p32
    %p34 = scmp.ne.s32.totalorder %s23, %s26
    %p35 = scmp.eq.s32.totalorder %s18, 1
    %p36 = por %p34, %p35
    %p37 = scmp.ne.s32.totalorder %s26, %s27
    %p38 = scmp.eq.s32.totalorder %s18, 0
    %p39 = por %p37, %p38
    %p40 = scmp.ne.s32.totalorder %s26, %s27
    %p41 = scmp.eq.s32.totalorder %s19, 1
    %p42 = por %p40, %p41
    %p44 = scmp.ne.s32.totalorder %s27, %s43
    %p45 = scmp.eq.s32.totalorder %s19, 0
    %p46 = por %p44, %p45
    %s48 = sadd.s32 %s47, 1
    %p51 = scmp.eq.s32.totalorder %s13, 1
    %p52 = scmp.ne.s32.totalorder %s47, %s49
    %p53 = scmp.eq.s32.totalorder %s13, 0
    %p54 = por %p52, %p53
    %p55 = scmp.ne.s32.totalorder %s47, %s49
    %p56 = scmp.eq.s32.totalorder %s18, 1
    %p57 = por %p55, %p56
    %p58 = scmp.ne.s32.totalorder %s49, %s50
    %p59 = scmp.eq.s32.totalorder %s18, 0
    %p60 = por %p58, %p59
    %p61 = scmp.ne.s32.totalorder %s49, %s50
    %p62 = scmp.eq.s32.totalorder %s19, 1
    %p63 = por %p61, %p62
    %p65 = scmp.ne.s32.totalorder %s50, %s64
    %p66 = scmp.eq.s32.totalorder %s19, 0
    %p67 = por %p65, %p66
    %s69 = sadd.s32 %s68, 1
    %p72 = scmp.eq.s32.totalorder %s13, 1
    %p73 = scmp.ne.s32.totalorder %s68, %s70
    %p74 = scmp.eq.s32.totalorder %s13, 0
    %p75 = por %p73, %p74
    %p76 = scmp.ne.s32.totalorder %s68, %s70
    %p77 = scmp.eq.s32.totalorder %s18, 1
    %p78 = por %p76, %p77
    %p79 = scmp.ne.s32.totalorder %s70, %s71
    %p80 = scmp.eq.s32.totalorder %s18, 0
    %p81 = por %p79, %p80
    %p82 = scmp.ne.s32.totalorder %s70, %s71
    %p83 = scmp.eq.s32.totalorder %s19, 1
    %p84 = por %p82, %p83
    %p86 = scmp.ne.s32.totalorder %s71, %s85
    %p87 = scmp.eq.s32.totalorder %s19, 0
    %p88 = por %p86, %p87
    %s90 = sadd.s32 %s89, 1
    %p93 = scmp.eq.s32.totalorder %s13, 1
    %p94 = scmp.ne.s32.totalorder %s89, %s91
    %p95 = scmp.eq.s32.totalorder %s13, 0
    %p96 = por %p94, %p95
    %p97 = scmp.ne.s32.totalorder %s89, %s91
    %p98 = scmp.eq.s32.totalorder %s18, 1
    %p99 = por %p97, %p98
    %p100 = scmp.ne.s32.totalorder %s91, %s92
    %p101 = scmp.eq.s32.totalorder %s18, 0
    %p102 = por %p100, %p101
    %p103 = scmp.ne.s32.totalorder %s91, %s92
    %p104 = scmp.eq.s32.totalorder %s19, 1
    %p105 = por %p103, %p104
    %p107 = scmp.ne.s32.totalorder %s92, %s106
    %p108 = scmp.eq.s32.totalorder %s19, 0
    %p109 = por %p107, %p108
    %s111 = sadd.s32 %s110, 1
    %p114 = scmp.eq.s32.totalorder %s13, 1
    %p115 = scmp.ne.s32.totalorder %s110, %s112
    %p116 = scmp.eq.s32.totalorder %s13, 0
    %p117 = por %p115, %p116
    %p118 = scmp.ne.s32.totalorder %s110, %s112
    %p119 = scmp.eq.s32.totalorder %s18, 1
    %p120 = por %p118, %p119
    %p121 = scmp.ne.s32.totalorder %s112, %s113
    %p122 = scmp.eq.s32.totalorder %s18, 0
    %p123 = por %p121, %p122
    %p124 = scmp.ne.s32.totalorder %s112, %s113
    %p125 = scmp.eq.s32.totalorder %s19, 1
    %p126 = por %p124, %p125
    %p128 = scmp.ne.s32.totalorder %s113, %s127
    %p129 = scmp.eq.s32.totalorder %s19, 0
    %p130 = por %p128, %p129
    %s132 = sadd.s32 %s131, 1
    %p135 = scmp.eq.s32.totalorder %s13, 1
    %p136 = scmp.ne.s32.totalorder %s131, %s133
    %p137 = scmp.eq.s32.totalorder %s13, 0
    %p138 = por %p136, %p137
    %p139 = scmp.ne.s32.totalorder %s131, %s133
    %p140 = scmp.eq.s32.totalorder %s18, 1
    %p141 = por %p139, %p140
    %p142 = scmp.ne.s32.totalorder %s133, %s134
    %p143 = scmp.eq.s32.totalorder %s18, 0
    %p144 = por %p142, %p143
    %p145 = scmp.ne.s32.totalorder %s133, %s134
    %p146 = scmp.eq.s32.totalorder %s19, 1
    %p147 = por %p145, %p146
    %p149 = scmp.ne.s32.totalorder %s134, %s148
    %p150 = scmp.eq.s32.totalorder %s19, 0
    %p151 = por %p149, %p150
    %s153 = sadd.s32 %s152, 1
    %p156 = scmp.eq.s32.totalorder %s13, 1
    %p157 = scmp.ne.s32.totalorder %s152, %s154
    %p158 = scmp.eq.s32.totalorder %s13, 0
    %p159 = por %p157, %p158
    %p160 = scmp.ne.s32.totalorder %s152, %s154
    %p161 = scmp.eq.s32.totalorder %s18, 1
    %p162 = por %p160, %p161
    %p163 = scmp.ne.s32.totalorder %s154, %s155
    %p164 = scmp.eq.s32.totalorder %s18, 0
    %p165 = por %p163, %p164
    %p166 = scmp.ne.s32.totalorder %s154, %s155
    %p167 = scmp.eq.s32.totalorder %s19, 1
    %p168 = por %p166, %p167
    %p170 = scmp.ne.s32.totalorder %s155, %s169
    %p171 = scmp.eq.s32.totalorder %s19, 0
    %p172 = por %p170, %p171
    %s173 = ssub.s32 %s13, %s20
    %p174 = scmp.eq.s32.totalorder %s173, 0
    %s176 = sadd.s32 %s175, 1
    %s177 = scalar_select %p174, %s175, %s176
    %p180 = pneg %p174
    %p181 = scmp.eq.s32.totalorder %s13, 1
    %p182 = por %p180, %p181
    %p183 = scmp.ne.s32.totalorder %s175, %s178
    %p184 = scmp.eq.s32.totalorder %s13, 0
    %p185 = por %p183, %p184
    %p186 = scmp.ne.s32.totalorder %s175, %s178
    %p187 = scmp.eq.s32.totalorder %s18, 1
    %p188 = por %p186, %p187
    %p189 = scmp.ne.s32.totalorder %s178, %s179
    %p190 = scmp.eq.s32.totalorder %s18, 0
    %p191 = por %p189, %p190
    %p192 = scmp.ne.s32.totalorder %s178, %s179
    %p193 = scmp.eq.s32.totalorder %s19, 1
    %p194 = por %p192, %p193
    %p196 = scmp.ne.s32.totalorder %s179, %s195
    %p197 = scmp.eq.s32.totalorder %s19, 0
    %p198 = por %p196, %p197
    %p199 = scmp.le.s32.totalorder 1, %s13
    %p200 = scmp.lt.s32.totalorder %s13, 3
    %p201 = pnand %p199, %p200
    %p202 = pneg %p201
    // Predicated region
    $region9: #{gumbel_discriminator_forward.7} parent=5 // pred_check
      _
    $region10: #{gumbel_discriminator_forward.7} parent=5 // pred_check_branch
      %204 = sbr.rel (%p201) target = $region12
    $region11: #{gumbel_discriminator_forward.7} parent=5 // pred_region
      %s205 = ssub.s32 %s13, 1
      // Predicated region
      $region13: #{gumbel_discriminator_forward.7} parent=11 // pred_check
        %p206 = pneg %p60
      $region14: #{gumbel_discriminator_forward.7} parent=11 // pred_check_branch
        %208 = sbr.rel (%p206) target = $region16
      $region15: #{gumbel_discriminator_forward.7} parent=11 // pred_region
        _
      $region16: #{gumbel_discriminator_forward.7} parent=11 // pred_fallthru
        _
      // Predicated region
      $region17: #{gumbel_discriminator_forward.7} parent=11 // pred_check
        %p209 = pneg %p81
      $region18: #{gumbel_discriminator_forward.7} parent=11 // pred_check_branch
        %211 = sbr.rel (%p209) target = $region20
      $region19: #{gumbel_discriminator_forward.7} parent=11 // pred_region
        _
      $region20: #{gumbel_discriminator_forward.7} parent=11 // pred_fallthru
        _
      // Predicated region
      $region21: #{gumbel_discriminator_forward.7} parent=11 // pred_check
        %p212 = pneg %p102
      $region22: #{gumbel_discriminator_forward.7} parent=11 // pred_check_branch
        %214 = sbr.rel (%p212) target = $region24
      $region23: #{gumbel_discriminator_forward.7} parent=11 // pred_region
        _
      $region24: #{gumbel_discriminator_forward.7} parent=11 // pred_fallthru
        _
      // Predicated region
      $region25: #{gumbel_discriminator_forward.7} parent=11 // pred_check
        %p215 = pneg %p123
      $region26: #{gumbel_discriminator_forward.7} parent=11 // pred_check_branch
        %217 = sbr.rel (%p215) target = $region28
      $region27: #{gumbel_discriminator_forward.7} parent=11 // pred_region
        _
      $region28: #{gumbel_discriminator_forward.7} parent=11 // pred_fallthru
        _
      // Predicated region
      $region29: #{gumbel_discriminator_forward.7} parent=11 // pred_check
        %p218 = pneg %p144
      $region30: #{gumbel_discriminator_forward.7} parent=11 // pred_check_branch
        %220 = sbr.rel (%p218) target = $region32
      $region31: #{gumbel_discriminator_forward.7} parent=11 // pred_region
        _
      $region32: #{gumbel_discriminator_forward.7} parent=11 // pred_fallthru
        _
      // Predicated region
      $region33: #{gumbel_discriminator_forward.7} parent=11 // pred_check
        %p221 = pneg %p165
      $region34: #{gumbel_discriminator_forward.7} parent=11 // pred_check_branch
        %223 = sbr.rel (%p221) target = $region36
      $region35: #{gumbel_discriminator_forward.7} parent=11 // pred_region
        _
      $region36: #{gumbel_discriminator_forward.7} parent=11 // pred_fallthru
        _
    $region12: #{gumbel_discriminator_forward.7} parent=5 // pred_fallthru
      _
    %p224 = scmp.lt.s32.totalorder %s13, 2
    // Predicated region
    $region37: #{gumbel_discriminator_forward.7} parent=5 // pred_check
      %p225 = pneg %p224
    $region38: #{gumbel_discriminator_forward.7} parent=5 // pred_check_branch
      %227 = sbr.rel (%p225) target = $region40
    $region39: #{gumbel_discriminator_forward.7} parent=5 // pred_region
      // Predicated region
      $region41: #{gumbel_discriminator_forward.7} parent=39 // pred_check
        %p228 = pneg %p33
      $region42: #{gumbel_discriminator_forward.7} parent=39 // pred_check_branch
        %230 = sbr.rel (%p228) target = $region44
      $region43: #{gumbel_discriminator_forward.7} parent=39 // pred_region
        %p231 = scmp.lt.s32.totalorder %s13, 1
        %s232 = scalar_select %p231, %s13, 1
        %s233 = smul.addr %s232, 8
        %s234 = scalar_lea.vmem %s0, %s233
      $region44: #{gumbel_discriminator_forward.7} parent=39 // pred_fallthru
        _
    $region40: #{gumbel_discriminator_forward.7} parent=5 // pred_fallthru
      _
    %p235 = scmp.le.s32.totalorder 1, %s13
    %p236 = scmp.lt.s32.totalorder %s13, 3
    %p237 = pnand %p235, %p236
    %p238 = pneg %p237
    // Predicated region
    $region45: #{gumbel_discriminator_forward.7} parent=5 // pred_check
      _
    $region46: #{gumbel_discriminator_forward.7} parent=5 // pred_check_branch
      %240 = sbr.rel (%p237) target = $region48
    $region47: #{gumbel_discriminator_forward.7} parent=5 // pred_region
      %s241 = ssub.s32 %s13, 1
      %p242 = scmp.lt.s32.totalorder %s18, 1
      %s243 = scalar_select %p242, %s18, 1
      %s244 = smul.addr %s243, 8
      %s245 = scalar_lea.vmem %s0, %s244
      %p246 = pneg %p39
      %p247 = pneg %p36
      %p248 = pneg %p60
      %p249 = pneg %p57
      %p250 = pneg %p81
      %p251 = pneg %p78
      %p252 = pneg %p102
      %p253 = pneg %p99
      %p254 = pneg %p123
      %p255 = pneg %p120
      %p256 = pneg %p144
      %p257 = pneg %p141
      %p258 = pneg %p165
      %p259 = pneg %p162
      %p260 = pneg %p191
      %p261 = pneg %p188
      %p262 = scmp.lt.s32.totalorder %s18, 1
      %s263 = scalar_select %p262, %s18, 1
      %s264 = smul.addr %s263, 4
      %s265 = scalar_lea.vmem %s7, %s264
      %p266 = scmp.lt.s32.totalorder %s18, 1
      %s267 = scalar_select %p266, %s18, 1
      %s268 = smul.addr %s267, 8
      %s269 = scalar_lea.vmem %s0, %s268
      %p270 = scmp.lt.s32.totalorder %s18, 1
      %s271 = scalar_select %p270, %s18, 1
      %s272 = smul.addr %s271, 4
      %s273 = scalar_lea.vmem %s7, %s272
      %v274 = vld [vmem:[%s269] sm:$0xff]
      %v275 = vld [vmem:[%s1] sm:$0xff]
      %v276 = vld [vmem:[%s1 + $0x8] sm:$0xff]
      %v277 = vld [vmem:[%s1 + $0x10] sm:$0xff]
      %v278 = vld [vmem:[%s1 + $0x18] sm:$0xff]
      %vm279 = vcmask 261120
      %v281 = vsel %vm279, %v274, 0
      %283 = vmatprep.subr.mxu0 0.0
      %284 = vmatpush1.msra.mxu0 %v275
      %285 = vmatprep.subr.mxu0 0.0
      %286 = vmatpush1.msra.mxu0 %v276
      %287 = vmatprep.subr.mxu0 0.0
      %288 = vmatpush1.msra.mxu0 %v277
      %289 = vmatprep.subr.mxu0 0.0
      %290 = vmatpush1.msra.mxu0 %v278
      %291 = vmatprep.subr.mxu0 0.0
      %292 = vmatpush1.msra.mxu0 0.0
      %293 = vmatprep.subr.mxu0 0.0
      %294 = vmatpush1.msra.mxu0 0.0
      %295 = vmatprep.subr.mxu0 0.0
      %296 = vmatpush1.msra.mxu0 0.0
      %297 = vmatprep.subr.mxu0 0.0
      %298 = vmatpush1.msra.mxu0 0.0
      %299 = vmatprep.subr.mxu0 0.0
      %300 = vmatpush1.msra.mxu0 0.0
      %301 = vmatprep.subr.mxu0 0.0
      %302 = vmatpush1.msra.mxu0 0.0
      %303 = vmatprep.subr.mxu0 0.0
      %304 = vmatpush1.msra.mxu0 0.0
      %305 = vmatprep.subr.mxu0 0.0
      %306 = vmatpush1.msra.mxu0 0.0
      %307 = vmatprep.subr.mxu0 0.0
      %308 = vmatpush1.msra.mxu0 0.0
      %309 = vmatprep.subr.mxu0 0.0
      %310 = vmatpush1.msra.mxu0 0.0
      %311 = vmatprep.subr.mxu0 0.0
      %312 = vmatpush1.msra.mxu0 0.0
      %313 = vmatprep.subr.mxu0 0.0
      %314 = vmatpush1.msra.mxu0 0.0
      %315 = vmatprep.subr.mxu0 0.0
      %316 = vmatpush1.msra.mxu0 0.0
      %317 = vmatprep.subr.mxu0 0.0
      %318 = vmatpush1.msra.mxu0 0.0
      %319 = vmatprep.subr.mxu0 0.0
      %320 = vmatpush1.msra.mxu0 0.0
      %321 = vmatprep.subr.mxu0 0.0
      %322 = vmatpush1.msra.mxu0 0.0
      %323 = vmatprep.subr.mxu0 0.0
      %324 = vmatpush1.msra.mxu0 0.0
      %325 = vmatprep.subr.mxu0 0.0
      %326 = vmatpush1.msra.mxu0 0.0
      %327 = vmatprep.subr.mxu0 0.0
      %328 = vmatpush1.msra.mxu0 0.0
      %329 = vmatprep.subr.mxu0 0.0
      %330 = vmatpush1.msra.mxu0 0.0
      %331 = vmatprep.subr.mxu0 0.0
      %332 = vmatpush1.msra.mxu0 0.0
      %333 = vmatprep.subr.mxu0 0.0
      %334 = vmatpush1.msra.mxu0 0.0
      %335 = vmatprep.subr.mxu0 0.0
      %336 = vmatpush1.msra.mxu0 0.0
      %337 = vmatprep.subr.mxu0 0.0
      %338 = vmatpush1.msra.mxu0 0.0
      %339 = vmatprep.subr.mxu0 0.0
      %340 = vmatpush1.msra.mxu0 0.0
      %341 = vmatprep.subr.mxu0 0.0
      %342 = vmatpush1.msra.mxu0 0.0
      %343 = vmatprep.subr.mxu0 0.0
      %344 = vmatpush1.msra.mxu0 0.0
      %345 = vmatprep.subr.mxu0 0.0
      %346 = vmatpush1.msra.mxu0 0.0
      %347 = vmatprep.mubr.f32.mxu0 0.0
      %348 = vmatmul.mubr.f32.gmra.mrb[0].mxu0 %v281
      %v349 = vpop.f32.mrb[0].mxu0
      %v350 = vadd.f32 0.0, %v349
      %v351 = vpop.f32.mrb[0].mxu0
      %352 = vdwg.mxu0
      %s353 = scalar_lea.vmem %s1, 32
      %v354 = vld [vmem:[%s353] sm:$0xff]
      %v355 = vld [vmem:[%s353 + $0x8] sm:$0xff]
      %v356 = vld [vmem:[%s353 + $0x10] sm:$0xff]
      %v357 = vld [vmem:[%s353 + $0x18] sm:$0xff]
      %358 = vmatprep.subr.mxu0 0.0
      %359 = vmatpush1.msra.mxu0 %v354
      %360 = vmatprep.subr.mxu0 0.0
      %361 = vmatpush1.msra.mxu0 %v355
      %362 = vmatprep.subr.mxu0 0.0
      %363 = vmatpush1.msra.mxu0 %v356
      %364 = vmatprep.subr.mxu0 0.0
      %365 = vmatpush1.msra.mxu0 %v357
      %366 = vmatprep.subr.mxu0 0.0
      %367 = vmatpush1.msra.mxu0 0.0
      %368 = vmatprep.subr.mxu0 0.0
      %369 = vmatpush1.msra.mxu0 0.0
      %370 = vmatprep.subr.mxu0 0.0
      %371 = vmatpush1.msra.mxu0 0.0
      %372 = vmatprep.subr.mxu0 0.0
      %373 = vmatpush1.msra.mxu0 0.0
      %374 = vmatprep.subr.mxu0 0.0
      %375 = vmatpush1.msra.mxu0 0.0
      %376 = vmatprep.subr.mxu0 0.0
      %377 = vmatpush1.msra.mxu0 0.0
      %378 = vmatprep.subr.mxu0 0.0
      %379 = vmatpush1.msra.mxu0 0.0
      %380 = vmatprep.subr.mxu0 0.0
      %381 = vmatpush1.msra.mxu0 0.0
      %382 = vmatprep.subr.mxu0 0.0
      %383 = vmatpush1.msra.mxu0 0.0
      %384 = vmatprep.subr.mxu0 0.0
      %385 = vmatpush1.msra.mxu0 0.0
      %386 = vmatprep.subr.mxu0 0.0
      %387 = vmatpush1.msra.mxu0 0.0
      %388 = vmatprep.subr.mxu0 0.0
      %389 = vmatpush1.msra.mxu0 0.0
      %390 = vmatprep.subr.mxu0 0.0
      %391 = vmatpush1.msra.mxu0 0.0
      %392 = vmatprep.subr.mxu0 0.0
      %393 = vmatpush1.msra.mxu0 0.0
      %394 = vmatprep.subr.mxu0 0.0
      %395 = vmatpush1.msra.mxu0 0.0
      %396 = vmatprep.subr.mxu0 0.0
      %397 = vmatpush1.msra.mxu0 0.0
      %398 = vmatprep.subr.mxu0 0.0
      %399 = vmatpush1.msra.mxu0 0.0
      %400 = vmatprep.subr.mxu0 0.0
      %401 = vmatpush1.msra.mxu0 0.0
      %402 = vmatprep.subr.mxu0 0.0
      %403 = vmatpush1.msra.mxu0 0.0
      %404 = vmatprep.subr.mxu0 0.0
      %405 = vmatpush1.msra.mxu0 0.0
      %406 = vmatprep.subr.mxu0 0.0
      %407 = vmatpush1.msra.mxu0 0.0
      %408 = vmatprep.subr.mxu0 0.0
      %409 = vmatpush1.msra.mxu0 0.0
      %410 = vmatprep.subr.mxu0 0.0
      %411 = vmatpush1.msra.mxu0 0.0
      %412 = vmatprep.subr.mxu0 0.0
      %413 = vmatpush1.msra.mxu0 0.0
      %414 = vmatprep.subr.mxu0 0.0
      %415 = vmatpush1.msra.mxu0 0.0
      %416 = vmatprep.subr.mxu0 0.0
      %417 = vmatpush1.msra.mxu0 0.0
      %418 = vmatprep.subr.mxu0 0.0
      %419 = vmatpush1.msra.mxu0 0.0
      %420 = vmatprep.subr.mxu0 0.0
      %421 = vmatpush1.msra.mxu0 0.0
      %422 = vmatprep.mubr.f32.mxu0 0.0
      %423 = vmatmul.mubr.f32.gmra.mrb[0].mxu0 %v281
      %v424 = vpop.f32.mrb[0].mxu0
      %v425 = vadd.f32 0.0, %v424
      %v426 = vpop.f32.mrb[0].mxu0
      %427 = vdwg.mxu0
      %s428 = scalar_lea.vmem %s1, 64
      %v429 = vld [vmem:[%s428] sm:$0xff]
      %v430 = vld [vmem:[%s428 + $0x8] sm:$0xff]
      %v431 = vld [vmem:[%s428 + $0x10] sm:$0xff]
      %v432 = vld [vmem:[%s428 + $0x18] sm:$0xff]
      %433 = vmatprep.subr.mxu0 0.0
      %434 = vmatpush1.msra.mxu0 %v429
      %435 = vmatprep.subr.mxu0 0.0
      %436 = vmatpush1.msra.mxu0 %v430
      %437 = vmatprep.subr.mxu0 0.0
      %438 = vmatpush1.msra.mxu0 %v431
      %439 = vmatprep.subr.mxu0 0.0
      %440 = vmatpush1.msra.mxu0 %v432
      %441 = vmatprep.subr.mxu0 0.0
      %442 = vmatpush1.msra.mxu0 0.0
      %443 = vmatprep.subr.mxu0 0.0
      %444 = vmatpush1.msra.mxu0 0.0
      %445 = vmatprep.subr.mxu0 0.0
      %446 = vmatpush1.msra.mxu0 0.0
      %447 = vmatprep.subr.mxu0 0.0
      %448 = vmatpush1.msra.mxu0 0.0
      %449 = vmatprep.subr.mxu0 0.0
      %450 = vmatpush1.msra.mxu0 0.0
      %451 = vmatprep.subr.mxu0 0.0
      %452 = vmatpush1.msra.mxu0 0.0
      %453 = vmatprep.subr.mxu0 0.0
      %454 = vmatpush1.msra.mxu0 0.0
      %455 = vmatprep.subr.mxu0 0.0
      %456 = vmatpush1.msra.mxu0 0.0
      %457 = vmatprep.subr.mxu0 0.0
      %458 = vmatpush1.msra.mxu0 0.0
      %459 = vmatprep.subr.mxu0 0.0
      %460 = vmatpush1.msra.mxu0 0.0
      %461 = vmatprep.subr.mxu0 0.0
      %462 = vmatpush1.msra.mxu0 0.0
      %463 = vmatprep.subr.mxu0 0.0
      %464 = vmatpush1.msra.mxu0 0.0
      %465 = vmatprep.subr.mxu0 0.0
      %466 = vmatpush1.msra.mxu0 0.0
      %467 = vmatprep.subr.mxu0 0.0
      %468 = vmatpush1.msra.mxu0 0.0
      %469 = vmatprep.subr.mxu0 0.0
      %470 = vmatpush1.msra.mxu0 0.0
      %471 = vmatprep.subr.mxu0 0.0
      %472 = vmatpush1.msra.mxu0 0.0
      %473 = vmatprep.subr.mxu0 0.0
      %474 = vmatpush1.msra.mxu0 0.0
      %475 = vmatprep.subr.mxu0 0.0
      %476 = vmatpush1.msra.mxu0 0.0
      %477 = vmatprep.subr.mxu0 0.0
      %478 = vmatpush1.msra.mxu0 0.0
      %479 = vmatprep.subr.mxu0 0.0
      %480 = vmatpush1.msra.mxu0 0.0
      %481 = vmatprep.subr.mxu0 0.0
      %482 = vmatpush1.msra.mxu0 0.0
      %483 = vmatprep.subr.mxu0 0.0
      %484 = vmatpush1.msra.mxu0 0.0
      %485 = vmatprep.subr.mxu0 0.0
      %486 = vmatpush1.msra.mxu0 0.0
      %487 = vmatprep.subr.mxu0 0.0
      %488 = vmatpush1.msra.mxu0 0.0
      %489 = vmatprep.subr.mxu0 0.0
      %490 = vmatpush1.msra.mxu0 0.0
      %491 = vmatprep.subr.mxu0 0.0
      %492 = vmatpush1.msra.mxu0 0.0
      %493 = vmatprep.subr.mxu0 0.0
      %494 = vmatpush1.msra.mxu0 0.0
      %495 = vmatprep.subr.mxu0 0.0
      %496 = vmatpush1.msra.mxu0 0.0
      %497 = vmatprep.mubr.f32.mxu0 0.0
      %498 = vmatmul.mubr.f32.gmra.mrb[0].mxu0 %v281
      %v499 = vpop.f32.mrb[0].mxu0
      %v500 = vadd.f32 0.0, %v499
      %v501 = vpop.f32.mrb[0].mxu0
      %502 = vdwg.mxu0
      %v503 = vlaneseq
      %v504 = vshrl.u32 %v503, 7
      %vm505 = vcmp.ge.s32.totalorder %v504, 1
      %v506 = vrot.slane %v350, 7
      %v507 = vsel %vm505, %v506, 0.0
      %vm508 = vcmp.le.s32.totalorder %v504, 6
      %v509 = vrot.slane %v500, 1
      %v510 = vsel %vm508, %v509, 0.0
      %v511 = vadd.f32 %v507, %v425
      %v512 = vadd.f32 %v511, %v510
      %v513 = vld [vmem:[%s2] sm:$0x1]
      %v515 = vlaneseq
      %v516 = vshrl.u32 %v515, 7
      %v517 = vsub.s32 0, %v516
      %v518 = vrot.slane %v513, %v517
      %v520 = vadd.f32 %v512, %v518
      %vm521 = vcmp.ge.f32.partialorder %v520, 0.0
      %v522 = vmul.f32 %v520, 0.2
      %v523 = vsel %vm521, %v520, %v522
      %vm524 = vcmask 523264
      %525 = vst.msk [vmem:[#allocation2] sm:$0xff] %vm524, %v523
      %v526 = vld [vmem:[#allocation2] ss:$2 sm:$0xf]
      %s527 = scalar_lea.vmem [#allocation2], 1
      %v528 = vld [vmem:[%s527] ss:$2 sm:$0xf]
      %v529 = vld [vmem:[%s3] sm:$0xff]
      %v530 = vld [vmem:[%s3 + $0x8] sm:$0xff]
      %v531 = vld [vmem:[%s3 + $0x10] sm:$0xff]
      %v532 = vld [vmem:[%s3 + $0x18] sm:$0xff]
      %v533 = vld [vmem:[%s3 + $0x20] sm:$0xff]
      %v534 = vld [vmem:[%s3 + $0x28] sm:$0xff]
      %v535 = vld [vmem:[%s3 + $0x30] sm:$0xff]
      %v536 = vld [vmem:[%s3 + $0x38] sm:$0xff]
      %v538 = vsel %vm524, %v528, 0
      %540 = vmatprep.subr.mxu0 0.0
      %541 = vmatpush1.msra.mxu0 %v529
      %542 = vmatprep.subr.mxu0 0.0
      %543 = vmatpush1.msra.mxu0 %v530
      %544 = vmatprep.subr.mxu0 0.0
      %545 = vmatpush1.msra.mxu0 %v531
      %546 = vmatprep.subr.mxu0 0.0
      %547 = vmatpush1.msra.mxu0 %v532
      %548 = vmatprep.subr.mxu0 0.0
      %549 = vmatpush1.msra.mxu0 %v533
      %550 = vmatprep.subr.mxu0 0.0
      %551 = vmatpush1.msra.mxu0 %v534
      %552 = vmatprep.subr.mxu0 0.0
      %553 = vmatpush1.msra.mxu0 %v535
      %554 = vmatprep.subr.mxu0 0.0
      %555 = vmatpush1.msra.mxu0 %v536
      %556 = vmatprep.subr.mxu0 0.0
      %557 = vmatpush1.msra.mxu0 0.0
      %558 = vmatprep.subr.mxu0 0.0
      %559 = vmatpush1.msra.mxu0 0.0
      %560 = vmatprep.subr.mxu0 0.0
      %561 = vmatpush1.msra.mxu0 0.0
      %562 = vmatprep.subr.mxu0 0.0
      %563 = vmatpush1.msra.mxu0 0.0
      %564 = vmatprep.subr.mxu0 0.0
      %565 = vmatpush1.msra.mxu0 0.0
      %566 = vmatprep.subr.mxu0 0.0
      %567 = vmatpush1.msra.mxu0 0.0
      %568 = vmatprep.subr.mxu0 0.0
      %569 = vmatpush1.msra.mxu0 0.0
      %570 = vmatprep.subr.mxu0 0.0
      %571 = vmatpush1.msra.mxu0 0.0
      %572 = vmatprep.subr.mxu0 0.0
      %573 = vmatpush1.msra.mxu0 0.0
      %574 = vmatprep.subr.mxu0 0.0
      %575 = vmatpush1.msra.mxu0 0.0
      %576 = vmatprep.subr.mxu0 0.0
      %577 = vmatpush1.msra.mxu0 0.0
      %578 = vmatprep.subr.mxu0 0.0
      %579 = vmatpush1.msra.mxu0 0.0
      %580 = vmatprep.subr.mxu0 0.0
      %581 = vmatpush1.msra.mxu0 0.0
      %582 = vmatprep.subr.mxu0 0.0
      %583 = vmatpush1.msra.mxu0 0.0
      %584 = vmatprep.subr.mxu0 0.0
      %585 = vmatpush1.msra.mxu0 0.0
      %586 = vmatprep.subr.mxu0 0.0
      %587 = vmatpush1.msra.mxu0 0.0
      %588 = vmatprep.subr.mxu0 0.0
      %589 = vmatpush1.msra.mxu0 0.0
      %590 = vmatprep.subr.mxu0 0.0
      %591 = vmatpush1.msra.mxu0 0.0
      %592 = vmatprep.subr.mxu0 0.0
      %593 = vmatpush1.msra.mxu0 0.0
      %594 = vmatprep.subr.mxu0 0.0
      %595 = vmatpush1.msra.mxu0 0.0
      %596 = vmatprep.subr.mxu0 0.0
      %597 = vmatpush1.msra.mxu0 0.0
      %598 = vmatprep.subr.mxu0 0.0
      %599 = vmatpush1.msra.mxu0 0.0
      %600 = vmatprep.subr.mxu0 0.0
      %601 = vmatpush1.msra.mxu0 0.0
      %602 = vmatprep.subr.mxu0 0.0
      %603 = vmatpush1.msra.mxu0 0.0
      %604 = vmatprep.mubr.f32.mxu0 0.0
      %605 = vmatmul.mubr.f32.gmra.mrb[0].mxu0 %v538
      %v606 = vpop.f32.mrb[0].mxu0
      %v607 = vadd.f32 0.0, %v606
      %v608 = vpop.f32.mrb[0].mxu0
      %609 = vdwg.mxu0
      %s610 = scalar_lea.vmem %s3, 64
      %v611 = vld [vmem:[%s610] sm:$0xff]
      %v612 = vld [vmem:[%s610 + $0x8] sm:$0xff]
      %v613 = vld [vmem:[%s610 + $0x10] sm:$0xff]
      %v614 = vld [vmem:[%s610 + $0x18] sm:$0xff]
      %v615 = vld [vmem:[%s610 + $0x20] sm:$0xff]
      %v616 = vld [vmem:[%s610 + $0x28] sm:$0xff]
      %v617 = vld [vmem:[%s610 + $0x30] sm:$0xff]
      %v618 = vld [vmem:[%s610 + $0x38] sm:$0xff]
      %v620 = vsel %vm524, %v526, 0
      %622 = vmatprep.subr.mxu0 0.0
      %623 = vmatpush1.msra.mxu0 %v611
      %624 = vmatprep.subr.mxu0 0.0
      %625 = vmatpush1.msra.mxu0 %v612
      %626 = vmatprep.subr.mxu0 0.0
      %627 = vmatpush1.msra.mxu0 %v613
      %628 = vmatprep.subr.mxu0 0.0
      %629 = vmatpush1.msra.mxu0 %v614
      %630 = vmatprep.subr.mxu0 0.0
      %631 = vmatpush1.msra.mxu0 %v615
      %632 = vmatprep.subr.mxu0 0.0
      %633 = vmatpush1.msra.mxu0 %v616
      %634 = vmatprep.subr.mxu0 0.0
      %635 = vmatpush1.msra.mxu0 %v617
      %636 = vmatprep.subr.mxu0 0.0
      %637 = vmatpush1.msra.mxu0 %v618
      %638 = vmatprep.subr.mxu0 0.0
      %639 = vmatpush1.msra.mxu0 0.0
      %640 = vmatprep.subr.mxu0 0.0
      %641 = vmatpush1.msra.mxu0 0.0
      %642 = vmatprep.subr.mxu0 0.0
      %643 = vmatpush1.msra.mxu0 0.0
      %644 = vmatprep.subr.mxu0 0.0
      %645 = vmatpush1.msra.mxu0 0.0
      %646 = vmatprep.subr.mxu0 0.0
      %647 = vmatpush1.msra.mxu0 0.0
      %648 = vmatprep.subr.mxu0 0.0
      %649 = vmatpush1.msra.mxu0 0.0
      %650 = vmatprep.subr.mxu0 0.0
      %651 = vmatpush1.msra.mxu0 0.0
      %652 = vmatprep.subr.mxu0 0.0
      %653 = vmatpush1.msra.mxu0 0.0
      %654 = vmatprep.subr.mxu0 0.0
      %655 = vmatpush1.msra.mxu0 0.0
      %656 = vmatprep.subr.mxu0 0.0
      %657 = vmatpush1.msra.mxu0 0.0
      %658 = vmatprep.subr.mxu0 0.0
      %659 = vmatpush1.msra.mxu0 0.0
      %660 = vmatprep.subr.mxu0 0.0
      %661 = vmatpush1.msra.mxu0 0.0
      %662 = vmatprep.subr.mxu0 0.0
      %663 = vmatpush1.msra.mxu0 0.0
      %664 = vmatprep.subr.mxu0 0.0
      %665 = vmatpush1.msra.mxu0 0.0
      %666 = vmatprep.subr.mxu0 0.0
      %667 = vmatpush1.msra.mxu0 0.0
      %668 = vmatprep.subr.mxu0 0.0
      %669 = vmatpush1.msra.mxu0 0.0
      %670 = vmatprep.subr.mxu0 0.0
      %671 = vmatpush1.msra.mxu0 0.0
      %672 = vmatprep.subr.mxu0 0.0
      %673 = vmatpush1.msra.mxu0 0.0
      %674 = vmatprep.subr.mxu0 0.0
      %675 = vmatpush1.msra.mxu0 0.0
      %676 = vmatprep.subr.mxu0 0.0
      %677 = vmatpush1.msra.mxu0 0.0
      %678 = vmatprep.subr.mxu0 0.0
      %679 = vmatpush1.msra.mxu0 0.0
      %680 = vmatprep.subr.mxu0 0.0
      %681 = vmatpush1.msra.mxu0 0.0
      %682 = vmatprep.subr.mxu0 0.0
      %683 = vmatpush1.msra.mxu0 0.0
      %684 = vmatprep.subr.mxu0 0.0
      %685 = vmatpush1.msra.mxu0 0.0
      %686 = vmatprep.mubr.f32.mxu0 0.0
      %687 = vmatmul.mubr.f32.gmra.mrb[0].mxu0 %v620
      %v688 = vpop.f32.mrb[0].mxu0
      %v689 = vadd.f32 0.0, %v688
      %v690 = vpop.f32.mrb[0].mxu0
      %691 = vdwg.mxu0
      %s692 = scalar_lea.vmem %s3, 128
      %v693 = vld [vmem:[%s692] sm:$0xff]
      %v694 = vld [vmem:[%s692 + $0x8] sm:$0xff]
      %v695 = vld [vmem:[%s692 + $0x10] sm:$0xff]
      %v696 = vld [vmem:[%s692 + $0x18] sm:$0xff]
      %v697 = vld [vmem:[%s692 + $0x20] sm:$0xff]
      %v698 = vld [vmem:[%s692 + $0x28] sm:$0xff]
      %v699 = vld [vmem:[%s692 + $0x30] sm:$0xff]
      %v700 = vld [vmem:[%s692 + $0x38] sm:$0xff]
      %701 = vmatprep.subr.mxu0 0.0
      %702 = vmatpush1.msra.mxu0 %v693
      %703 = vmatprep.subr.mxu0 0.0
      %704 = vmatpush1.msra.mxu0 %v694
      %705 = vmatprep.subr.mxu0 0.0
      %706 = vmatpush1.msra.mxu0 %v695
      %707 = vmatprep.subr.mxu0 0.0
      %708 = vmatpush1.msra.mxu0 %v696
      %709 = vmatprep.subr.mxu0 0.0
      %710 = vmatpush1.msra.mxu0 %v697
      %711 = vmatprep.subr.mxu0 0.0
      %712 = vmatpush1.msra.mxu0 %v698
      %713 = vmatprep.subr.mxu0 0.0
      %714 = vmatpush1.msra.mxu0 %v699
      %715 = vmatprep.subr.mxu0 0.0
      %716 = vmatpush1.msra.mxu0 %v700
      %717 = vmatprep.subr.mxu0 0.0
      %718 = vmatpush1.msra.mxu0 0.0
      %719 = vmatprep.subr.mxu0 0.0
      %720 = vmatpush1.msra.mxu0 0.0
      %721 = vmatprep.subr.mxu0 0.0
      %722 = vmatpush1.msra.mxu0 0.0
      %723 = vmatprep.subr.mxu0 0.0
      %724 = vmatpush1.msra.mxu0 0.0
      %725 = vmatprep.subr.mxu0 0.0
      %726 = vmatpush1.msra.mxu0 0.0
      %727 = vmatprep.subr.mxu0 0.0
      %728 = vmatpush1.msra.mxu0 0.0
      %729 = vmatprep.subr.mxu0 0.0
      %730 = vmatpush1.msra.mxu0 0.0
      %731 = vmatprep.subr.mxu0 0.0
      %732 = vmatpush1.msra.mxu0 0.0
      %733 = vmatprep.subr.mxu0 0.0
      %734 = vmatpush1.msra.mxu0 0.0
      %735 = vmatprep.subr.mxu0 0.0
      %736 = vmatpush1.msra.mxu0 0.0
      %737 = vmatprep.subr.mxu0 0.0
      %738 = vmatpush1.msra.mxu0 0.0
      %739 = vmatprep.subr.mxu0 0.0
      %740 = vmatpush1.msra.mxu0 0.0
      %741 = vmatprep.subr.mxu0 0.0
      %742 = vmatpush1.msra.mxu0 0.0
      %743 = vmatprep.subr.mxu0 0.0
      %744 = vmatpush1.msra.mxu0 0.0
      %745 = vmatprep.subr.mxu0 0.0
      %746 = vmatpush1.msra.mxu0 0.0
      %747 = vmatprep.subr.mxu0 0.0
      %748 = vmatpush1.msra.mxu0 0.0
      %749 = vmatprep.subr.mxu0 0.0
      %750 = vmatpush1.msra.mxu0 0.0
      %751 = vmatprep.subr.mxu0 0.0
      %752 = vmatpush1.msra.mxu0 0.0
      %753 = vmatprep.subr.mxu0 0.0
      %754 = vmatpush1.msra.mxu0 0.0
      %755 = vmatprep.subr.mxu0 0.0
      %756 = vmatpush1.msra.mxu0 0.0
      %757 = vmatprep.subr.mxu0 0.0
      %758 = vmatpush1.msra.mxu0 0.0
      %759 = vmatprep.subr.mxu0 0.0
      %760 = vmatpush1.msra.mxu0 0.0
      %761 = vmatprep.subr.mxu0 0.0
      %762 = vmatpush1.msra.mxu0 0.0
      %763 = vmatprep.subr.mxu0 0.0
      %764 = vmatpush1.msra.mxu0 0.0
      %765 = vmatprep.mubr.f32.mxu0 0.0
      %766 = vmatmul.mubr.f32.gmra.mrb[0].mxu0 %v538
      %v767 = vpop.f32.mrb[0].mxu0
      %v768 = vadd.f32 0.0, %v767
      %v769 = vpop.f32.mrb[0].mxu0
      %770 = vdwg.mxu0
      %vm771 = vcmask 1047556
      %v772 = vrot.slane %v607, 4
      %v773 = vsel %vm771, %v772, %v607
      %v774 = vrot.slane %v773, 4
      %v775 = vsel %vm771, %v774, %v607
      %v777 = vrot.slane %v775, 3
      %v779 = vsel %vm505, %v777, 0.0
      %v780 = vld [vmem:[%s269] ss:$2 sm:$0xf]
      %v781 = vld [vmem:[%s5] sm:$0xff]
      %v782 = vld [vmem:[%s5 + $0x8] sm:$0xff]
      %v783 = vld [vmem:[%s5 + $0x10] sm:$0xff]
      %v784 = vld [vmem:[%s5 + $0x18] sm:$0xff]
      %v785 = vld [vmem:[%s6] sm:$0x1]
      %v787 = vlaneseq
      %v788 = vshrl.u32 %v787, 7
      %v789 = vsub.s32 0, %v788
      %v790 = vrot.slane %v785, %v789
      %v793 = vsel %vm279, %v780, 0
      %795 = vmatprep.subr.mxu0 0.0
      %796 = vmatpush1.msra.mxu0 %v781
      %797 = vmatprep.subr.mxu0 0.0
      %798 = vmatpush1.msra.mxu0 %v782
      %799 = vmatprep.subr.mxu0 0.0
      %800 = vmatpush1.msra.mxu0 %v783
      %801 = vmatprep.subr.mxu0 0.0
      %802 = vmatpush1.msra.mxu0 %v784
      %803 = vmatprep.subr.mxu0 0.0
      %804 = vmatpush1.msra.mxu0 0.0
      %805 = vmatprep.subr.mxu0 0.0
      %806 = vmatpush1.msra.mxu0 0.0
      %807 = vmatprep.subr.mxu0 0.0
      %808 = vmatpush1.msra.mxu0 0.0
      %809 = vmatprep.subr.mxu0 0.0
      %810 = vmatpush1.msra.mxu0 0.0
      %811 = vmatprep.subr.mxu0 0.0
      %812 = vmatpush1.msra.mxu0 0.0
      %813 = vmatprep.subr.mxu0 0.0
      %814 = vmatpush1.msra.mxu0 0.0
      %815 = vmatprep.subr.mxu0 0.0
      %816 = vmatpush1.msra.mxu0 0.0
      %817 = vmatprep.subr.mxu0 0.0
      %818 = vmatpush1.msra.mxu0 0.0
      %819 = vmatprep.subr.mxu0 0.0
      %820 = vmatpush1.msra.mxu0 0.0
      %821 = vmatprep.subr.mxu0 0.0
      %822 = vmatpush1.msra.mxu0 0.0
      %823 = vmatprep.subr.mxu0 0.0
      %824 = vmatpush1.msra.mxu0 0.0
      %825 = vmatprep.subr.mxu0 0.0
      %826 = vmatpush1.msra.mxu0 0.0
      %827 = vmatprep.subr.mxu0 0.0
      %828 = vmatpush1.msra.mxu0 0.0
      %829 = vmatprep.subr.mxu0 0.0
      %830 = vmatpush1.msra.mxu0 0.0
      %831 = vmatprep.subr.mxu0 0.0
      %832 = vmatpush1.msra.mxu0 0.0
      %833 = vmatprep.subr.mxu0 0.0
      %834 = vmatpush1.msra.mxu0 0.0
      %835 = vmatprep.subr.mxu0 0.0
      %836 = vmatpush1.msra.mxu0 0.0
      %837 = vmatprep.subr.mxu0 0.0
      %838 = vmatpush1.msra.mxu0 0.0
      %839 = vmatprep.subr.mxu0 0.0
      %840 = vmatpush1.msra.mxu0 0.0
      %841 = vmatprep.subr.mxu0 0.0
      %842 = vmatpush1.msra.mxu0 0.0
      %843 = vmatprep.subr.mxu0 0.0
      %844 = vmatpush1.msra.mxu0 0.0
      %845 = vmatprep.subr.mxu0 0.0
      %846 = vmatpush1.msra.mxu0 0.0
      %847 = vmatprep.subr.mxu0 0.0
      %848 = vmatpush1.msra.mxu0 0.0
      %849 = vmatprep.subr.mxu0 0.0
      %850 = vmatpush1.msra.mxu0 0.0
      %851 = vmatprep.subr.mxu0 0.0
      %852 = vmatpush1.msra.mxu0 0.0
      %853 = vmatprep.subr.mxu0 0.0
      %854 = vmatpush1.msra.mxu0 0.0
      %855 = vmatprep.subr.mxu0 0.0
      %856 = vmatpush1.msra.mxu0 0.0
      %857 = vmatprep.subr.mxu0 0.0
      %858 = vmatpush1.msra.mxu0 0.0
      %859 = vmatprep.mubr.f32.mxu0 0.0
      %860 = vmatmul.mubr.f32.gmra.mrb[0].mxu0 %v793
      %v861 = vpop.f32.mrb[0].mxu0
      %v862 = vadd.f32 %v790, %v861
      %v863 = vpop.f32.mrb[0].mxu0
      %864 = vdwg.mxu0
      %v865 = vadd.f32 %v779, %v689
      %v866 = vadd.f32 %v865, %v768
      %v867 = vld [vmem:[%s4] sm:$0x1]
      %v869 = vlaneseq
      %v870 = vshrl.u32 %v869, 7
      %v871 = vsub.s32 0, %v870
      %v872 = vrot.slane %v867, %v871
      %v874 = vadd.f32 %v866, %v872
      %v875 = vadd.f32 %v874, %v862
      %vm876 = vcmask 519168
      %877 = vst.msk [vmem:[%s273] sm:$0xf] %vm876, %v875
      %p878 = scmp.lt.s32.totalorder %s18, 1
      %s879 = scalar_select %p878, %s18, 1
      %s880 = smul.addr %s879, 4
      %s881 = scalar_lea.vmem %s7, %s880
      // Predicated region
      $region49: #{gumbel_discriminator_forward.7} parent=47 // pred_check
        %p882 = pneg %p188
      $region50: #{gumbel_discriminator_forward.7} parent=47 // pred_check_branch
        %884 = sbr.rel (%p882) target = $region52
      $region51: #{gumbel_discriminator_forward.7} parent=47 // pred_region
        _
      $region52: #{gumbel_discriminator_forward.7} parent=47 // pred_fallthru
        _
    $region48: #{gumbel_discriminator_forward.7} parent=5 // pred_fallthru
      _
    %p885 = scmp.le.s32.totalorder 2, %s13
    // Predicated region
    $region53: #{gumbel_discriminator_forward.7} parent=5 // pred_check
      %p886 = pneg %p885
    $region54: #{gumbel_discriminator_forward.7} parent=5 // pred_check_branch
      %888 = sbr.rel (%p886) target = $region56
    $region55: #{gumbel_discriminator_forward.7} parent=5 // pred_region
      %s889 = ssub.s32 %s13, 2
      // Predicated region
      $region57: #{gumbel_discriminator_forward.7} parent=55 // pred_check
        %p890 = pneg %p194
      $region58: #{gumbel_discriminator_forward.7} parent=55 // pred_check_branch
        %892 = sbr.rel (%p890) target = $region60
      $region59: #{gumbel_discriminator_forward.7} parent=55 // pred_region
        %p893 = scmp.lt.s32.totalorder %s19, 1
        %s894 = scalar_select %p893, %s19, 1
        %s895 = smul.addr %s894, 4
        %s896 = scalar_lea.vmem %s7, %s895
      $region60: #{gumbel_discriminator_forward.7} parent=55 // pred_fallthru
        _
    $region56: #{gumbel_discriminator_forward.7} parent=5 // pred_fallthru
      _
  $region6: #{gumbel_discriminator_forward.7} parent=0 // loop_footer
    %s17 = sadd.s32 1, %s13
  $region7: #{gumbel_discriminator_forward.7} parent=0 // loop_footer_branch
    %12 = sbr.rel target = $region3
  $region8: #{gumbel_discriminator_forward.7} parent=0 // loop_exit
    _

// kernel: gumbel_discriminator_forward.5
$region0: #{gumbel_discriminator_forward.5}
  #allocation0 [shape = 'u32[]', space=smem, size = 0x4, offset = 0x4, fixed_abs, tag = 'smem constant byte address 0x4 - core index']
  #allocation1 [shape = 'u32[144,128]{1,0:T(1,128)}', space=vmem, size = 0x12000, scoped, tag = 'internal scratch']
  #allocation2 [shape = 'f32[32,16]{1,0:T(8,128)}', space=vmem, size = 0x4000, scoped, tag = 'scratch operand']
  %s0 = inlined_call_operand.vmem [shape: f32[2,32,8], index: 0, kind: input, shape index: {}]
  %s1 = inlined_call_operand.vmem [shape: f32[3,8,16], index: 1, kind: input, shape index: {}]
  %s2 = inlined_call_operand.vmem [shape: f32[1,16], index: 2, kind: input, shape index: {}]
  %s3 = inlined_call_operand.vmem [shape: f32[3,16,16], index: 3, kind: input, shape index: {}]
  %s4 = inlined_call_operand.vmem [shape: f32[1,16], index: 4, kind: input, shape index: {}]
  %s5 = inlined_call_operand.vmem [shape: f32[8,16], index: 5, kind: input, shape index: {}]
  %s6 = inlined_call_operand.vmem [shape: f32[1,16], index: 6, kind: input, shape index: {}]
  %s7 = inlined_call_operand.vmem [shape: f32[2,16,16], index: 7, kind: output, shape index: {}]
  %s8 = sld [smem:[#allocation0]]
  $region61: #{gumbel_discriminator_forward.5} parent=0
    _
  %s10 = ssub.s32 1, %s8
  %s11 = scalar_select 0, %s10, %s8
  loop: start=0, step=1, limit=4
  $region2: #{gumbel_discriminator_forward.5} parent=0 // loop_pre_header
    _
  $region3: #{gumbel_discriminator_forward.5} parent=0 // loop_header
    %s13 = sphi 0, %s17
    %p14 = scmp.ge.s32.totalorder %s13, 4
    %s23 = sphi 0, %s25
    %s26 = sphi 0, %s23
    %s27 = sphi 0, %s26
    %s43 = sphi 0, %s27
    %s47 = sphi 0, %s47
    %s49 = sphi 0, %s47
    %s50 = sphi 0, %s49
    %s64 = sphi 0, %s50
    %s68 = sphi 0, %s68
    %s70 = sphi 0, %s68
    %s71 = sphi 0, %s70
    %s85 = sphi 0, %s71
    %s89 = sphi 0, %s89
    %s91 = sphi 0, %s89
    %s92 = sphi 0, %s91
    %s106 = sphi 0, %s92
    %s110 = sphi 0, %s110
    %s112 = sphi 0, %s110
    %s113 = sphi 0, %s112
    %s127 = sphi 0, %s113
    %s131 = sphi 0, %s131
    %s133 = sphi 0, %s131
    %s134 = sphi 0, %s133
    %s148 = sphi 0, %s134
    %s152 = sphi 0, %s152
    %s154 = sphi 0, %s152
    %s155 = sphi 0, %s154
    %s169 = sphi 0, %s155
    %s175 = sphi 0, %s177
    %s178 = sphi 0, %s175
    %s179 = sphi 0, %s178
    %s195 = sphi 0, %s179
  $region4: #{gumbel_discriminator_forward.5} parent=0 // loop_header_branch
    %16 = sbr.rel (%p14) target = $region8
  $region5: #{gumbel_discriminator_forward.5} parent=0 // loop_body
    %s18 = ssub.s32 %s13, 1
    %s19 = ssub.s32 %s13, 2
    %s20 = sadd.s32 %s13, 1
    %s21 = ssub.s32 %s13, %s20
    %p22 = scmp.eq.s32.totalorder %s21, 0
    %s24 = sadd.s32 %s23, 1
    %s25 = scalar_select %p22, %s23, %s24
    %p28 = pneg %p22
    %p29 = scmp.eq.s32.totalorder %s13, 1
    %p30 = por %p28, %p29
    %p31 = scmp.ne.s32.totalorder %s23, %s26
    %p32 = scmp.eq.s32.totalorder %s13, 0
    %p33 = por %p31, %p32
    %p34 = scmp.ne.s32.totalorder %s23, %s26
    %p35 = scmp.eq.s32.totalorder %s18, 1
    %p36 = por %p34, %p35
    %p37 = scmp.ne.s32.totalorder %s26, %s27
    %p38 = scmp.eq.s32.totalorder %s18, 0
    %p39 = por %p37, %p38
    %p40 = scmp.ne.s32.totalorder %s26, %s27
    %p41 = scmp.eq.s32.totalorder %s19, 1
    %p42 = por %p40, %p41
    %p44 = scmp.ne.s32.totalorder %s27, %s43
    %p45 = scmp.eq.s32.totalorder %s19, 0
    %p46 = por %p44, %p45
    %s48 = sadd.s32 %s47, 1
    %p51 = scmp.eq.s32.totalorder %s13, 1
    %p52 = scmp.ne.s32.totalorder %s47, %s49
    %p53 = scmp.eq.s32.totalorder %s13, 0
    %p54 = por %p52, %p53
    %p55 = scmp.ne.s32.totalorder %s47, %s49
    %p56 = scmp.eq.s32.totalorder %s18, 1
    %p57 = por %p55, %p56
    %p58 = scmp.ne.s32.totalorder %s49, %s50
    %p59 = scmp.eq.s32.totalorder %s18, 0
    %p60 = por %p58, %p59
    %p61 = scmp.ne.s32.totalorder %s49, %s50
    %p62 = scmp.eq.s32.totalorder %s19, 1
    %p63 = por %p61, %p62
    %p65 = scmp.ne.s32.totalorder %s50, %s64
    %p66 = scmp.eq.s32.totalorder %s19, 0
    %p67 = por %p65, %p66
    %s69 = sadd.s32 %s68, 1
    %p72 = scmp.eq.s32.totalorder %s13, 1
    %p73 = scmp.ne.s32.totalorder %s68, %s70
    %p74 = scmp.eq.s32.totalorder %s13, 0
    %p75 = por %p73, %p74
    %p76 = scmp.ne.s32.totalorder %s68, %s70
    %p77 = scmp.eq.s32.totalorder %s18, 1
    %p78 = por %p76, %p77
    %p79 = scmp.ne.s32.totalorder %s70, %s71
    %p80 = scmp.eq.s32.totalorder %s18, 0
    %p81 = por %p79, %p80
    %p82 = scmp.ne.s32.totalorder %s70, %s71
    %p83 = scmp.eq.s32.totalorder %s19, 1
    %p84 = por %p82, %p83
    %p86 = scmp.ne.s32.totalorder %s71, %s85
    %p87 = scmp.eq.s32.totalorder %s19, 0
    %p88 = por %p86, %p87
    %s90 = sadd.s32 %s89, 1
    %p93 = scmp.eq.s32.totalorder %s13, 1
    %p94 = scmp.ne.s32.totalorder %s89, %s91
    %p95 = scmp.eq.s32.totalorder %s13, 0
    %p96 = por %p94, %p95
    %p97 = scmp.ne.s32.totalorder %s89, %s91
    %p98 = scmp.eq.s32.totalorder %s18, 1
    %p99 = por %p97, %p98
    %p100 = scmp.ne.s32.totalorder %s91, %s92
    %p101 = scmp.eq.s32.totalorder %s18, 0
    %p102 = por %p100, %p101
    %p103 = scmp.ne.s32.totalorder %s91, %s92
    %p104 = scmp.eq.s32.totalorder %s19, 1
    %p105 = por %p103, %p104
    %p107 = scmp.ne.s32.totalorder %s92, %s106
    %p108 = scmp.eq.s32.totalorder %s19, 0
    %p109 = por %p107, %p108
    %s111 = sadd.s32 %s110, 1
    %p114 = scmp.eq.s32.totalorder %s13, 1
    %p115 = scmp.ne.s32.totalorder %s110, %s112
    %p116 = scmp.eq.s32.totalorder %s13, 0
    %p117 = por %p115, %p116
    %p118 = scmp.ne.s32.totalorder %s110, %s112
    %p119 = scmp.eq.s32.totalorder %s18, 1
    %p120 = por %p118, %p119
    %p121 = scmp.ne.s32.totalorder %s112, %s113
    %p122 = scmp.eq.s32.totalorder %s18, 0
    %p123 = por %p121, %p122
    %p124 = scmp.ne.s32.totalorder %s112, %s113
    %p125 = scmp.eq.s32.totalorder %s19, 1
    %p126 = por %p124, %p125
    %p128 = scmp.ne.s32.totalorder %s113, %s127
    %p129 = scmp.eq.s32.totalorder %s19, 0
    %p130 = por %p128, %p129
    %s132 = sadd.s32 %s131, 1
    %p135 = scmp.eq.s32.totalorder %s13, 1
    %p136 = scmp.ne.s32.totalorder %s131, %s133
    %p137 = scmp.eq.s32.totalorder %s13, 0
    %p138 = por %p136, %p137
    %p139 = scmp.ne.s32.totalorder %s131, %s133
    %p140 = scmp.eq.s32.totalorder %s18, 1
    %p141 = por %p139, %p140
    %p142 = scmp.ne.s32.totalorder %s133, %s134
    %p143 = scmp.eq.s32.totalorder %s18, 0
    %p144 = por %p142, %p143
    %p145 = scmp.ne.s32.totalorder %s133, %s134
    %p146 = scmp.eq.s32.totalorder %s19, 1
    %p147 = por %p145, %p146
    %p149 = scmp.ne.s32.totalorder %s134, %s148
    %p150 = scmp.eq.s32.totalorder %s19, 0
    %p151 = por %p149, %p150
    %s153 = sadd.s32 %s152, 1
    %p156 = scmp.eq.s32.totalorder %s13, 1
    %p157 = scmp.ne.s32.totalorder %s152, %s154
    %p158 = scmp.eq.s32.totalorder %s13, 0
    %p159 = por %p157, %p158
    %p160 = scmp.ne.s32.totalorder %s152, %s154
    %p161 = scmp.eq.s32.totalorder %s18, 1
    %p162 = por %p160, %p161
    %p163 = scmp.ne.s32.totalorder %s154, %s155
    %p164 = scmp.eq.s32.totalorder %s18, 0
    %p165 = por %p163, %p164
    %p166 = scmp.ne.s32.totalorder %s154, %s155
    %p167 = scmp.eq.s32.totalorder %s19, 1
    %p168 = por %p166, %p167
    %p170 = scmp.ne.s32.totalorder %s155, %s169
    %p171 = scmp.eq.s32.totalorder %s19, 0
    %p172 = por %p170, %p171
    %s173 = ssub.s32 %s13, %s20
    %p174 = scmp.eq.s32.totalorder %s173, 0
    %s176 = sadd.s32 %s175, 1
    %s177 = scalar_select %p174, %s175, %s176
    %p180 = pneg %p174
    %p181 = scmp.eq.s32.totalorder %s13, 1
    %p182 = por %p180, %p181
    %p183 = scmp.ne.s32.totalorder %s175, %s178
    %p184 = scmp.eq.s32.totalorder %s13, 0
    %p185 = por %p183, %p184
    %p186 = scmp.ne.s32.totalorder %s175, %s178
    %p187 = scmp.eq.s32.totalorder %s18, 1
    %p188 = por %p186, %p187
    %p189 = scmp.ne.s32.totalorder %s178, %s179
    %p190 = scmp.eq.s32.totalorder %s18, 0
    %p191 = por %p189, %p190
    %p192 = scmp.ne.s32.totalorder %s178, %s179
    %p193 = scmp.eq.s32.totalorder %s19, 1
    %p194 = por %p192, %p193
    %p196 = scmp.ne.s32.totalorder %s179, %s195
    %p197 = scmp.eq.s32.totalorder %s19, 0
    %p198 = por %p196, %p197
    %p199 = scmp.le.s32.totalorder 1, %s13
    %p200 = scmp.lt.s32.totalorder %s13, 3
    %p201 = pnand %p199, %p200
    %p202 = pneg %p201
    // Predicated region
    $region9: #{gumbel_discriminator_forward.5} parent=5 // pred_check
      _
    $region10: #{gumbel_discriminator_forward.5} parent=5 // pred_check_branch
      %204 = sbr.rel (%p201) target = $region12
    $region11: #{gumbel_discriminator_forward.5} parent=5 // pred_region
      %s205 = ssub.s32 %s13, 1
      // Predicated region
      $region13: #{gumbel_discriminator_forward.5} parent=11 // pred_check
        %p206 = pneg %p60
      $region14: #{gumbel_discriminator_forward.5} parent=11 // pred_check_branch
        %208 = sbr.rel (%p206) target = $region16
      $region15: #{gumbel_discriminator_forward.5} parent=11 // pred_region
        _
      $region16: #{gumbel_discriminator_forward.5} parent=11 // pred_fallthru
        _
      // Predicated region
      $region17: #{gumbel_discriminator_forward.5} parent=11 // pred_check
        %p209 = pneg %p81
      $region18: #{gumbel_discriminator_forward.5} parent=11 // pred_check_branch
        %211 = sbr.rel (%p209) target = $region20
      $region19: #{gumbel_discriminator_forward.5} parent=11 // pred_region
        _
      $region20: #{gumbel_discriminator_forward.5} parent=11 // pred_fallthru
        _
      // Predicated region
      $region21: #{gumbel_discriminator_forward.5} parent=11 // pred_check
        %p212 = pneg %p102
      $region22: #{gumbel_discriminator_forward.5} parent=11 // pred_check_branch
        %214 = sbr.rel (%p212) target = $region24
      $region23: #{gumbel_discriminator_forward.5} parent=11 // pred_region
        _
      $region24: #{gumbel_discriminator_forward.5} parent=11 // pred_fallthru
        _
      // Predicated region
      $region25: #{gumbel_discriminator_forward.5} parent=11 // pred_check
        %p215 = pneg %p123
      $region26: #{gumbel_discriminator_forward.5} parent=11 // pred_check_branch
        %217 = sbr.rel (%p215) target = $region28
      $region27: #{gumbel_discriminator_forward.5} parent=11 // pred_region
        _
      $region28: #{gumbel_discriminator_forward.5} parent=11 // pred_fallthru
        _
      // Predicated region
      $region29: #{gumbel_discriminator_forward.5} parent=11 // pred_check
        %p218 = pneg %p144
      $region30: #{gumbel_discriminator_forward.5} parent=11 // pred_check_branch
        %220 = sbr.rel (%p218) target = $region32
      $region31: #{gumbel_discriminator_forward.5} parent=11 // pred_region
        _
      $region32: #{gumbel_discriminator_forward.5} parent=11 // pred_fallthru
        _
      // Predicated region
      $region33: #{gumbel_discriminator_forward.5} parent=11 // pred_check
        %p221 = pneg %p165
      $region34: #{gumbel_discriminator_forward.5} parent=11 // pred_check_branch
        %223 = sbr.rel (%p221) target = $region36
      $region35: #{gumbel_discriminator_forward.5} parent=11 // pred_region
        _
      $region36: #{gumbel_discriminator_forward.5} parent=11 // pred_fallthru
        _
    $region12: #{gumbel_discriminator_forward.5} parent=5 // pred_fallthru
      _
    %p224 = scmp.lt.s32.totalorder %s13, 2
    // Predicated region
    $region37: #{gumbel_discriminator_forward.5} parent=5 // pred_check
      %p225 = pneg %p224
    $region38: #{gumbel_discriminator_forward.5} parent=5 // pred_check_branch
      %227 = sbr.rel (%p225) target = $region40
    $region39: #{gumbel_discriminator_forward.5} parent=5 // pred_region
      // Predicated region
      $region41: #{gumbel_discriminator_forward.5} parent=39 // pred_check
        %p228 = pneg %p33
      $region42: #{gumbel_discriminator_forward.5} parent=39 // pred_check_branch
        %230 = sbr.rel (%p228) target = $region44
      $region43: #{gumbel_discriminator_forward.5} parent=39 // pred_region
        %p231 = scmp.lt.s32.totalorder %s13, 1
        %s232 = scalar_select %p231, %s13, 1
        %s233 = smul.addr %s232, 4
        %s234 = smul.addr %s233, 8
        %s235 = scalar_lea.vmem %s0, %s234
      $region44: #{gumbel_discriminator_forward.5} parent=39 // pred_fallthru
        _
    $region40: #{gumbel_discriminator_forward.5} parent=5 // pred_fallthru
      _
    %p236 = scmp.le.s32.totalorder 1, %s13
    %p237 = scmp.lt.s32.totalorder %s13, 3
    %p238 = pnand %p236, %p237
    %p239 = pneg %p238
    // Predicated region
    $region45: #{gumbel_discriminator_forward.5} parent=5 // pred_check
      _
    $region46: #{gumbel_discriminator_forward.5} parent=5 // pred_check_branch
      %241 = sbr.rel (%p238) target = $region48
    $region47: #{gumbel_discriminator_forward.5} parent=5 // pred_region
      %s242 = ssub.s32 %s13, 1
      %p243 = scmp.lt.s32.totalorder %s18, 1
      %s244 = scalar_select %p243, %s18, 1
      %s245 = smul.addr %s244, 4
      %s246 = smul.addr %s245, 8
      %s247 = scalar_lea.vmem %s0, %s246
      %p248 = pneg %p39
      %p249 = pneg %p36
      %p250 = pneg %p60
      %p251 = pneg %p57
      %p252 = pneg %p81
      %p253 = pneg %p78
      %p254 = pneg %p102
      %p255 = pneg %p99
      %p256 = pneg %p123
      %p257 = pneg %p120
      %p258 = pneg %p144
      %p259 = pneg %p141
      %p260 = pneg %p165
      %p261 = pneg %p162
      %p262 = pneg %p191
      %p263 = pneg %p188
      %p264 = scmp.lt.s32.totalorder %s18, 1
      %s265 = scalar_select %p264, %s18, 1
      %s266 = smul.addr %s265, 2
      %s267 = smul.addr %s266, 8
      %s268 = scalar_lea.vmem %s7, %s267
      %p269 = scmp.lt.s32.totalorder %s18, 1
      %s270 = scalar_select %p269, %s18, 1
      %s271 = smul.addr %s270, 4
      %s272 = smul.addr %s271, 8
      %s273 = scalar_lea.vmem %s0, %s272
      %p274 = scmp.lt.s32.totalorder %s18, 1
      %s275 = scalar_select %p274, %s18, 1
      %s276 = smul.addr %s275, 2
      %s277 = smul.addr %s276, 8
      %s278 = scalar_lea.vmem %s7, %s277
      %v279 = vld [vmem:[%s273] sm:$0xff]
      %v280 = vld [vmem:[%s273 + $0x8] sm:$0xff]
      %v281 = vld [vmem:[%s273 + $0x10] sm:$0xff]
      %v282 = vld [vmem:[%s273 + $0x18] sm:$0xff]
      %v283 = vld [vmem:[%s1] sm:$0xff]
      %vm284 = vcmask 64512
      %v286 = vsel %vm284, %v279, 0
      %v289 = vsel %vm284, %v280, 0
      %v292 = vsel %vm284, %v281, 0
      %v295 = vsel %vm284, %v282, 0
      %297 = vmatprep.subr.mxu0 0.0
      %298 = vmatpush1.msra.mxu0 %v283
      %299 = vmatprep.subr.mxu0 0.0
      %300 = vmatpush1.msra.mxu0 0.0
      %301 = vmatprep.subr.mxu0 0.0
      %302 = vmatpush1.msra.mxu0 0.0
      %303 = vmatprep.subr.mxu0 0.0
      %304 = vmatpush1.msra.mxu0 0.0
      %305 = vmatprep.subr.mxu0 0.0
      %306 = vmatpush1.msra.mxu0 0.0
      %307 = vmatprep.subr.mxu0 0.0
      %308 = vmatpush1.msra.mxu0 0.0
      %309 = vmatprep.subr.mxu0 0.0
      %310 = vmatpush1.msra.mxu0 0.0
      %311 = vmatprep.subr.mxu0 0.0
      %312 = vmatpush1.msra.mxu0 0.0
      %313 = vmatprep.subr.mxu0 0.0
      %314 = vmatpush1.msra.mxu0 0.0
      %315 = vmatprep.subr.mxu0 0.0
      %316 = vmatpush1.msra.mxu0 0.0
      %317 = vmatprep.subr.mxu0 0.0
      %318 = vmatpush1.msra.mxu0 0.0
      %319 = vmatprep.subr.mxu0 0.0
      %320 = vmatpush1.msra.mxu0 0.0
      %321 = vmatprep.subr.mxu0 0.0
      %322 = vmatpush1.msra.mxu0 0.0
      %323 = vmatprep.subr.mxu0 0.0
      %324 = vmatpush1.msra.mxu0 0.0
      %325 = vmatprep.subr.mxu0 0.0
      %326 = vmatpush1.msra.mxu0 0.0
      %327 = vmatprep.subr.mxu0 0.0
      %328 = vmatpush1.msra.mxu0 0.0
      %329 = vmatprep.subr.mxu0 0.0
      %330 = vmatpush1.msra.mxu0 0.0
      %331 = vmatprep.subr.mxu0 0.0
      %332 = vmatpush1.msra.mxu0 0.0
      %333 = vmatprep.subr.mxu0 0.0
      %334 = vmatpush1.msra.mxu0 0.0
      %335 = vmatprep.subr.mxu0 0.0
      %336 = vmatpush1.msra.mxu0 0.0
      %337 = vmatprep.subr.mxu0 0.0
      %338 = vmatpush1.msra.mxu0 0.0
      %339 = vmatprep.subr.mxu0 0.0
      %340 = vmatpush1.msra.mxu0 0.0
      %341 = vmatprep.subr.mxu0 0.0
      %342 = vmatpush1.msra.mxu0 0.0
      %343 = vmatprep.subr.mxu0 0.0
      %344 = vmatpush1.msra.mxu0 0.0
      %345 = vmatprep.subr.mxu0 0.0
      %346 = vmatpush1.msra.mxu0 0.0
      %347 = vmatprep.subr.mxu0 0.0
      %348 = vmatpush1.msra.mxu0 0.0
      %349 = vmatprep.subr.mxu0 0.0
      %350 = vmatpush1.msra.mxu0 0.0
      %351 = vmatprep.subr.mxu0 0.0
      %352 = vmatpush1.msra.mxu0 0.0
      %353 = vmatprep.subr.mxu0 0.0
      %354 = vmatpush1.msra.mxu0 0.0
      %355 = vmatprep.subr.mxu0 0.0
      %356 = vmatpush1.msra.mxu0 0.0
      %357 = vmatprep.subr.mxu0 0.0
      %358 = vmatpush1.msra.mxu0 0.0
      %359 = vmatprep.subr.mxu0 0.0
      %360 = vmatpush1.msra.mxu0 0.0
      %361 = vmatprep.mubr.f32.mxu0 0.0
      %362 = vmatmul.mubr.f32.gmra.mrb[0].mxu0 %v286
      %v363 = vpop.f32.mrb[0].mxu0
      %v364 = vadd.f32 0.0, %v363
      %v365 = vpop.f32.mrb[0].mxu0
      %366 = vmatprep.mubr.f32.mxu0 0.0
      %367 = vmatmul.mubr.f32.gmra.mrb[0].mxu0 %v289
      %v368 = vpop.f32.mrb[0].mxu0
      %v369 = vadd.f32 0.0, %v368
      %v370 = vpop.f32.mrb[0].mxu0
      %371 = vmatprep.mubr.f32.mxu0 0.0
      %372 = vmatmul.mubr.f32.gmra.mrb[0].mxu0 %v292
      %v373 = vpop.f32.mrb[0].mxu0
      %v374 = vadd.f32 0.0, %v373
      %v375 = vpop.f32.mrb[0].mxu0
      %376 = vmatprep.mubr.f32.mxu0 0.0
      %377 = vmatmul.mubr.f32.gmra.mrb[0].mxu0 %v295
      %v378 = vpop.f32.mrb[0].mxu0
      %v379 = vadd.f32 0.0, %v378
      %v380 = vpop.f32.mrb[0].mxu0
      %381 = vdwg.mxu0
      %s382 = scalar_lea.vmem %s1, 8
      %v383 = vld [vmem:[%s382] sm:$0xff]
      %384 = vmatprep.subr.mxu0 0.0
      %385 = vmatpush1.msra.mxu0 %v383
      %386 = vmatprep.subr.mxu0 0.0
      %387 = vmatpush1.msra.mxu0 0.0
      %388 = vmatprep.subr.mxu0 0.0
      %389 = vmatpush1.msra.mxu0 0.0
      %390 = vmatprep.subr.mxu0 0.0
      %391 = vmatpush1.msra.mxu0 0.0
      %392 = vmatprep.subr.mxu0 0.0
      %393 = vmatpush1.msra.mxu0 0.0
      %394 = vmatprep.subr.mxu0 0.0
      %395 = vmatpush1.msra.mxu0 0.0
      %396 = vmatprep.subr.mxu0 0.0
      %397 = vmatpush1.msra.mxu0 0.0
      %398 = vmatprep.subr.mxu0 0.0
      %399 = vmatpush1.msra.mxu0 0.0
      %400 = vmatprep.subr.mxu0 0.0
      %401 = vmatpush1.msra.mxu0 0.0
      %402 = vmatprep.subr.mxu0 0.0
      %403 = vmatpush1.msra.mxu0 0.0
      %404 = vmatprep.subr.mxu0 0.0
      %405 = vmatpush1.msra.mxu0 0.0
      %406 = vmatprep.subr.mxu0 0.0
      %407 = vmatpush1.msra.mxu0 0.0
      %408 = vmatprep.subr.mxu0 0.0
      %409 = vmatpush1.msra.mxu0 0.0
      %410 = vmatprep.subr.mxu0 0.0
      %411 = vmatpush1.msra.mxu0 0.0
      %412 = vmatprep.subr.mxu0 0.0
      %413 = vmatpush1.msra.mxu0 0.0
      %414 = vmatprep.subr.mxu0 0.0
      %415 = vmatpush1.msra.mxu0 0.0
      %416 = vmatprep.subr.mxu0 0.0
      %417 = vmatpush1.msra.mxu0 0.0
      %418 = vmatprep.subr.mxu0 0.0
      %419 = vmatpush1.msra.mxu0 0.0
      %420 = vmatprep.subr.mxu0 0.0
      %421 = vmatpush1.msra.mxu0 0.0
      %422 = vmatprep.subr.mxu0 0.0
      %423 = vmatpush1.msra.mxu0 0.0
      %424 = vmatprep.subr.mxu0 0.0
      %425 = vmatpush1.msra.mxu0 0.0
      %426 = vmatprep.subr.mxu0 0.0
      %427 = vmatpush1.msra.mxu0 0.0
      %428 = vmatprep.subr.mxu0 0.0
      %429 = vmatpush1.msra.mxu0 0.0
      %430 = vmatprep.subr.mxu0 0.0
      %431 = vmatpush1.msra.mxu0 0.0
      %432 = vmatprep.subr.mxu0 0.0
      %433 = vmatpush1.msra.mxu0 0.0
      %434 = vmatprep.subr.mxu0 0.0
      %435 = vmatpush1.msra.mxu0 0.0
      %436 = vmatprep.subr.mxu0 0.0
      %437 = vmatpush1.msra.mxu0 0.0
      %438 = vmatprep.subr.mxu0 0.0
      %439 = vmatpush1.msra.mxu0 0.0
      %440 = vmatprep.subr.mxu0 0.0
      %441 = vmatpush1.msra.mxu0 0.0
      %442 = vmatprep.subr.mxu0 0.0
      %443 = vmatpush1.msra.mxu0 0.0
      %444 = vmatprep.subr.mxu0 0.0
      %445 = vmatpush1.msra.mxu0 0.0
      %446 = vmatprep.subr.mxu0 0.0
      %447 = vmatpush1.msra.mxu0 0.0
      %448 = vmatprep.mubr.f32.mxu0 0.0
      %449 = vmatmul.mubr.f32.gmra.mrb[0].mxu0 %v286
      %v450 = vpop.f32.mrb[0].mxu0
      %v451 = vadd.f32 0.0, %v450
      %v452 = vpop.f32.mrb[0].mxu0
      %453 = vmatprep.mubr.f32.mxu0 0.0
      %454 = vmatmul.mubr.f32.gmra.mrb[0].mxu0 %v289
      %v455 = vpop.f32.mrb[0].mxu0
      %v456 = vadd.f32 0.0, %v455
      %v457 = vpop.f32.mrb[0].mxu0
      %458 = vmatprep.mubr.f32.mxu0 0.0
      %459 = vmatmul.mubr.f32.gmra.mrb[0].mxu0 %v292
      %v460 = vpop.f32.mrb[0].mxu0
      %v461 = vadd.f32 0.0, %v460
      %v462 = vpop.f32.mrb[0].mxu0
      %463 = vmatprep.mubr.f32.mxu0 0.0
      %464 = vmatmul.mubr.f32.gmra.mrb[0].mxu0 %v295
      %v465 = vpop.f32.mrb[0].mxu0
      %v466 = vadd.f32 0.0, %v465
      %v467 = vpop.f32.mrb[0].mxu0
      %468 = vdwg.mxu0
      %s469 = scalar_lea.vmem %s1, 16
      %v470 = vld [vmem:[%s469] sm:$0xff]
      %471 = vmatprep.subr.mxu0 0.0
      %472 = vmatpush1.msra.mxu0 %v470
      %473 = vmatprep.subr.mxu0 0.0
      %474 = vmatpush1.msra.mxu0 0.0
      %475 = vmatprep.subr.mxu0 0.0
      %476 = vmatpush1.msra.mxu0 0.0
      %477 = vmatprep.subr.mxu0 0.0
      %478 = vmatpush1.msra.mxu0 0.0
      %479 = vmatprep.subr.mxu0 0.0
      %480 = vmatpush1.msra.mxu0 0.0
      %481 = vmatprep.subr.mxu0 0.0
      %482 = vmatpush1.msra.mxu0 0.0
      %483 = vmatprep.subr.mxu0 0.0
      %484 = vmatpush1.msra.mxu0 0.0
      %485 = vmatprep.subr.mxu0 0.0
      %486 = vmatpush1.msra.mxu0 0.0
      %487 = vmatprep.subr.mxu0 0.0
      %488 = vmatpush1.msra.mxu0 0.0
      %489 = vmatprep.subr.mxu0 0.0
      %490 = vmatpush1.msra.mxu0 0.0
      %491 = vmatprep.subr.mxu0 0.0
      %492 = vmatpush1.msra.mxu0 0.0
      %493 = vmatprep.subr.mxu0 0.0
      %494 = vmatpush1.msra.mxu0 0.0
      %495 = vmatprep.subr.mxu0 0.0
      %496 = vmatpush1.msra.mxu0 0.0
      %497 = vmatprep.subr.mxu0 0.0
      %498 = vmatpush1.msra.mxu0 0.0
      %499 = vmatprep.subr.mxu0 0.0
      %500 = vmatpush1.msra.mxu0 0.0
      %501 = vmatprep.subr.mxu0 0.0
      %502 = vmatpush1.msra.mxu0 0.0
      %503 = vmatprep.subr.mxu0 0.0
      %504 = vmatpush1.msra.mxu0 0.0
      %505 = vmatprep.subr.mxu0 0.0
      %506 = vmatpush1.msra.mxu0 0.0
      %507 = vmatprep.subr.mxu0 0.0
      %508 = vmatpush1.msra.mxu0 0.0
      %509 = vmatprep.subr.mxu0 0.0
      %510 = vmatpush1.msra.mxu0 0.0
      %511 = vmatprep.subr.mxu0 0.0
      %512 = vmatpush1.msra.mxu0 0.0
      %513 = vmatprep.subr.mxu0 0.0
      %514 = vmatpush1.msra.mxu0 0.0
      %515 = vmatprep.subr.mxu0 0.0
      %516 = vmatpush1.msra.mxu0 0.0
      %517 = vmatprep.subr.mxu0 0.0
      %518 = vmatpush1.msra.mxu0 0.0
      %519 = vmatprep.subr.mxu0 0.0
      %520 = vmatpush1.msra.mxu0 0.0
      %521 = vmatprep.subr.mxu0 0.0
      %522 = vmatpush1.msra.mxu0 0.0
      %523 = vmatprep.subr.mxu0 0.0
      %524 = vmatpush1.msra.mxu0 0.0
      %525 = vmatprep.subr.mxu0 0.0
      %526 = vmatpush1.msra.mxu0 0.0
      %527 = vmatprep.subr.mxu0 0.0
      %528 = vmatpush1.msra.mxu0 0.0
      %529 = vmatprep.subr.mxu0 0.0
      %530 = vmatpush1.msra.mxu0 0.0
      %531 = vmatprep.subr.mxu0 0.0
      %532 = vmatpush1.msra.mxu0 0.0
      %533 = vmatprep.subr.mxu0 0.0
      %534 = vmatpush1.msra.mxu0 0.0
      %535 = vmatprep.mubr.f32.mxu0 0.0
      %536 = vmatmul.mubr.f32.gmra.mrb[0].mxu0 %v286
      %v537 = vpop.f32.mrb[0].mxu0
      %v538 = vadd.f32 0.0, %v537
      %v539 = vpop.f32.mrb[0].mxu0
      %540 = vmatprep.mubr.f32.mxu0 0.0
      %541 = vmatmul.mubr.f32.gmra.mrb[0].mxu0 %v289
      %v542 = vpop.f32.mrb[0].mxu0
      %v543 = vadd.f32 0.0, %v542
      %v544 = vpop.f32.mrb[0].mxu0
      %545 = vmatprep.mubr.f32.mxu0 0.0
      %546 = vmatmul.mubr.f32.gmra.mrb[0].mxu0 %v292
      %v547 = vpop.f32.mrb[0].mxu0
      %v548 = vadd.f32 0.0, %v547
      %v549 = vpop.f32.mrb[0].mxu0
      %550 = vmatprep.mubr.f32.mxu0 0.0
      %551 = vmatmul.mubr.f32.gmra.mrb[0].mxu0 %v295
      %v552 = vpop.f32.mrb[0].mxu0
      %v553 = vadd.f32 0.0, %v552
      %v554 = vpop.f32.mrb[0].mxu0
      %555 = vdwg.mxu0
      %v556 = vlaneseq
      %v557 = vshrl.u32 %v556, 7
      %v558 = vadd.s32 %v557, 8
      %v559 = vadd.s32 %v557, 16
      %v560 = vadd.s32 %v557, 24
      %vm561 = vcmp.ge.s32.totalorder %v557, 1
      %vm562 = vcmp.ge.s32.totalorder %v558, 1
      %vm563 = vcmp.ge.s32.totalorder %v559, 1
      %vm564 = vcmp.ge.s32.totalorder %v560, 1
      %v565 = vrot.slane %v364, 7
      %v566 = vrot.slane %v369, 7
      %v567 = vrot.slane %v374, 7
      %v568 = vrot.slane %v379, 7
      %vm569 = vcmp.lt.s32.totalorder %v557, 1
      %v570 = vsel %vm569, %v567, %v568
      %v571 = vsel %vm569, %v566, %v567
      %v572 = vsel %vm569, %v565, %v566
      %v573 = vsel %vm569, %v568, %v565
      %v574 = vsel %vm561, %v573, 0.0
      %v575 = vsel %vm562, %v572, 0.0
      %v576 = vsel %vm563, %v571, 0.0
      %v577 = vsel %vm564, %v570, 0.0
      %vm578 = vcmp.le.s32.totalorder %v557, 30
      %vm579 = vcmp.le.s32.totalorder %v558, 30
      %vm580 = vcmp.le.s32.totalorder %v559, 30
      %vm581 = vcmp.le.s32.totalorder %v560, 30
      %v582 = vrot.slane %v538, 1
      %v583 = vrot.slane %v543, 1
      %v584 = vrot.slane %v548, 1
      %v585 = vrot.slane %v553, 1
      %vm586 = vcmp.lt.s32.totalorder %v557, 7
      %v587 = vsel %vm586, %v584, %v585
      %v588 = vsel %vm586, %v583, %v584
      %v589 = vsel %vm586, %v582, %v583
      %v590 = vsel %vm586, %v585, %v582
      %v591 = vsel %vm578, %v589, 0.0
      %v592 = vsel %vm579, %v588, 0.0
      %v593 = vsel %vm580, %v587, 0.0
      %v594 = vsel %vm581, %v590, 0.0
      %v595 = vadd.f32 %v574, %v451
      %v596 = vadd.f32 %v575, %v456
      %v597 = vadd.f32 %v576, %v461
      %v598 = vadd.f32 %v577, %v466
      %v599 = vadd.f32 %v595, %v591
      %v600 = vadd.f32 %v596, %v592
      %v601 = vadd.f32 %v597, %v593
      %v602 = vadd.f32 %v598, %v594
      %v603 = vld [vmem:[%s2] sm:$0x1]
      %v605 = vlaneseq
      %v606 = vshrl.u32 %v605, 7
      %v607 = vsub.s32 0, %v606
      %v608 = vrot.slane %v603, %v607
      %v610 = vadd.f32 %v599, %v608
      %v611 = vadd.f32 %v600, %v608
      %v612 = vadd.f32 %v601, %v608
      %v613 = vadd.f32 %v602, %v608
      %vm614 = vcmp.ge.f32.partialorder %v610, 0.0
      %vm615 = vcmp.ge.f32.partialorder %v611, 0.0
      %vm616 = vcmp.ge.f32.partialorder %v612, 0.0
      %vm617 = vcmp.ge.f32.partialorder %v613, 0.0
      %v618 = vmul.f32 %v610, 0.2
      %v619 = vmul.f32 %v611, 0.2
      %v620 = vmul.f32 %v612, 0.2
      %v621 = vmul.f32 %v613, 0.2
      %v622 = vsel %vm614, %v610, %v618
      %v623 = vsel %vm615, %v611, %v619
      %v624 = vsel %vm616, %v612, %v620
      %v625 = vsel %vm617, %v613, %v621
      %vm626 = vcmask 130048
      %627 = vst.msk [vmem:[#allocation2] sm:$0xff] %vm626, %v622
      %628 = vst.msk [vmem:[#allocation2 + $0x8] sm:$0xff] %vm626, %v623
      %629 = vst.msk [vmem:[#allocation2 + $0x10] sm:$0xff] %vm626, %v624
      %630 = vst.msk [vmem:[#allocation2 + $0x18] sm:$0xff] %vm626, %v625
      %v631 = vld [vmem:[#allocation2] ss:$2 sm:$0xff]
      %s632 = scalar_lea.vmem [#allocation2], 16
      %v633 = vld [vmem:[%s632] ss:$2 sm:$0xff]
      %s634 = scalar_lea.vmem [#allocation2], 1
      %v635 = vld [vmem:[%s634] ss:$2 sm:$0xff]
      %s636 = scalar_lea.vmem [#allocation2], 17
      %v637 = vld [vmem:[%s636] ss:$2 sm:$0xff]
      %v638 = vld [vmem:[%s3] sm:$0xff]
      %v639 = vld [vmem:[%s3 + $0x8] sm:$0xff]
      %v641 = vsel %vm626, %v635, 0
      %v644 = vsel %vm626, %v637, 0
      %646 = vmatprep.subr.mxu0 0.0
      %647 = vmatpush1.msra.mxu0 %v638
      %648 = vmatprep.subr.mxu0 0.0
      %649 = vmatpush1.msra.mxu0 %v639
      %650 = vmatprep.subr.mxu0 0.0
      %651 = vmatpush1.msra.mxu0 0.0
      %652 = vmatprep.subr.mxu0 0.0
      %653 = vmatpush1.msra.mxu0 0.0
      %654 = vmatprep.subr.mxu0 0.0
      %655 = vmatpush1.msra.mxu0 0.0
      %656 = vmatprep.subr.mxu0 0.0
      %657 = vmatpush1.msra.mxu0 0.0
      %658 = vmatprep.subr.mxu0 0.0
      %659 = vmatpush1.msra.mxu0 0.0
      %660 = vmatprep.subr.mxu0 0.0
      %661 = vmatpush1.msra.mxu0 0.0
      %662 = vmatprep.subr.mxu0 0.0
      %663 = vmatpush1.msra.mxu0 0.0
      %664 = vmatprep.subr.mxu0 0.0
      %665 = vmatpush1.msra.mxu0 0.0
      %666 = vmatprep.subr.mxu0 0.0
      %667 = vmatpush1.msra.mxu0 0.0
      %668 = vmatprep.subr.mxu0 0.0
      %669 = vmatpush1.msra.mxu0 0.0
      %670 = vmatprep.subr.mxu0 0.0
      %671 = vmatpush1.msra.mxu0 0.0
      %672 = vmatprep.subr.mxu0 0.0
      %673 = vmatpush1.msra.mxu0 0.0
      %674 = vmatprep.subr.mxu0 0.0
      %675 = vmatpush1.msra.mxu0 0.0
      %676 = vmatprep.subr.mxu0 0.0
      %677 = vmatpush1.msra.mxu0 0.0
      %678 = vmatprep.subr.mxu0 0.0
      %679 = vmatpush1.msra.mxu0 0.0
      %680 = vmatprep.subr.mxu0 0.0
      %681 = vmatpush1.msra.mxu0 0.0
      %682 = vmatprep.subr.mxu0 0.0
      %683 = vmatpush1.msra.mxu0 0.0
      %684 = vmatprep.subr.mxu0 0.0
      %685 = vmatpush1.msra.mxu0 0.0
      %686 = vmatprep.subr.mxu0 0.0
      %687 = vmatpush1.msra.mxu0 0.0
      %688 = vmatprep.subr.mxu0 0.0
      %689 = vmatpush1.msra.mxu0 0.0
      %690 = vmatprep.subr.mxu0 0.0
      %691 = vmatpush1.msra.mxu0 0.0
      %692 = vmatprep.subr.mxu0 0.0
      %693 = vmatpush1.msra.mxu0 0.0
      %694 = vmatprep.subr.mxu0 0.0
      %695 = vmatpush1.msra.mxu0 0.0
      %696 = vmatprep.subr.mxu0 0.0
      %697 = vmatpush1.msra.mxu0 0.0
      %698 = vmatprep.subr.mxu0 0.0
      %699 = vmatpush1.msra.mxu0 0.0
      %700 = vmatprep.subr.mxu0 0.0
      %701 = vmatpush1.msra.mxu0 0.0
      %702 = vmatprep.subr.mxu0 0.0
      %703 = vmatpush1.msra.mxu0 0.0
      %704 = vmatprep.subr.mxu0 0.0
      %705 = vmatpush1.msra.mxu0 0.0
      %706 = vmatprep.subr.mxu0 0.0
      %707 = vmatpush1.msra.mxu0 0.0
      %708 = vmatprep.subr.mxu0 0.0
      %709 = vmatpush1.msra.mxu0 0.0
      %710 = vmatprep.mubr.f32.mxu0 0.0
      %711 = vmatmul.mubr.f32.gmra.mrb[0].mxu0 %v641
      %v712 = vpop.f32.mrb[0].mxu0
      %v713 = vadd.f32 0.0, %v712
      %v714 = vpop.f32.mrb[0].mxu0
      %715 = vmatprep.mubr.f32.mxu0 0.0
      %716 = vmatmul.mubr.f32.gmra.mrb[0].mxu0 %v644
      %v717 = vpop.f32.mrb[0].mxu0
      %v718 = vadd.f32 0.0, %v717
      %v719 = vpop.f32.mrb[0].mxu0
      %720 = vdwg.mxu0
      %s721 = scalar_lea.vmem %s3, 16
      %v722 = vld [vmem:[%s721] sm:$0xff]
      %v723 = vld [vmem:[%s721 + $0x8] sm:$0xff]
      %v725 = vsel %vm626, %v631, 0
      %v728 = vsel %vm626, %v633, 0
      %730 = vmatprep.subr.mxu0 0.0
      %731 = vmatpush1.msra.mxu0 %v722
      %732 = vmatprep.subr.mxu0 0.0
      %733 = vmatpush1.msra.mxu0 %v723
      %734 = vmatprep.subr.mxu0 0.0
      %735 = vmatpush1.msra.mxu0 0.0
      %736 = vmatprep.subr.mxu0 0.0
      %737 = vmatpush1.msra.mxu0 0.0
      %738 = vmatprep.subr.mxu0 0.0
      %739 = vmatpush1.msra.mxu0 0.0
      %740 = vmatprep.subr.mxu0 0.0
      %741 = vmatpush1.msra.mxu0 0.0
      %742 = vmatprep.subr.mxu0 0.0
      %743 = vmatpush1.msra.mxu0 0.0
      %744 = vmatprep.subr.mxu0 0.0
      %745 = vmatpush1.msra.mxu0 0.0
      %746 = vmatprep.subr.mxu0 0.0
      %747 = vmatpush1.msra.mxu0 0.0
      %748 = vmatprep.subr.mxu0 0.0
      %749 = vmatpush1.msra.mxu0 0.0
      %750 = vmatprep.subr.mxu0 0.0
      %751 = vmatpush1.msra.mxu0 0.0
      %752 = vmatprep.subr.mxu0 0.0
      %753 = vmatpush1.msra.mxu0 0.0
      %754 = vmatprep.subr.mxu0 0.0
      %755 = vmatpush1.msra.mxu0 0.0
      %756 = vmatprep.subr.mxu0 0.0
      %757 = vmatpush1.msra.mxu0 0.0
      %758 = vmatprep.subr.mxu0 0.0
      %759 = vmatpush1.msra.mxu0 0.0
      %760 = vmatprep.subr.mxu0 0.0
      %761 = vmatpush1.msra.mxu0 0.0
      %762 = vmatprep.subr.mxu0 0.0
      %763 = vmatpush1.msra.mxu0 0.0
      %764 = vmatprep.subr.mxu0 0.0
      %765 = vmatpush1.msra.mxu0 0.0
      %766 = vmatprep.subr.mxu0 0.0
      %767 = vmatpush1.msra.mxu0 0.0
      %768 = vmatprep.subr.mxu0 0.0
      %769 = vmatpush1.msra.mxu0 0.0
      %770 = vmatprep.subr.mxu0 0.0
      %771 = vmatpush1.msra.mxu0 0.0
      %772 = vmatprep.subr.mxu0 0.0
      %773 = vmatpush1.msra.mxu0 0.0
      %774 = vmatprep.subr.mxu0 0.0
      %775 = vmatpush1.msra.mxu0 0.0
      %776 = vmatprep.subr.mxu0 0.0
      %777 = vmatpush1.msra.mxu0 0.0
      %778 = vmatprep.subr.mxu0 0.0
      %779 = vmatpush1.msra.mxu0 0.0
      %780 = vmatprep.subr.mxu0 0.0
      %781 = vmatpush1.msra.mxu0 0.0
      %782 = vmatprep.subr.mxu0 0.0
      %783 = vmatpush1.msra.mxu0 0.0
      %784 = vmatprep.subr.mxu0 0.0
      %785 = vmatpush1.msra.mxu0 0.0
      %786 = vmatprep.subr.mxu0 0.0
      %787 = vmatpush1.msra.mxu0 0.0
      %788 = vmatprep.subr.mxu0 0.0
      %789 = vmatpush1.msra.mxu0 0.0
      %790 = vmatprep.subr.mxu0 0.0
      %791 = vmatpush1.msra.mxu0 0.0
      %792 = vmatprep.subr.mxu0 0.0
      %793 = vmatpush1.msra.mxu0 0.0
      %794 = vmatprep.mubr.f32.mxu0 0.0
      %795 = vmatmul.mubr.f32.gmra.mrb[0].mxu0 %v725
      %v796 = vpop.f32.mrb[0].mxu0
      %v797 = vadd.f32 0.0, %v796
      %v798 = vpop.f32.mrb[0].mxu0
      %799 = vmatprep.mubr.f32.mxu0 0.0
      %800 = vmatmul.mubr.f32.gmra.mrb[0].mxu0 %v728
      %v801 = vpop.f32.mrb[0].mxu0
      %v802 = vadd.f32 0.0, %v801
      %v803 = vpop.f32.mrb[0].mxu0
      %804 = vdwg.mxu0
      %s805 = scalar_lea.vmem %s3, 32
      %v806 = vld [vmem:[%s805] sm:$0xff]
      %v807 = vld [vmem:[%s805 + $0x8] sm:$0xff]
      %808 = vmatprep.subr.mxu0 0.0
      %809 = vmatpush1.msra.mxu0 %v806
      %810 = vmatprep.subr.mxu0 0.0
      %811 = vmatpush1.msra.mxu0 %v807
      %812 = vmatprep.subr.mxu0 0.0
      %813 = vmatpush1.msra.mxu0 0.0
      %814 = vmatprep.subr.mxu0 0.0
      %815 = vmatpush1.msra.mxu0 0.0
      %816 = vmatprep.subr.mxu0 0.0
      %817 = vmatpush1.msra.mxu0 0.0
      %818 = vmatprep.subr.mxu0 0.0
      %819 = vmatpush1.msra.mxu0 0.0
      %820 = vmatprep.subr.mxu0 0.0
      %821 = vmatpush1.msra.mxu0 0.0
      %822 = vmatprep.subr.mxu0 0.0
      %823 = vmatpush1.msra.mxu0 0.0
      %824 = vmatprep.subr.mxu0 0.0
      %825 = vmatpush1.msra.mxu0 0.0
      %826 = vmatprep.subr.mxu0 0.0
      %827 = vmatpush1.msra.mxu0 0.0
      %828 = vmatprep.subr.mxu0 0.0
      %829 = vmatpush1.msra.mxu0 0.0
      %830 = vmatprep.subr.mxu0 0.0
      %831 = vmatpush1.msra.mxu0 0.0
      %832 = vmatprep.subr.mxu0 0.0
      %833 = vmatpush1.msra.mxu0 0.0
      %834 = vmatprep.subr.mxu0 0.0
      %835 = vmatpush1.msra.mxu0 0.0
      %836 = vmatprep.subr.mxu0 0.0
      %837 = vmatpush1.msra.mxu0 0.0
      %838 = vmatprep.subr.mxu0 0.0
      %839 = vmatpush1.msra.mxu0 0.0
      %840 = vmatprep.subr.mxu0 0.0
      %841 = vmatpush1.msra.mxu0 0.0
      %842 = vmatprep.subr.mxu0 0.0
      %843 = vmatpush1.msra.mxu0 0.0
      %844 = vmatprep.subr.mxu0 0.0
      %845 = vmatpush1.msra.mxu0 0.0
      %846 = vmatprep.subr.mxu0 0.0
      %847 = vmatpush1.msra.mxu0 0.0
      %848 = vmatprep.subr.mxu0 0.0
      %849 = vmatpush1.msra.mxu0 0.0
      %850 = vmatprep.subr.mxu0 0.0
      %851 = vmatpush1.msra.mxu0 0.0
      %852 = vmatprep.subr.mxu0 0.0
      %853 = vmatpush1.msra.mxu0 0.0
      %854 = vmatprep.subr.mxu0 0.0
      %855 = vmatpush1.msra.mxu0 0.0
      %856 = vmatprep.subr.mxu0 0.0
      %857 = vmatpush1.msra.mxu0 0.0
      %858 = vmatprep.subr.mxu0 0.0
      %859 = vmatpush1.msra.mxu0 0.0
      %860 = vmatprep.subr.mxu0 0.0
      %861 = vmatpush1.msra.mxu0 0.0
      %862 = vmatprep.subr.mxu0 0.0
      %863 = vmatpush1.msra.mxu0 0.0
      %864 = vmatprep.subr.mxu0 0.0
      %865 = vmatpush1.msra.mxu0 0.0
      %866 = vmatprep.subr.mxu0 0.0
      %867 = vmatpush1.msra.mxu0 0.0
      %868 = vmatprep.subr.mxu0 0.0
      %869 = vmatpush1.msra.mxu0 0.0
      %870 = vmatprep.subr.mxu0 0.0
      %871 = vmatpush1.msra.mxu0 0.0
      %872 = vmatprep.mubr.f32.mxu0 0.0
      %873 = vmatmul.mubr.f32.gmra.mrb[0].mxu0 %v641
      %v874 = vpop.f32.mrb[0].mxu0
      %v875 = vadd.f32 0.0, %v874
      %v876 = vpop.f32.mrb[0].mxu0
      %877 = vmatprep.mubr.f32.mxu0 0.0
      %878 = vmatmul.mubr.f32.gmra.mrb[0].mxu0 %v644
      %v879 = vpop.f32.mrb[0].mxu0
      %v880 = vadd.f32 0.0, %v879
      %v881 = vpop.f32.mrb[0].mxu0
      %882 = vdwg.mxu0
      %v883 = vrot.slane %v713, 7
      %v884 = vrot.slane %v718, 7
      %v885 = vsel %vm569, %v883, %v884
      %v886 = vsel %vm569, %v884, %v883
      %v887 = vsel %vm561, %v886, 0.0
      %v888 = vsel %vm562, %v885, 0.0
      %v889 = vld [vmem:[%s273] ss:$2 sm:$0xff]
      %s890 = scalar_lea.vmem %s273, 16
      %v891 = vld [vmem:[%s890] ss:$2 sm:$0xff]
      %v892 = vld [vmem:[%s5] sm:$0xff]
      %v893 = vld [vmem:[%s6] sm:$0x1]
      %v895 = vlaneseq
      %v896 = vshrl.u32 %v895, 7
      %v897 = vsub.s32 0, %v896
      %v898 = vrot.slane %v893, %v897
      %v901 = vsel %vm284, %v889, 0
      %v904 = vsel %vm284, %v891, 0
      %906 = vmatprep.subr.mxu0 0.0
      %907 = vmatpush1.msra.mxu0 %v892
      %908 = vmatprep.subr.mxu0 0.0
      %909 = vmatpush1.msra.mxu0 0.0
      %910 = vmatprep.subr.mxu0 0.0
      %911 = vmatpush1.msra.mxu0 0.0
      %912 = vmatprep.subr.mxu0 0.0
      %913 = vmatpush1.msra.mxu0 0.0
      %914 = vmatprep.subr.mxu0 0.0
      %915 = vmatpush1.msra.mxu0 0.0
      %916 = vmatprep.subr.mxu0 0.0
      %917 = vmatpush1.msra.mxu0 0.0
      %918 = vmatprep.subr.mxu0 0.0
      %919 = vmatpush1.msra.mxu0 0.0
      %920 = vmatprep.subr.mxu0 0.0
      %921 = vmatpush1.msra.mxu0 0.0
      %922 = vmatprep.subr.mxu0 0.0
      %923 = vmatpush1.msra.mxu0 0.0
      %924 = vmatprep.subr.mxu0 0.0
      %925 = vmatpush1.msra.mxu0 0.0
      %926 = vmatprep.subr.mxu0 0.0
      %927 = vmatpush1.msra.mxu0 0.0
      %928 = vmatprep.subr.mxu0 0.0
      %929 = vmatpush1.msra.mxu0 0.0
      %930 = vmatprep.subr.mxu0 0.0
      %931 = vmatpush1.msra.mxu0 0.0
      %932 = vmatprep.subr.mxu0 0.0
      %933 = vmatpush1.msra.mxu0 0.0
      %934 = vmatprep.subr.mxu0 0.0
      %935 = vmatpush1.msra.mxu0 0.0
      %936 = vmatprep.subr.mxu0 0.0
      %937 = vmatpush1.msra.mxu0 0.0
      %938 = vmatprep.subr.mxu0 0.0
      %939 = vmatpush1.msra.mxu0 0.0
      %940 = vmatprep.subr.mxu0 0.0
      %941 = vmatpush1.msra.mxu0 0.0
      %942 = vmatprep.subr.mxu0 0.0
      %943 = vmatpush1.msra.mxu0 0.0
      %944 = vmatprep.subr.mxu0 0.0
      %945 = vmatpush1.msra.mxu0 0.0
      %946 = vmatprep.subr.mxu0 0.0
      %947 = vmatpush1.msra.mxu0 0.0
      %948 = vmatprep.subr.mxu0 0.0
      %949 = vmatpush1.msra.mxu0 0.0
      %950 = vmatprep.subr.mxu0 0.0
      %951 = vmatpush1.msra.mxu0 0.0
      %952 = vmatprep.subr.mxu0 0.0
      %953 = vmatpush1.msra.mxu0 0.0
      %954 = vmatprep.subr.mxu0 0.0
      %955 = vmatpush1.msra.mxu0 0.0
      %956 = vmatprep.subr.mxu0 0.0
      %957 = vmatpush1.msra.mxu0 0.0
      %958 = vmatprep.subr.mxu0 0.0
      %959 = vmatpush1.msra.mxu0 0.0
      %960 = vmatprep.subr.mxu0 0.0
      %961 = vmatpush1.msra.mxu0 0.0
      %962 = vmatprep.subr.mxu0 0.0
      %963 = vmatpush1.msra.mxu0 0.0
      %964 = vmatprep.subr.mxu0 0.0
      %965 = vmatpush1.msra.mxu0 0.0
      %966 = vmatprep.subr.mxu0 0.0
      %967 = vmatpush1.msra.mxu0 0.0
      %968 = vmatprep.subr.mxu0 0.0
      %969 = vmatpush1.msra.mxu0 0.0
      %970 = vmatprep.mubr.f32.mxu0 0.0
      %971 = vmatmul.mubr.f32.gmra.mrb[0].mxu0 %v901
      %v972 = vpop.f32.mrb[0].mxu0
      %v973 = vadd.f32 %v898, %v972
      %v974 = vpop.f32.mrb[0].mxu0
      %975 = vmatprep.mubr.f32.mxu0 0.0
      %976 = vmatmul.mubr.f32.gmra.mrb[0].mxu0 %v904
      %v977 = vpop.f32.mrb[0].mxu0
      %v978 = vadd.f32 %v898, %v977
      %v979 = vpop.f32.mrb[0].mxu0
      %980 = vdwg.mxu0
      %v981 = vadd.f32 %v887, %v797
      %v982 = vadd.f32 %v888, %v802
      %v983 = vadd.f32 %v981, %v875
      %v984 = vadd.f32 %v982, %v880
      %v985 = vld [vmem:[%s4] sm:$0x1]
      %v987 = vlaneseq
      %v988 = vshrl.u32 %v987, 7
      %v989 = vsub.s32 0, %v988
      %v990 = vrot.slane %v985, %v989
      %v992 = vadd.f32 %v983, %v990
      %v993 = vadd.f32 %v984, %v990
      %v994 = vadd.f32 %v992, %v973
      %v995 = vadd.f32 %v993, %v978
      %996 = vst.msk [vmem:[%s278] sm:$0xff] %vm626, %v994
      %997 = vst.msk [vmem:[%s278 + $0x8] sm:$0xff] %vm626, %v995
      %p998 = scmp.lt.s32.totalorder %s18, 1
      %s999 = scalar_select %p998, %s18, 1
      %s1000 = smul.addr %s999, 2
      %s1001 = smul.addr %s1000, 8
      %s1002 = scalar_lea.vmem %s7, %s1001
      // Predicated region
      $region49: #{gumbel_discriminator_forward.5} parent=47 // pred_check
        %p1003 = pneg %p188
      $region50: #{gumbel_discriminator_forward.5} parent=47 // pred_check_branch
        %1005 = sbr.rel (%p1003) target = $region52
      $region51: #{gumbel_discriminator_forward.5} parent=47 // pred_region
        _
      $region52: #{gumbel_discriminator_forward.5} parent=47 // pred_fallthru
        _
    $region48: #{gumbel_discriminator_forward.5} parent=5 // pred_fallthru
      _
    %p1006 = scmp.le.s32.totalorder 2, %s13
    // Predicated region
    $region53: #{gumbel_discriminator_forward.5} parent=5 // pred_check
      %p1007 = pneg %p1006
    $region54: #{gumbel_discriminator_forward.5} parent=5 // pred_check_branch
      %1009 = sbr.rel (%p1007) target = $region56
    $region55: #{gumbel_discriminator_forward.5} parent=5 // pred_region
      %s1010 = ssub.s32 %s13, 2
      // Predicated region
      $region57: #{gumbel_discriminator_forward.5} parent=55 // pred_check
        %p1011 = pneg %p194
      $region58: #{gumbel_discriminator_forward.5} parent=55 // pred_check_branch
        %1013 = sbr.rel (%p1011) target = $region60
      $region59: #{gumbel_discriminator_forward.5} parent=55 // pred_region
        %p1014 = scmp.lt.s32.totalorder %s19, 1
        %s1015 = scalar_select %p1014, %s19, 1
        %s1016 = smul.addr %s1015, 2
        %s1017 = smul.addr %s1016, 8
        %s1018 = scalar_lea.vmem %s7, %s1017
      $region60: #{gumbel_discriminator_forward.5} parent=55 // pred_fallthru
        _
    $region56: #{gumbel_discriminator_forward.5} parent=5 // pred_fallthru
      _
  $region6: #{gumbel_discriminator_forward.5} parent=0 // loop_footer
    %s17 = sadd.s32 1, %s13
  $region7: #{gumbel_discriminator_forward.5} parent=0 // loop_footer_branch
    %12 = sbr.rel target = $region3
  $region8: #{gumbel_discriminator_forward.5} parent=0 // loop_exit
    _

// kernel: gumbel_discriminator_forward.6
$region0: #{gumbel_discriminator_forward.6}
  #allocation0 [shape = 'u32[]', space=smem, size = 0x4, offset = 0x4, fixed_abs, tag = 'smem constant byte address 0x4 - core index']
  #allocation1 [shape = 'u32[144,128]{1,0:T(1,128)}', space=vmem, size = 0x12000, scoped, tag = 'internal scratch']
  #allocation2 [shape = 'f32[16,32]{1,0:T(8,128)}', space=vmem, size = 0x2000, scoped, tag = 'scratch operand']
  %s0 = inlined_call_operand.vmem [shape: f32[2,16,16], index: 0, kind: input, shape index: {}]
  %s1 = inlined_call_operand.vmem [shape: f32[3,16,32], index: 1, kind: input, shape index: {}]
  %s2 = inlined_call_operand.vmem [shape: f32[1,32], index: 2, kind: input, shape index: {}]
  %s3 = inlined_call_operand.vmem [shape: f32[3,32,32], index: 3, kind: input, shape index: {}]
  %s4 = inlined_call_operand.vmem [shape: f32[1,32], index: 4, kind: input, shape index: {}]
  %s5 = inlined_call_operand.vmem [shape: f32[16,32], index: 5, kind: input, shape index: {}]
  %s6 = inlined_call_operand.vmem [shape: f32[1,32], index: 6, kind: input, shape index: {}]
  %s7 = inlined_call_operand.vmem [shape: f32[2,8,32], index: 7, kind: output, shape index: {}]
  %s8 = sld [smem:[#allocation0]]
  $region61: #{gumbel_discriminator_forward.6} parent=0
    _
  %s10 = ssub.s32 1, %s8
  %s11 = scalar_select 0, %s10, %s8
  loop: start=0, step=1, limit=4
  $region2: #{gumbel_discriminator_forward.6} parent=0 // loop_pre_header
    _
  $region3: #{gumbel_discriminator_forward.6} parent=0 // loop_header
    %s13 = sphi 0, %s17
    %p14 = scmp.ge.s32.totalorder %s13, 4
    %s23 = sphi 0, %s25
    %s26 = sphi 0, %s23
    %s27 = sphi 0, %s26
    %s43 = sphi 0, %s27
    %s47 = sphi 0, %s47
    %s49 = sphi 0, %s47
    %s50 = sphi 0, %s49
    %s64 = sphi 0, %s50
    %s68 = sphi 0, %s68
    %s70 = sphi 0, %s68
    %s71 = sphi 0, %s70
    %s85 = sphi 0, %s71
    %s89 = sphi 0, %s89
    %s91 = sphi 0, %s89
    %s92 = sphi 0, %s91
    %s106 = sphi 0, %s92
    %s110 = sphi 0, %s110
    %s112 = sphi 0, %s110
    %s113 = sphi 0, %s112
    %s127 = sphi 0, %s113
    %s131 = sphi 0, %s131
    %s133 = sphi 0, %s131
    %s134 = sphi 0, %s133
    %s148 = sphi 0, %s134
    %s152 = sphi 0, %s152
    %s154 = sphi 0, %s152
    %s155 = sphi 0, %s154
    %s169 = sphi 0, %s155
    %s175 = sphi 0, %s177
    %s178 = sphi 0, %s175
    %s179 = sphi 0, %s178
    %s195 = sphi 0, %s179
  $region4: #{gumbel_discriminator_forward.6} parent=0 // loop_header_branch
    %16 = sbr.rel (%p14) target = $region8
  $region5: #{gumbel_discriminator_forward.6} parent=0 // loop_body
    %s18 = ssub.s32 %s13, 1
    %s19 = ssub.s32 %s13, 2
    %s20 = sadd.s32 %s13, 1
    %s21 = ssub.s32 %s13, %s20
    %p22 = scmp.eq.s32.totalorder %s21, 0
    %s24 = sadd.s32 %s23, 1
    %s25 = scalar_select %p22, %s23, %s24
    %p28 = pneg %p22
    %p29 = scmp.eq.s32.totalorder %s13, 1
    %p30 = por %p28, %p29
    %p31 = scmp.ne.s32.totalorder %s23, %s26
    %p32 = scmp.eq.s32.totalorder %s13, 0
    %p33 = por %p31, %p32
    %p34 = scmp.ne.s32.totalorder %s23, %s26
    %p35 = scmp.eq.s32.totalorder %s18, 1
    %p36 = por %p34, %p35
    %p37 = scmp.ne.s32.totalorder %s26, %s27
    %p38 = scmp.eq.s32.totalorder %s18, 0
    %p39 = por %p37, %p38
    %p40 = scmp.ne.s32.totalorder %s26, %s27
    %p41 = scmp.eq.s32.totalorder %s19, 1
    %p42 = por %p40, %p41
    %p44 = scmp.ne.s32.totalorder %s27, %s43
    %p45 = scmp.eq.s32.totalorder %s19, 0
    %p46 = por %p44, %p45
    %s48 = sadd.s32 %s47, 1
    %p51 = scmp.eq.s32.totalorder %s13, 1
    %p52 = scmp.ne.s32.totalorder %s47, %s49
    %p53 = scmp.eq.s32.totalorder %s13, 0
    %p54 = por %p52, %p53
    %p55 = scmp.ne.s32.totalorder %s47, %s49
    %p56 = scmp.eq.s32.totalorder %s18, 1
    %p57 = por %p55, %p56
    %p58 = scmp.ne.s32.totalorder %s49, %s50
    %p59 = scmp.eq.s32.totalorder %s18, 0
    %p60 = por %p58, %p59
    %p61 = scmp.ne.s32.totalorder %s49, %s50
    %p62 = scmp.eq.s32.totalorder %s19, 1
    %p63 = por %p61, %p62
    %p65 = scmp.ne.s32.totalorder %s50, %s64
    %p66 = scmp.eq.s32.totalorder %s19, 0
    %p67 = por %p65, %p66
    %s69 = sadd.s32 %s68, 1
    %p72 = scmp.eq.s32.totalorder %s13, 1
    %p73 = scmp.ne.s32.totalorder %s68, %s70
    %p74 = scmp.eq.s32.totalorder %s13, 0
    %p75 = por %p73, %p74
    %p76 = scmp.ne.s32.totalorder %s68, %s70
    %p77 = scmp.eq.s32.totalorder %s18, 1
    %p78 = por %p76, %p77
    %p79 = scmp.ne.s32.totalorder %s70, %s71
    %p80 = scmp.eq.s32.totalorder %s18, 0
    %p81 = por %p79, %p80
    %p82 = scmp.ne.s32.totalorder %s70, %s71
    %p83 = scmp.eq.s32.totalorder %s19, 1
    %p84 = por %p82, %p83
    %p86 = scmp.ne.s32.totalorder %s71, %s85
    %p87 = scmp.eq.s32.totalorder %s19, 0
    %p88 = por %p86, %p87
    %s90 = sadd.s32 %s89, 1
    %p93 = scmp.eq.s32.totalorder %s13, 1
    %p94 = scmp.ne.s32.totalorder %s89, %s91
    %p95 = scmp.eq.s32.totalorder %s13, 0
    %p96 = por %p94, %p95
    %p97 = scmp.ne.s32.totalorder %s89, %s91
    %p98 = scmp.eq.s32.totalorder %s18, 1
    %p99 = por %p97, %p98
    %p100 = scmp.ne.s32.totalorder %s91, %s92
    %p101 = scmp.eq.s32.totalorder %s18, 0
    %p102 = por %p100, %p101
    %p103 = scmp.ne.s32.totalorder %s91, %s92
    %p104 = scmp.eq.s32.totalorder %s19, 1
    %p105 = por %p103, %p104
    %p107 = scmp.ne.s32.totalorder %s92, %s106
    %p108 = scmp.eq.s32.totalorder %s19, 0
    %p109 = por %p107, %p108
    %s111 = sadd.s32 %s110, 1
    %p114 = scmp.eq.s32.totalorder %s13, 1
    %p115 = scmp.ne.s32.totalorder %s110, %s112
    %p116 = scmp.eq.s32.totalorder %s13, 0
    %p117 = por %p115, %p116
    %p118 = scmp.ne.s32.totalorder %s110, %s112
    %p119 = scmp.eq.s32.totalorder %s18, 1
    %p120 = por %p118, %p119
    %p121 = scmp.ne.s32.totalorder %s112, %s113
    %p122 = scmp.eq.s32.totalorder %s18, 0
    %p123 = por %p121, %p122
    %p124 = scmp.ne.s32.totalorder %s112, %s113
    %p125 = scmp.eq.s32.totalorder %s19, 1
    %p126 = por %p124, %p125
    %p128 = scmp.ne.s32.totalorder %s113, %s127
    %p129 = scmp.eq.s32.totalorder %s19, 0
    %p130 = por %p128, %p129
    %s132 = sadd.s32 %s131, 1
    %p135 = scmp.eq.s32.totalorder %s13, 1
    %p136 = scmp.ne.s32.totalorder %s131, %s133
    %p137 = scmp.eq.s32.totalorder %s13, 0
    %p138 = por %p136, %p137
    %p139 = scmp.ne.s32.totalorder %s131, %s133
    %p140 = scmp.eq.s32.totalorder %s18, 1
    %p141 = por %p139, %p140
    %p142 = scmp.ne.s32.totalorder %s133, %s134
    %p143 = scmp.eq.s32.totalorder %s18, 0
    %p144 = por %p142, %p143
    %p145 = scmp.ne.s32.totalorder %s133, %s134
    %p146 = scmp.eq.s32.totalorder %s19, 1
    %p147 = por %p145, %p146
    %p149 = scmp.ne.s32.totalorder %s134, %s148
    %p150 = scmp.eq.s32.totalorder %s19, 0
    %p151 = por %p149, %p150
    %s153 = sadd.s32 %s152, 1
    %p156 = scmp.eq.s32.totalorder %s13, 1
    %p157 = scmp.ne.s32.totalorder %s152, %s154
    %p158 = scmp.eq.s32.totalorder %s13, 0
    %p159 = por %p157, %p158
    %p160 = scmp.ne.s32.totalorder %s152, %s154
    %p161 = scmp.eq.s32.totalorder %s18, 1
    %p162 = por %p160, %p161
    %p163 = scmp.ne.s32.totalorder %s154, %s155
    %p164 = scmp.eq.s32.totalorder %s18, 0
    %p165 = por %p163, %p164
    %p166 = scmp.ne.s32.totalorder %s154, %s155
    %p167 = scmp.eq.s32.totalorder %s19, 1
    %p168 = por %p166, %p167
    %p170 = scmp.ne.s32.totalorder %s155, %s169
    %p171 = scmp.eq.s32.totalorder %s19, 0
    %p172 = por %p170, %p171
    %s173 = ssub.s32 %s13, %s20
    %p174 = scmp.eq.s32.totalorder %s173, 0
    %s176 = sadd.s32 %s175, 1
    %s177 = scalar_select %p174, %s175, %s176
    %p180 = pneg %p174
    %p181 = scmp.eq.s32.totalorder %s13, 1
    %p182 = por %p180, %p181
    %p183 = scmp.ne.s32.totalorder %s175, %s178
    %p184 = scmp.eq.s32.totalorder %s13, 0
    %p185 = por %p183, %p184
    %p186 = scmp.ne.s32.totalorder %s175, %s178
    %p187 = scmp.eq.s32.totalorder %s18, 1
    %p188 = por %p186, %p187
    %p189 = scmp.ne.s32.totalorder %s178, %s179
    %p190 = scmp.eq.s32.totalorder %s18, 0
    %p191 = por %p189, %p190
    %p192 = scmp.ne.s32.totalorder %s178, %s179
    %p193 = scmp.eq.s32.totalorder %s19, 1
    %p194 = por %p192, %p193
    %p196 = scmp.ne.s32.totalorder %s179, %s195
    %p197 = scmp.eq.s32.totalorder %s19, 0
    %p198 = por %p196, %p197
    %p199 = scmp.le.s32.totalorder 1, %s13
    %p200 = scmp.lt.s32.totalorder %s13, 3
    %p201 = pnand %p199, %p200
    %p202 = pneg %p201
    // Predicated region
    $region9: #{gumbel_discriminator_forward.6} parent=5 // pred_check
      _
    $region10: #{gumbel_discriminator_forward.6} parent=5 // pred_check_branch
      %204 = sbr.rel (%p201) target = $region12
    $region11: #{gumbel_discriminator_forward.6} parent=5 // pred_region
      %s205 = ssub.s32 %s13, 1
      // Predicated region
      $region13: #{gumbel_discriminator_forward.6} parent=11 // pred_check
        %p206 = pneg %p60
      $region14: #{gumbel_discriminator_forward.6} parent=11 // pred_check_branch
        %208 = sbr.rel (%p206) target = $region16
      $region15: #{gumbel_discriminator_forward.6} parent=11 // pred_region
        _
      $region16: #{gumbel_discriminator_forward.6} parent=11 // pred_fallthru
        _
      // Predicated region
      $region17: #{gumbel_discriminator_forward.6} parent=11 // pred_check
        %p209 = pneg %p81
      $region18: #{gumbel_discriminator_forward.6} parent=11 // pred_check_branch
        %211 = sbr.rel (%p209) target = $region20
      $region19: #{gumbel_discriminator_forward.6} parent=11 // pred_region
        _
      $region20: #{gumbel_discriminator_forward.6} parent=11 // pred_fallthru
        _
      // Predicated region
      $region21: #{gumbel_discriminator_forward.6} parent=11 // pred_check
        %p212 = pneg %p102
      $region22: #{gumbel_discriminator_forward.6} parent=11 // pred_check_branch
        %214 = sbr.rel (%p212) target = $region24
      $region23: #{gumbel_discriminator_forward.6} parent=11 // pred_region
        _
      $region24: #{gumbel_discriminator_forward.6} parent=11 // pred_fallthru
        _
      // Predicated region
      $region25: #{gumbel_discriminator_forward.6} parent=11 // pred_check
        %p215 = pneg %p123
      $region26: #{gumbel_discriminator_forward.6} parent=11 // pred_check_branch
        %217 = sbr.rel (%p215) target = $region28
      $region27: #{gumbel_discriminator_forward.6} parent=11 // pred_region
        _
      $region28: #{gumbel_discriminator_forward.6} parent=11 // pred_fallthru
        _
      // Predicated region
      $region29: #{gumbel_discriminator_forward.6} parent=11 // pred_check
        %p218 = pneg %p144
      $region30: #{gumbel_discriminator_forward.6} parent=11 // pred_check_branch
        %220 = sbr.rel (%p218) target = $region32
      $region31: #{gumbel_discriminator_forward.6} parent=11 // pred_region
        _
      $region32: #{gumbel_discriminator_forward.6} parent=11 // pred_fallthru
        _
      // Predicated region
      $region33: #{gumbel_discriminator_forward.6} parent=11 // pred_check
        %p221 = pneg %p165
      $region34: #{gumbel_discriminator_forward.6} parent=11 // pred_check_branch
        %223 = sbr.rel (%p221) target = $region36
      $region35: #{gumbel_discriminator_forward.6} parent=11 // pred_region
        _
      $region36: #{gumbel_discriminator_forward.6} parent=11 // pred_fallthru
        _
    $region12: #{gumbel_discriminator_forward.6} parent=5 // pred_fallthru
      _
    %p224 = scmp.lt.s32.totalorder %s13, 2
    // Predicated region
    $region37: #{gumbel_discriminator_forward.6} parent=5 // pred_check
      %p225 = pneg %p224
    $region38: #{gumbel_discriminator_forward.6} parent=5 // pred_check_branch
      %227 = sbr.rel (%p225) target = $region40
    $region39: #{gumbel_discriminator_forward.6} parent=5 // pred_region
      // Predicated region
      $region41: #{gumbel_discriminator_forward.6} parent=39 // pred_check
        %p228 = pneg %p33
      $region42: #{gumbel_discriminator_forward.6} parent=39 // pred_check_branch
        %230 = sbr.rel (%p228) target = $region44
      $region43: #{gumbel_discriminator_forward.6} parent=39 // pred_region
        %p231 = scmp.lt.s32.totalorder %s13, 1
        %s232 = scalar_select %p231, %s13, 1
        %s233 = smul.addr %s232, 2
        %s234 = smul.addr %s233, 8
        %s235 = scalar_lea.vmem %s0, %s234
      $region44: #{gumbel_discriminator_forward.6} parent=39 // pred_fallthru
        _
    $region40: #{gumbel_discriminator_forward.6} parent=5 // pred_fallthru
      _
    %p236 = scmp.le.s32.totalorder 1, %s13
    %p237 = scmp.lt.s32.totalorder %s13, 3
    %p238 = pnand %p236, %p237
    %p239 = pneg %p238
    // Predicated region
    $region45: #{gumbel_discriminator_forward.6} parent=5 // pred_check
      _
    $region46: #{gumbel_discriminator_forward.6} parent=5 // pred_check_branch
      %241 = sbr.rel (%p238) target = $region48
    $region47: #{gumbel_discriminator_forward.6} parent=5 // pred_region
      %s242 = ssub.s32 %s13, 1
      %p243 = scmp.lt.s32.totalorder %s18, 1
      %s244 = scalar_select %p243, %s18, 1
      %s245 = smul.addr %s244, 2
      %s246 = smul.addr %s245, 8
      %s247 = scalar_lea.vmem %s0, %s246
      %p248 = pneg %p39
      %p249 = pneg %p36
      %p250 = pneg %p60
      %p251 = pneg %p57
      %p252 = pneg %p81
      %p253 = pneg %p78
      %p254 = pneg %p102
      %p255 = pneg %p99
      %p256 = pneg %p123
      %p257 = pneg %p120
      %p258 = pneg %p144
      %p259 = pneg %p141
      %p260 = pneg %p165
      %p261 = pneg %p162
      %p262 = pneg %p191
      %p263 = pneg %p188
      %p264 = scmp.lt.s32.totalorder %s18, 1
      %s265 = scalar_select %p264, %s18, 1
      %s266 = smul.addr %s265, 8
      %s267 = scalar_lea.vmem %s7, %s266
      %p268 = scmp.lt.s32.totalorder %s18, 1
      %s269 = scalar_select %p268, %s18, 1
      %s270 = smul.addr %s269, 2
      %s271 = smul.addr %s270, 8
      %s272 = scalar_lea.vmem %s0, %s271
      %p273 = scmp.lt.s32.totalorder %s18, 1
      %s274 = scalar_select %p273, %s18, 1
      %s275 = smul.addr %s274, 8
      %s276 = scalar_lea.vmem %s7, %s275
      %v277 = vld [vmem:[%s272] sm:$0xff]
      %v278 = vld [vmem:[%s272 + $0x8] sm:$0xff]
      %v279 = vld [vmem:[%s1] sm:$0xff]
      %v280 = vld [vmem:[%s1 + $0x8] sm:$0xff]
      %vm281 = vcmask 130048
      %v283 = vsel %vm281, %v277, 0
      %v286 = vsel %vm281, %v278, 0
      %288 = vmatprep.subr.mxu0 0.0
      %289 = vmatpush1.msra.mxu0 %v279
      %290 = vmatprep.subr.mxu0 0.0
      %291 = vmatpush1.msra.mxu0 %v280
      %292 = vmatprep.subr.mxu0 0.0
      %293 = vmatpush1.msra.mxu0 0.0
      %294 = vmatprep.subr.mxu0 0.0
      %295 = vmatpush1.msra.mxu0 0.0
      %296 = vmatprep.subr.mxu0 0.0
      %297 = vmatpush1.msra.mxu0 0.0
      %298 = vmatprep.subr.mxu0 0.0
      %299 = vmatpush1.msra.mxu0 0.0
      %300 = vmatprep.subr.mxu0 0.0
      %301 = vmatpush1.msra.mxu0 0.0
      %302 = vmatprep.subr.mxu0 0.0
      %303 = vmatpush1.msra.mxu0 0.0
      %304 = vmatprep.subr.mxu0 0.0
      %305 = vmatpush1.msra.mxu0 0.0
      %306 = vmatprep.subr.mxu0 0.0
      %307 = vmatpush1.msra.mxu0 0.0
      %308 = vmatprep.subr.mxu0 0.0
      %309 = vmatpush1.msra.mxu0 0.0
      %310 = vmatprep.subr.mxu0 0.0
      %311 = vmatpush1.msra.mxu0 0.0
      %312 = vmatprep.subr.mxu0 0.0
      %313 = vmatpush1.msra.mxu0 0.0
      %314 = vmatprep.subr.mxu0 0.0
      %315 = vmatpush1.msra.mxu0 0.0
      %316 = vmatprep.subr.mxu0 0.0
      %317 = vmatpush1.msra.mxu0 0.0
      %318 = vmatprep.subr.mxu0 0.0
      %319 = vmatpush1.msra.mxu0 0.0
      %320 = vmatprep.subr.mxu0 0.0
      %321 = vmatpush1.msra.mxu0 0.0
      %322 = vmatprep.subr.mxu0 0.0
      %323 = vmatpush1.msra.mxu0 0.0
      %324 = vmatprep.subr.mxu0 0.0
      %325 = vmatpush1.msra.mxu0 0.0
      %326 = vmatprep.subr.mxu0 0.0
      %327 = vmatpush1.msra.mxu0 0.0
      %328 = vmatprep.subr.mxu0 0.0
      %329 = vmatpush1.msra.mxu0 0.0
      %330 = vmatprep.subr.mxu0 0.0
      %331 = vmatpush1.msra.mxu0 0.0
      %332 = vmatprep.subr.mxu0 0.0
      %333 = vmatpush1.msra.mxu0 0.0
      %334 = vmatprep.subr.mxu0 0.0
      %335 = vmatpush1.msra.mxu0 0.0
      %336 = vmatprep.subr.mxu0 0.0
      %337 = vmatpush1.msra.mxu0 0.0
      %338 = vmatprep.subr.mxu0 0.0
      %339 = vmatpush1.msra.mxu0 0.0
      %340 = vmatprep.subr.mxu0 0.0
      %341 = vmatpush1.msra.mxu0 0.0
      %342 = vmatprep.subr.mxu0 0.0
      %343 = vmatpush1.msra.mxu0 0.0
      %344 = vmatprep.subr.mxu0 0.0
      %345 = vmatpush1.msra.mxu0 0.0
      %346 = vmatprep.subr.mxu0 0.0
      %347 = vmatpush1.msra.mxu0 0.0
      %348 = vmatprep.subr.mxu0 0.0
      %349 = vmatpush1.msra.mxu0 0.0
      %350 = vmatprep.subr.mxu0 0.0
      %351 = vmatpush1.msra.mxu0 0.0
      %352 = vmatprep.mubr.f32.mxu0 0.0
      %353 = vmatmul.mubr.f32.gmra.mrb[0].mxu0 %v283
      %v354 = vpop.f32.mrb[0].mxu0
      %v355 = vadd.f32 0.0, %v354
      %v356 = vpop.f32.mrb[0].mxu0
      %357 = vmatprep.mubr.f32.mxu0 0.0
      %358 = vmatmul.mubr.f32.gmra.mrb[0].mxu0 %v286
      %v359 = vpop.f32.mrb[0].mxu0
      %v360 = vadd.f32 0.0, %v359
      %v361 = vpop.f32.mrb[0].mxu0
      %362 = vdwg.mxu0
      %s363 = scalar_lea.vmem %s1, 16
      %v364 = vld [vmem:[%s363] sm:$0xff]
      %v365 = vld [vmem:[%s363 + $0x8] sm:$0xff]
      %366 = vmatprep.subr.mxu0 0.0
      %367 = vmatpush1.msra.mxu0 %v364
      %368 = vmatprep.subr.mxu0 0.0
      %369 = vmatpush1.msra.mxu0 %v365
      %370 = vmatprep.subr.mxu0 0.0
      %371 = vmatpush1.msra.mxu0 0.0
      %372 = vmatprep.subr.mxu0 0.0
      %373 = vmatpush1.msra.mxu0 0.0
      %374 = vmatprep.subr.mxu0 0.0
      %375 = vmatpush1.msra.mxu0 0.0
      %376 = vmatprep.subr.mxu0 0.0
      %377 = vmatpush1.msra.mxu0 0.0
      %378 = vmatprep.subr.mxu0 0.0
      %379 = vmatpush1.msra.mxu0 0.0
      %380 = vmatprep.subr.mxu0 0.0
      %381 = vmatpush1.msra.mxu0 0.0
      %382 = vmatprep.subr.mxu0 0.0
      %383 = vmatpush1.msra.mxu0 0.0
      %384 = vmatprep.subr.mxu0 0.0
      %385 = vmatpush1.msra.mxu0 0.0
      %386 = vmatprep.subr.mxu0 0.0
      %387 = vmatpush1.msra.mxu0 0.0
      %388 = vmatprep.subr.mxu0 0.0
      %389 = vmatpush1.msra.mxu0 0.0
      %390 = vmatprep.subr.mxu0 0.0
      %391 = vmatpush1.msra.mxu0 0.0
      %392 = vmatprep.subr.mxu0 0.0
      %393 = vmatpush1.msra.mxu0 0.0
      %394 = vmatprep.subr.mxu0 0.0
      %395 = vmatpush1.msra.mxu0 0.0
      %396 = vmatprep.subr.mxu0 0.0
      %397 = vmatpush1.msra.mxu0 0.0
      %398 = vmatprep.subr.mxu0 0.0
      %399 = vmatpush1.msra.mxu0 0.0
      %400 = vmatprep.subr.mxu0 0.0
      %401 = vmatpush1.msra.mxu0 0.0
      %402 = vmatprep.subr.mxu0 0.0
      %403 = vmatpush1.msra.mxu0 0.0
      %404 = vmatprep.subr.mxu0 0.0
      %405 = vmatpush1.msra.mxu0 0.0
      %406 = vmatprep.subr.mxu0 0.0
      %407 = vmatpush1.msra.mxu0 0.0
      %408 = vmatprep.subr.mxu0 0.0
      %409 = vmatpush1.msra.mxu0 0.0
      %410 = vmatprep.subr.mxu0 0.0
      %411 = vmatpush1.msra.mxu0 0.0
      %412 = vmatprep.subr.mxu0 0.0
      %413 = vmatpush1.msra.mxu0 0.0
      %414 = vmatprep.subr.mxu0 0.0
      %415 = vmatpush1.msra.mxu0 0.0
      %416 = vmatprep.subr.mxu0 0.0
      %417 = vmatpush1.msra.mxu0 0.0
      %418 = vmatprep.subr.mxu0 0.0
      %419 = vmatpush1.msra.mxu0 0.0
      %420 = vmatprep.subr.mxu0 0.0
      %421 = vmatpush1.msra.mxu0 0.0
      %422 = vmatprep.subr.mxu0 0.0
      %423 = vmatpush1.msra.mxu0 0.0
      %424 = vmatprep.subr.mxu0 0.0
      %425 = vmatpush1.msra.mxu0 0.0
      %426 = vmatprep.subr.mxu0 0.0
      %427 = vmatpush1.msra.mxu0 0.0
      %428 = vmatprep.subr.mxu0 0.0
      %429 = vmatpush1.msra.mxu0 0.0
      %430 = vmatprep.mubr.f32.mxu0 0.0
      %431 = vmatmul.mubr.f32.gmra.mrb[0].mxu0 %v283
      %v432 = vpop.f32.mrb[0].mxu0
      %v433 = vadd.f32 0.0, %v432
      %v434 = vpop.f32.mrb[0].mxu0
      %435 = vmatprep.mubr.f32.mxu0 0.0
      %436 = vmatmul.mubr.f32.gmra.mrb[0].mxu0 %v286
      %v437 = vpop.f32.mrb[0].mxu0
      %v438 = vadd.f32 0.0, %v437
      %v439 = vpop.f32.mrb[0].mxu0
      %440 = vdwg.mxu0
      %s441 = scalar_lea.vmem %s1, 32
      %v442 = vld [vmem:[%s441] sm:$0xff]
      %v443 = vld [vmem:[%s441 + $0x8] sm:$0xff]
      %444 = vmatprep.subr.mxu0 0.0
      %445 = vmatpush1.msra.mxu0 %v442
      %446 = vmatprep.subr.mxu0 0.0
      %447 = vmatpush1.msra.mxu0 %v443
      %448 = vmatprep.subr.mxu0 0.0
      %449 = vmatpush1.msra.mxu0 0.0
      %450 = vmatprep.subr.mxu0 0.0
      %451 = vmatpush1.msra.mxu0 0.0
      %452 = vmatprep.subr.mxu0 0.0
      %453 = vmatpush1.msra.mxu0 0.0
      %454 = vmatprep.subr.mxu0 0.0
      %455 = vmatpush1.msra.mxu0 0.0
      %456 = vmatprep.subr.mxu0 0.0
      %457 = vmatpush1.msra.mxu0 0.0
      %458 = vmatprep.subr.mxu0 0.0
      %459 = vmatpush1.msra.mxu0 0.0
      %460 = vmatprep.subr.mxu0 0.0
      %461 = vmatpush1.msra.mxu0 0.0
      %462 = vmatprep.subr.mxu0 0.0
      %463 = vmatpush1.msra.mxu0 0.0
      %464 = vmatprep.subr.mxu0 0.0
      %465 = vmatpush1.msra.mxu0 0.0
      %466 = vmatprep.subr.mxu0 0.0
      %467 = vmatpush1.msra.mxu0 0.0
      %468 = vmatprep.subr.mxu0 0.0
      %469 = vmatpush1.msra.mxu0 0.0
      %470 = vmatprep.subr.mxu0 0.0
      %471 = vmatpush1.msra.mxu0 0.0
      %472 = vmatprep.subr.mxu0 0.0
      %473 = vmatpush1.msra.mxu0 0.0
      %474 = vmatprep.subr.mxu0 0.0
      %475 = vmatpush1.msra.mxu0 0.0
      %476 = vmatprep.subr.mxu0 0.0
      %477 = vmatpush1.msra.mxu0 0.0
      %478 = vmatprep.subr.mxu0 0.0
      %479 = vmatpush1.msra.mxu0 0.0
      %480 = vmatprep.subr.mxu0 0.0
      %481 = vmatpush1.msra.mxu0 0.0
      %482 = vmatprep.subr.mxu0 0.0
      %483 = vmatpush1.msra.mxu0 0.0
      %484 = vmatprep.subr.mxu0 0.0
      %485 = vmatpush1.msra.mxu0 0.0
      %486 = vmatprep.subr.mxu0 0.0
      %487 = vmatpush1.msra.mxu0 0.0
      %488 = vmatprep.subr.mxu0 0.0
      %489 = vmatpush1.msra.mxu0 0.0
      %490 = vmatprep.subr.mxu0 0.0
      %491 = vmatpush1.msra.mxu0 0.0
      %492 = vmatprep.subr.mxu0 0.0
      %493 = vmatpush1.msra.mxu0 0.0
      %494 = vmatprep.subr.mxu0 0.0
      %495 = vmatpush1.msra.mxu0 0.0
      %496 = vmatprep.subr.mxu0 0.0
      %497 = vmatpush1.msra.mxu0 0.0
      %498 = vmatprep.subr.mxu0 0.0
      %499 = vmatpush1.msra.mxu0 0.0
      %500 = vmatprep.subr.mxu0 0.0
      %501 = vmatpush1.msra.mxu0 0.0
      %502 = vmatprep.subr.mxu0 0.0
      %503 = vmatpush1.msra.mxu0 0.0
      %504 = vmatprep.subr.mxu0 0.0
      %505 = vmatpush1.msra.mxu0 0.0
      %506 = vmatprep.subr.mxu0 0.0
      %507 = vmatpush1.msra.mxu0 0.0
      %508 = vmatprep.mubr.f32.mxu0 0.0
      %509 = vmatmul.mubr.f32.gmra.mrb[0].mxu0 %v283
      %v510 = vpop.f32.mrb[0].mxu0
      %v511 = vadd.f32 0.0, %v510
      %v512 = vpop.f32.mrb[0].mxu0
      %513 = vmatprep.mubr.f32.mxu0 0.0
      %514 = vmatmul.mubr.f32.gmra.mrb[0].mxu0 %v286
      %v515 = vpop.f32.mrb[0].mxu0
      %v516 = vadd.f32 0.0, %v515
      %v517 = vpop.f32.mrb[0].mxu0
      %518 = vdwg.mxu0
      %v519 = vlaneseq
      %v520 = vshrl.u32 %v519, 7
      %v521 = vadd.s32 %v520, 8
      %vm522 = vcmp.ge.s32.totalorder %v520, 1
      %vm523 = vcmp.ge.s32.totalorder %v521, 1
      %v524 = vrot.slane %v355, 7
      %v525 = vrot.slane %v360, 7
      %vm526 = vcmp.lt.s32.totalorder %v520, 1
      %v527 = vsel %vm526, %v524, %v525
      %v528 = vsel %vm526, %v525, %v524
      %v529 = vsel %vm522, %v528, 0.0
      %v530 = vsel %vm523, %v527, 0.0
      %vm531 = vcmp.le.s32.totalorder %v520, 14
      %vm532 = vcmp.le.s32.totalorder %v521, 14
      %v533 = vrot.slane %v511, 1
      %v534 = vrot.slane %v516, 1
      %vm535 = vcmp.lt.s32.totalorder %v520, 7
      %v536 = vsel %vm535, %v533, %v534
      %v537 = vsel %vm535, %v534, %v533
      %v538 = vsel %vm531, %v536, 0.0
      %v539 = vsel %vm532, %v537, 0.0
      %v540 = vadd.f32 %v529, %v433
      %v541 = vadd.f32 %v530, %v438
      %v542 = vadd.f32 %v540, %v538
      %v543 = vadd.f32 %v541, %v539
      %v544 = vld [vmem:[%s2] sm:$0x1]
      %v546 = vlaneseq
      %v547 = vshrl.u32 %v546, 7
      %v548 = vsub.s32 0, %v547
      %v549 = vrot.slane %v544, %v548
      %v551 = vadd.f32 %v542, %v549
      %v552 = vadd.f32 %v543, %v549
      %vm553 = vcmp.ge.f32.partialorder %v551, 0.0
      %vm554 = vcmp.ge.f32.partialorder %v552, 0.0
      %v555 = vmul.f32 %v551, 0.2
      %v556 = vmul.f32 %v552, 0.2
      %v557 = vsel %vm553, %v551, %v555
      %v558 = vsel %vm554, %v552, %v556
      %vm559 = vcmask 261120
      %560 = vst.msk [vmem:[#allocation2] sm:$0xff] %vm559, %v557
      %561 = vst.msk [vmem:[#allocation2 + $0x8] sm:$0xff] %vm559, %v558
      %v562 = vld [vmem:[#allocation2] ss:$2 sm:$0xff]
      %s563 = scalar_lea.vmem [#allocation2], 1
      %v564 = vld [vmem:[%s563] ss:$2 sm:$0xff]
      %v565 = vld [vmem:[%s3] sm:$0xff]
      %v566 = vld [vmem:[%s3 + $0x8] sm:$0xff]
      %v567 = vld [vmem:[%s3 + $0x10] sm:$0xff]
      %v568 = vld [vmem:[%s3 + $0x18] sm:$0xff]
      %v570 = vsel %vm559, %v564, 0
      %572 = vmatprep.subr.mxu0 0.0
      %573 = vmatpush1.msra.mxu0 %v565
      %574 = vmatprep.subr.mxu0 0.0
      %575 = vmatpush1.msra.mxu0 %v566
      %576 = vmatprep.subr.mxu0 0.0
      %577 = vmatpush1.msra.mxu0 %v567
      %578 = vmatprep.subr.mxu0 0.0
      %579 = vmatpush1.msra.mxu0 %v568
      %580 = vmatprep.subr.mxu0 0.0
      %581 = vmatpush1.msra.mxu0 0.0
      %582 = vmatprep.subr.mxu0 0.0
      %583 = vmatpush1.msra.mxu0 0.0
      %584 = vmatprep.subr.mxu0 0.0
      %585 = vmatpush1.msra.mxu0 0.0
      %586 = vmatprep.subr.mxu0 0.0
      %587 = vmatpush1.msra.mxu0 0.0
      %588 = vmatprep.subr.mxu0 0.0
      %589 = vmatpush1.msra.mxu0 0.0
      %590 = vmatprep.subr.mxu0 0.0
      %591 = vmatpush1.msra.mxu0 0.0
      %592 = vmatprep.subr.mxu0 0.0
      %593 = vmatpush1.msra.mxu0 0.0
      %594 = vmatprep.subr.mxu0 0.0
      %595 = vmatpush1.msra.mxu0 0.0
      %596 = vmatprep.subr.mxu0 0.0
      %597 = vmatpush1.msra.mxu0 0.0
      %598 = vmatprep.subr.mxu0 0.0
      %599 = vmatpush1.msra.mxu0 0.0
      %600 = vmatprep.subr.mxu0 0.0
      %601 = vmatpush1.msra.mxu0 0.0
      %602 = vmatprep.subr.mxu0 0.0
      %603 = vmatpush1.msra.mxu0 0.0
      %604 = vmatprep.subr.mxu0 0.0
      %605 = vmatpush1.msra.mxu0 0.0
      %606 = vmatprep.subr.mxu0 0.0
      %607 = vmatpush1.msra.mxu0 0.0
      %608 = vmatprep.subr.mxu0 0.0
      %609 = vmatpush1.msra.mxu0 0.0
      %610 = vmatprep.subr.mxu0 0.0
      %611 = vmatpush1.msra.mxu0 0.0
      %612 = vmatprep.subr.mxu0 0.0
      %613 = vmatpush1.msra.mxu0 0.0
      %614 = vmatprep.subr.mxu0 0.0
      %615 = vmatpush1.msra.mxu0 0.0
      %616 = vmatprep.subr.mxu0 0.0
      %617 = vmatpush1.msra.mxu0 0.0
      %618 = vmatprep.subr.mxu0 0.0
      %619 = vmatpush1.msra.mxu0 0.0
      %620 = vmatprep.subr.mxu0 0.0
      %621 = vmatpush1.msra.mxu0 0.0
      %622 = vmatprep.subr.mxu0 0.0
      %623 = vmatpush1.msra.mxu0 0.0
      %624 = vmatprep.subr.mxu0 0.0
      %625 = vmatpush1.msra.mxu0 0.0
      %626 = vmatprep.subr.mxu0 0.0
      %627 = vmatpush1.msra.mxu0 0.0
      %628 = vmatprep.subr.mxu0 0.0
      %629 = vmatpush1.msra.mxu0 0.0
      %630 = vmatprep.subr.mxu0 0.0
      %631 = vmatpush1.msra.mxu0 0.0
      %632 = vmatprep.subr.mxu0 0.0
      %633 = vmatpush1.msra.mxu0 0.0
      %634 = vmatprep.subr.mxu0 0.0
      %635 = vmatpush1.msra.mxu0 0.0
      %636 = vmatprep.mubr.f32.mxu0 0.0
      %637 = vmatmul.mubr.f32.gmra.mrb[0].mxu0 %v570
      %v638 = vpop.f32.mrb[0].mxu0
      %v639 = vadd.f32 0.0, %v638
      %v640 = vpop.f32.mrb[0].mxu0
      %641 = vdwg.mxu0
      %s642 = scalar_lea.vmem %s3, 32
      %v643 = vld [vmem:[%s642] sm:$0xff]
      %v644 = vld [vmem:[%s642 + $0x8] sm:$0xff]
      %v645 = vld [vmem:[%s642 + $0x10] sm:$0xff]
      %v646 = vld [vmem:[%s642 + $0x18] sm:$0xff]
      %v648 = vsel %vm559, %v562, 0
      %650 = vmatprep.subr.mxu0 0.0
      %651 = vmatpush1.msra.mxu0 %v643
      %652 = vmatprep.subr.mxu0 0.0
      %653 = vmatpush1.msra.mxu0 %v644
      %654 = vmatprep.subr.mxu0 0.0
      %655 = vmatpush1.msra.mxu0 %v645
      %656 = vmatprep.subr.mxu0 0.0
      %657 = vmatpush1.msra.mxu0 %v646
      %658 = vmatprep.subr.mxu0 0.0
      %659 = vmatpush1.msra.mxu0 0.0
      %660 = vmatprep.subr.mxu0 0.0
      %661 = vmatpush1.msra.mxu0 0.0
      %662 = vmatprep.subr.mxu0 0.0
      %663 = vmatpush1.msra.mxu0 0.0
      %664 = vmatprep.subr.mxu0 0.0
      %665 = vmatpush1.msra.mxu0 0.0
      %666 = vmatprep.subr.mxu0 0.0
      %667 = vmatpush1.msra.mxu0 0.0
      %668 = vmatprep.subr.mxu0 0.0
      %669 = vmatpush1.msra.mxu0 0.0
      %670 = vmatprep.subr.mxu0 0.0
      %671 = vmatpush1.msra.mxu0 0.0
      %672 = vmatprep.subr.mxu0 0.0
      %673 = vmatpush1.msra.mxu0 0.0
      %674 = vmatprep.subr.mxu0 0.0
      %675 = vmatpush1.msra.mxu0 0.0
      %676 = vmatprep.subr.mxu0 0.0
      %677 = vmatpush1.msra.mxu0 0.0
      %678 = vmatprep.subr.mxu0 0.0
      %679 = vmatpush1.msra.mxu0 0.0
      %680 = vmatprep.subr.mxu0 0.0
      %681 = vmatpush1.msra.mxu0 0.0
      %682 = vmatprep.subr.mxu0 0.0
      %683 = vmatpush1.msra.mxu0 0.0
      %684 = vmatprep.subr.mxu0 0.0
      %685 = vmatpush1.msra.mxu0 0.0
      %686 = vmatprep.subr.mxu0 0.0
      %687 = vmatpush1.msra.mxu0 0.0
      %688 = vmatprep.subr.mxu0 0.0
      %689 = vmatpush1.msra.mxu0 0.0
      %690 = vmatprep.subr.mxu0 0.0
      %691 = vmatpush1.msra.mxu0 0.0
      %692 = vmatprep.subr.mxu0 0.0
      %693 = vmatpush1.msra.mxu0 0.0
      %694 = vmatprep.subr.mxu0 0.0
      %695 = vmatpush1.msra.mxu0 0.0
      %696 = vmatprep.subr.mxu0 0.0
      %697 = vmatpush1.msra.mxu0 0.0
      %698 = vmatprep.subr.mxu0 0.0
      %699 = vmatpush1.msra.mxu0 0.0
      %700 = vmatprep.subr.mxu0 0.0
      %701 = vmatpush1.msra.mxu0 0.0
      %702 = vmatprep.subr.mxu0 0.0
      %703 = vmatpush1.msra.mxu0 0.0
      %704 = vmatprep.subr.mxu0 0.0
      %705 = vmatpush1.msra.mxu0 0.0
      %706 = vmatprep.subr.mxu0 0.0
      %707 = vmatpush1.msra.mxu0 0.0
      %708 = vmatprep.subr.mxu0 0.0
      %709 = vmatpush1.msra.mxu0 0.0
      %710 = vmatprep.subr.mxu0 0.0
      %711 = vmatpush1.msra.mxu0 0.0
      %712 = vmatprep.subr.mxu0 0.0
      %713 = vmatpush1.msra.mxu0 0.0
      %714 = vmatprep.mubr.f32.mxu0 0.0
      %715 = vmatmul.mubr.f32.gmra.mrb[0].mxu0 %v648
      %v716 = vpop.f32.mrb[0].mxu0
      %v717 = vadd.f32 0.0, %v716
      %v718 = vpop.f32.mrb[0].mxu0
      %719 = vdwg.mxu0
      %s720 = scalar_lea.vmem %s3, 64
      %v721 = vld [vmem:[%s720] sm:$0xff]
      %v722 = vld [vmem:[%s720 + $0x8] sm:$0xff]
      %v723 = vld [vmem:[%s720 + $0x10] sm:$0xff]
      %v724 = vld [vmem:[%s720 + $0x18] sm:$0xff]
      %725 = vmatprep.subr.mxu0 0.0
      %726 = vmatpush1.msra.mxu0 %v721
      %727 = vmatprep.subr.mxu0 0.0
      %728 = vmatpush1.msra.mxu0 %v722
      %729 = vmatprep.subr.mxu0 0.0
      %730 = vmatpush1.msra.mxu0 %v723
      %731 = vmatprep.subr.mxu0 0.0
      %732 = vmatpush1.msra.mxu0 %v724
      %733 = vmatprep.subr.mxu0 0.0
      %734 = vmatpush1.msra.mxu0 0.0
      %735 = vmatprep.subr.mxu0 0.0
      %736 = vmatpush1.msra.mxu0 0.0
      %737 = vmatprep.subr.mxu0 0.0
      %738 = vmatpush1.msra.mxu0 0.0
      %739 = vmatprep.subr.mxu0 0.0
      %740 = vmatpush1.msra.mxu0 0.0
      %741 = vmatprep.subr.mxu0 0.0
      %742 = vmatpush1.msra.mxu0 0.0
      %743 = vmatprep.subr.mxu0 0.0
      %744 = vmatpush1.msra.mxu0 0.0
      %745 = vmatprep.subr.mxu0 0.0
      %746 = vmatpush1.msra.mxu0 0.0
      %747 = vmatprep.subr.mxu0 0.0
      %748 = vmatpush1.msra.mxu0 0.0
      %749 = vmatprep.subr.mxu0 0.0
      %750 = vmatpush1.msra.mxu0 0.0
      %751 = vmatprep.subr.mxu0 0.0
      %752 = vmatpush1.msra.mxu0 0.0
      %753 = vmatprep.subr.mxu0 0.0
      %754 = vmatpush1.msra.mxu0 0.0
      %755 = vmatprep.subr.mxu0 0.0
      %756 = vmatpush1.msra.mxu0 0.0
      %757 = vmatprep.subr.mxu0 0.0
      %758 = vmatpush1.msra.mxu0 0.0
      %759 = vmatprep.subr.mxu0 0.0
      %760 = vmatpush1.msra.mxu0 0.0
      %761 = vmatprep.subr.mxu0 0.0
      %762 = vmatpush1.msra.mxu0 0.0
      %763 = vmatprep.subr.mxu0 0.0
      %764 = vmatpush1.msra.mxu0 0.0
      %765 = vmatprep.subr.mxu0 0.0
      %766 = vmatpush1.msra.mxu0 0.0
      %767 = vmatprep.subr.mxu0 0.0
      %768 = vmatpush1.msra.mxu0 0.0
      %769 = vmatprep.subr.mxu0 0.0
      %770 = vmatpush1.msra.mxu0 0.0
      %771 = vmatprep.subr.mxu0 0.0
      %772 = vmatpush1.msra.mxu0 0.0
      %773 = vmatprep.subr.mxu0 0.0
      %774 = vmatpush1.msra.mxu0 0.0
      %775 = vmatprep.subr.mxu0 0.0
      %776 = vmatpush1.msra.mxu0 0.0
      %777 = vmatprep.subr.mxu0 0.0
      %778 = vmatpush1.msra.mxu0 0.0
      %779 = vmatprep.subr.mxu0 0.0
      %780 = vmatpush1.msra.mxu0 0.0
      %781 = vmatprep.subr.mxu0 0.0
      %782 = vmatpush1.msra.mxu0 0.0
      %783 = vmatprep.subr.mxu0 0.0
      %784 = vmatpush1.msra.mxu0 0.0
      %785 = vmatprep.subr.mxu0 0.0
      %786 = vmatpush1.msra.mxu0 0.0
      %787 = vmatprep.subr.mxu0 0.0
      %788 = vmatpush1.msra.mxu0 0.0
      %789 = vmatprep.mubr.f32.mxu0 0.0
      %790 = vmatmul.mubr.f32.gmra.mrb[0].mxu0 %v570
      %v791 = vpop.f32.mrb[0].mxu0
      %v792 = vadd.f32 0.0, %v791
      %v793 = vpop.f32.mrb[0].mxu0
      %794 = vdwg.mxu0
      %v795 = vrot.slane %v639, 7
      %v796 = vsel %vm522, %v795, 0.0
      %v797 = vld [vmem:[%s272] ss:$2 sm:$0xff]
      %v798 = vld [vmem:[%s5] sm:$0xff]
      %v799 = vld [vmem:[%s5 + $0x8] sm:$0xff]
      %v800 = vld [vmem:[%s6] sm:$0x1]
      %v802 = vlaneseq
      %v803 = vshrl.u32 %v802, 7
      %v804 = vsub.s32 0, %v803
      %v805 = vrot.slane %v800, %v804
      %v808 = vsel %vm281, %v797, 0
      %810 = vmatprep.subr.mxu0 0.0
      %811 = vmatpush1.msra.mxu0 %v798
      %812 = vmatprep.subr.mxu0 0.0
      %813 = vmatpush1.msra.mxu0 %v799
      %814 = vmatprep.subr.mxu0 0.0
      %815 = vmatpush1.msra.mxu0 0.0
      %816 = vmatprep.subr.mxu0 0.0
      %817 = vmatpush1.msra.mxu0 0.0
      %818 = vmatprep.subr.mxu0 0.0
      %819 = vmatpush1.msra.mxu0 0.0
      %820 = vmatprep.subr.mxu0 0.0
      %821 = vmatpush1.msra.mxu0 0.0
      %822 = vmatprep.subr.mxu0 0.0
      %823 = vmatpush1.msra.mxu0 0.0
      %824 = vmatprep.subr.mxu0 0.0
      %825 = vmatpush1.msra.mxu0 0.0
      %826 = vmatprep.subr.mxu0 0.0
      %827 = vmatpush1.msra.mxu0 0.0
      %828 = vmatprep.subr.mxu0 0.0
      %829 = vmatpush1.msra.mxu0 0.0
      %830 = vmatprep.subr.mxu0 0.0
      %831 = vmatpush1.msra.mxu0 0.0
      %832 = vmatprep.subr.mxu0 0.0
      %833 = vmatpush1.msra.mxu0 0.0
      %834 = vmatprep.subr.mxu0 0.0
      %835 = vmatpush1.msra.mxu0 0.0
      %836 = vmatprep.subr.mxu0 0.0
      %837 = vmatpush1.msra.mxu0 0.0
      %838 = vmatprep.subr.mxu0 0.0
      %839 = vmatpush1.msra.mxu0 0.0
      %840 = vmatprep.subr.mxu0 0.0
      %841 = vmatpush1.msra.mxu0 0.0
      %842 = vmatprep.subr.mxu0 0.0
      %843 = vmatpush1.msra.mxu0 0.0
      %844 = vmatprep.subr.mxu0 0.0
      %845 = vmatpush1.msra.mxu0 0.0
      %846 = vmatprep.subr.mxu0 0.0
      %847 = vmatpush1.msra.mxu0 0.0
      %848 = vmatprep.subr.mxu0 0.0
      %849 = vmatpush1.msra.mxu0 0.0
      %850 = vmatprep.subr.mxu0 0.0
      %851 = vmatpush1.msra.mxu0 0.0
      %852 = vmatprep.subr.mxu0 0.0
      %853 = vmatpush1.msra.mxu0 0.0
      %854 = vmatprep.subr.mxu0 0.0
      %855 = vmatpush1.msra.mxu0 0.0
      %856 = vmatprep.subr.mxu0 0.0
      %857 = vmatpush1.msra.mxu0 0.0
      %858 = vmatprep.subr.mxu0 0.0
      %859 = vmatpush1.msra.mxu0 0.0
      %860 = vmatprep.subr.mxu0 0.0
      %861 = vmatpush1.msra.mxu0 0.0
      %862 = vmatprep.subr.mxu0 0.0
      %863 = vmatpush1.msra.mxu0 0.0
      %864 = vmatprep.subr.mxu0 0.0
      %865 = vmatpush1.msra.mxu0 0.0
      %866 = vmatprep.subr.mxu0 0.0
      %867 = vmatpush1.msra.mxu0 0.0
      %868 = vmatprep.subr.mxu0 0.0
      %869 = vmatpush1.msra.mxu0 0.0
      %870 = vmatprep.subr.mxu0 0.0
      %871 = vmatpush1.msra.mxu0 0.0
      %872 = vmatprep.subr.mxu0 0.0
      %873 = vmatpush1.msra.mxu0 0.0
      %874 = vmatprep.mubr.f32.mxu0 0.0
      %875 = vmatmul.mubr.f32.gmra.mrb[0].mxu0 %v808
      %v876 = vpop.f32.mrb[0].mxu0
      %v877 = vadd.f32 %v805, %v876
      %v878 = vpop.f32.mrb[0].mxu0
      %879 = vdwg.mxu0
      %v880 = vadd.f32 %v796, %v717
      %v881 = vadd.f32 %v880, %v792
      %v882 = vld [vmem:[%s4] sm:$0x1]
      %v884 = vlaneseq
      %v885 = vshrl.u32 %v884, 7
      %v886 = vsub.s32 0, %v885
      %v887 = vrot.slane %v882, %v886
      %v889 = vadd.f32 %v881, %v887
      %v890 = vadd.f32 %v889, %v877
      %891 = vst.msk [vmem:[%s276] sm:$0xff] %vm559, %v890
      %p892 = scmp.lt.s32.totalorder %s18, 1
      %s893 = scalar_select %p892, %s18, 1
      %s894 = smul.addr %s893, 8
      %s895 = scalar_lea.vmem %s7, %s894
      // Predicated region
      $region49: #{gumbel_discriminator_forward.6} parent=47 // pred_check
        %p896 = pneg %p188
      $region50: #{gumbel_discriminator_forward.6} parent=47 // pred_check_branch
        %898 = sbr.rel (%p896) target = $region52
      $region51: #{gumbel_discriminator_forward.6} parent=47 // pred_region
        _
      $region52: #{gumbel_discriminator_forward.6} parent=47 // pred_fallthru
        _
    $region48: #{gumbel_discriminator_forward.6} parent=5 // pred_fallthru
      _
    %p899 = scmp.le.s32.totalorder 2, %s13
    // Predicated region
    $region53: #{gumbel_discriminator_forward.6} parent=5 // pred_check
      %p900 = pneg %p899
    $region54: #{gumbel_discriminator_forward.6} parent=5 // pred_check_branch
      %902 = sbr.rel (%p900) target = $region56
    $region55: #{gumbel_discriminator_forward.6} parent=5 // pred_region
      %s903 = ssub.s32 %s13, 2
      // Predicated region
      $region57: #{gumbel_discriminator_forward.6} parent=55 // pred_check
        %p904 = pneg %p194
      $region58: #{gumbel_discriminator_forward.6} parent=55 // pred_check_branch
        %906 = sbr.rel (%p904) target = $region60
      $region59: #{gumbel_discriminator_forward.6} parent=55 // pred_region
        %p907 = scmp.lt.s32.totalorder %s19, 1
        %s908 = scalar_select %p907, %s19, 1
        %s909 = smul.addr %s908, 8
        %s910 = scalar_lea.vmem %s7, %s909
      $region60: #{gumbel_discriminator_forward.6} parent=55 // pred_fallthru
        _
    $region56: #{gumbel_discriminator_forward.6} parent=5 // pred_fallthru
      _
  $region6: #{gumbel_discriminator_forward.6} parent=0 // loop_footer
    %s17 = sadd.s32 1, %s13
  $region7: #{gumbel_discriminator_forward.6} parent=0 // loop_footer_branch
    %12 = sbr.rel target = $region3
  $region8: #{gumbel_discriminator_forward.6} parent=0 // loop_exit
    _

// kernel: gumbel_discriminator_forward.9
$region0: #{gumbel_discriminator_forward.9}
  #allocation0 [shape = 'u32[]', space=smem, size = 0x4, offset = 0x4, fixed_abs, tag = 'smem constant byte address 0x4 - core index']
  #allocation1 [shape = 'u32[144,128]{1,0:T(1,128)}', space=vmem, size = 0x12000, scoped, tag = 'internal scratch']
  #allocation2 [shape = 'f32[1,1]{1,0:T(1,128)S(1)}', space=vmem, size = 0x200, scoped, tag = 'scoped memory for gumbel_discriminator_forward.9']
  %s0 = inlined_call_operand.vmem [shape: f32[2,2,128], index: 0, kind: input, shape index: {}]
  %s1 = inlined_call_operand.vmem [shape: f32[128,8], index: 1, kind: input, shape index: {}]
  %s2 = inlined_call_operand.vmem [shape: f32[1,8], index: 2, kind: input, shape index: {}]
  %s3 = inlined_call_operand.vmem [shape: f32[1,8], index: 3, kind: input, shape index: {}]
  %s4 = inlined_call_operand.vmem [shape: f32[2,8], index: 4, kind: input, shape index: {}]
  %s5 = inlined_call_operand.<no memory space> [shape: f32[1,1], index: 5, kind: input, shape index: {}]
  %s6 = inlined_call_operand.vmem [shape: f32[2,1], index: 6, kind: output, shape index: {}]
  %s7 = sld [smem:[#allocation0]]
  $region34: #{gumbel_discriminator_forward.9} parent=0
    _
  %s9 = ssub.s32 1, %s7
  %s10 = scalar_select 0, %s9, %s7
  %v11 = vstv %s5
  %12 = vst [vmem:[#allocation2] sm:$0x1] %v11
  // Predicated region
  $region2: #{gumbel_discriminator_forward.9} parent=0 // pred_check
    _
  $region3: #{gumbel_discriminator_forward.9} parent=0 // pred_check_branch
    %14 = sbr.rel (0) target = $region5
  $region4: #{gumbel_discriminator_forward.9} parent=0 // pred_region
    _
  $region5: #{gumbel_discriminator_forward.9} parent=0 // pred_fallthru
    _
  // Predicated region
  $region6: #{gumbel_discriminator_forward.9} parent=0 // pred_check
    _
  $region7: #{gumbel_discriminator_forward.9} parent=0 // pred_check_branch
    %16 = sbr.rel (0) target = $region9
  $region8: #{gumbel_discriminator_forward.9} parent=0 // pred_region
    _
  $region9: #{gumbel_discriminator_forward.9} parent=0 // pred_fallthru
    _
  // Predicated region
  $region10: #{gumbel_discriminator_forward.9} parent=0 // pred_check
    _
  $region11: #{gumbel_discriminator_forward.9} parent=0 // pred_check_branch
    %18 = sbr.rel (0) target = $region13
  $region12: #{gumbel_discriminator_forward.9} parent=0 // pred_region
    _
  $region13: #{gumbel_discriminator_forward.9} parent=0 // pred_fallthru
    _
  // Predicated region
  $region14: #{gumbel_discriminator_forward.9} parent=0 // pred_check
    _
  $region15: #{gumbel_discriminator_forward.9} parent=0 // pred_check_branch
    %20 = sbr.rel (0) target = $region17
  $region16: #{gumbel_discriminator_forward.9} parent=0 // pred_region
    _
  $region17: #{gumbel_discriminator_forward.9} parent=0 // pred_fallthru
    _
  // Predicated region
  $region18: #{gumbel_discriminator_forward.9} parent=0 // pred_check
    _
  $region19: #{gumbel_discriminator_forward.9} parent=0 // pred_check_branch
    %22 = sbr.rel (0) target = $region21
  $region20: #{gumbel_discriminator_forward.9} parent=0 // pred_region
    _
  $region21: #{gumbel_discriminator_forward.9} parent=0 // pred_fallthru
    _
  // Predicated region
  $region22: #{gumbel_discriminator_forward.9} parent=0 // pred_check
    _
  $region23: #{gumbel_discriminator_forward.9} parent=0 // pred_check_branch
    %24 = sbr.rel (0) target = $region25
  $region24: #{gumbel_discriminator_forward.9} parent=0 // pred_region
    _
  $region25: #{gumbel_discriminator_forward.9} parent=0 // pred_fallthru
    _
  %v25 = vld [vmem:[%s0] sm:$0x3]
  %v26 = vld [vmem:[%s0 + $0x2] sm:$0x3]
  %vm27 = vcmask 1041408
  %v28 = vsel %vm27, %v25, 0.0
  %v29 = vsel %vm27, %v26, 0.0
  %v30 = vadd.f32 %v28, %v29
  %v31 = vrcp.pop 2.0
  %v32 = vmul.f32 %v30, %v31
  %v33 = vsub.f32 %v25, %v32
  %v34 = vsub.f32 %v26, %v32
  %v35 = vmul.f32 %v33, %v33
  %v36 = vmul.f32 %v34, %v34
  %v37 = vsel %vm27, %v35, 0.0
  %v38 = vsel %vm27, %v36, 0.0
  %v39 = vadd.f32 %v37, %v38
  %v40 = vmul.f32 %v39, %v31
  %v41 = vadd.f32 %v40, 1e-08
  %v42 = vrsqrt.pop %v41
  %v43 = vmul.f32 %v41, %v42
  %vm44 = vcmp.eq.f32.partialorder %v41, inf
  %v45 = vsel %vm44, %v41, %v43
  %vm46 = vcmp.eq.f32.partialorder %v41, 0.0
  %v47 = vand.u32 %v41, 2147483648
  %v48 = vsel %vm46, %v47, %v45
  %v49 = vsel %vm27, %v48, 0.0
  %50 = vadd.xlane.f32.xlu0 %v49
  %v51 = vpop.xlane.xlu0 %50
  %v52 = vrcp.pop 128.0
  %v53 = vmul.f32 %v51, %v52
  %v54 = vsel %vm27, %v53, 0.0
  %v55 = vrot.slane %v54, 4
  %v56 = vadd.f32 %v54, %v55
  %v57 = vrot.slane %v56, 2
  %v58 = vadd.f32 %v56, %v57
  %v59 = vrot.slane %v58, 1
  %v60 = vadd.f32 %v58, %v59
  %v61 = vmul.f32 %v60, %v31
  %v62 = vld [vmem:[%s1] sm:$0xff]
  %v63 = vld [vmem:[%s1 + $0x8] sm:$0xff]
  %v64 = vld [vmem:[%s1 + $0x10] sm:$0xff]
  %v65 = vld [vmem:[%s1 + $0x18] sm:$0xff]
  %v66 = vld [vmem:[%s1 + $0x20] sm:$0xff]
  %v67 = vld [vmem:[%s1 + $0x28] sm:$0xff]
  %v68 = vld [vmem:[%s1 + $0x30] sm:$0xff]
  %v69 = vld [vmem:[%s1 + $0x38] sm:$0xff]
  %v70 = vld [vmem:[%s1 + $0x40] sm:$0xff]
  %v71 = vld [vmem:[%s1 + $0x48] sm:$0xff]
  %v72 = vld [vmem:[%s1 + $0x50] sm:$0xff]
  %v73 = vld [vmem:[%s1 + $0x58] sm:$0xff]
  %v74 = vld [vmem:[%s1 + $0x60] sm:$0xff]
  %v75 = vld [vmem:[%s1 + $0x68] sm:$0xff]
  %v76 = vld [vmem:[%s1 + $0x70] sm:$0xff]
  %v77 = vld [vmem:[%s1 + $0x78] sm:$0xff]
  %v78 = vld [vmem:[%s2] sm:$0x1]
  %v79 = vmul.f32 %v61, %v78
  %v81 = vlaneseq
  %v82 = vshrl.u32 %v81, 7
  %v83 = vsub.s32 0, %v82
  %v84 = vrot.slane %v79, %v83
  %v88 = vcombine.low %v25, %v26
  %v90 = vunpack.c.l.s4 1983009808
  %v91 = vunpack.c.0.s8 %v90
  %v92 = vlaneseq
  %v93 = vshrl.u32 %v92, 7
  %v94 = vsub.s32 %v91, %v93
  %v95 = vrot.slane %v88, %v94
  %97 = vmatprep.subr.mxu0 0.0
  %98 = vmatpush1.msra.mxu0 %v62
  %99 = vmatprep.subr.mxu0 0.0
  %100 = vmatpush1.msra.mxu0 %v63
  %101 = vmatprep.subr.mxu0 0.0
  %102 = vmatpush1.msra.mxu0 %v64
  %103 = vmatprep.subr.mxu0 0.0
  %104 = vmatpush1.msra.mxu0 %v65
  %105 = vmatprep.subr.mxu0 0.0
  %106 = vmatpush1.msra.mxu0 %v66
  %107 = vmatprep.subr.mxu0 0.0
  %108 = vmatpush1.msra.mxu0 %v67
  %109 = vmatprep.subr.mxu0 0.0
  %110 = vmatpush1.msra.mxu0 %v68
  %111 = vmatprep.subr.mxu0 0.0
  %112 = vmatpush1.msra.mxu0 %v69
  %113 = vmatprep.subr.mxu0 0.0
  %114 = vmatpush1.msra.mxu0 %v70
  %115 = vmatprep.subr.mxu0 0.0
  %116 = vmatpush1.msra.mxu0 %v71
  %117 = vmatprep.subr.mxu0 0.0
  %118 = vmatpush1.msra.mxu0 %v72
  %119 = vmatprep.subr.mxu0 0.0
  %120 = vmatpush1.msra.mxu0 %v73
  %121 = vmatprep.subr.mxu0 0.0
  %122 = vmatpush1.msra.mxu0 %v74
  %123 = vmatprep.subr.mxu0 0.0
  %124 = vmatpush1.msra.mxu0 %v75
  %125 = vmatprep.subr.mxu0 0.0
  %126 = vmatpush1.msra.mxu0 %v76
  %127 = vmatprep.subr.mxu0 0.0
  %128 = vmatpush1.msra.mxu0 %v77
  %129 = vmatprep.subr.mxu0 0.0
  %130 = vmatpush1.msra.mxu0 0.0
  %131 = vmatprep.subr.mxu0 0.0
  %132 = vmatpush1.msra.mxu0 0.0
  %133 = vmatprep.subr.mxu0 0.0
  %134 = vmatpush1.msra.mxu0 0.0
  %135 = vmatprep.subr.mxu0 0.0
  %136 = vmatpush1.msra.mxu0 0.0
  %137 = vmatprep.subr.mxu0 0.0
  %138 = vmatpush1.msra.mxu0 0.0
  %139 = vmatprep.subr.mxu0 0.0
  %140 = vmatpush1.msra.mxu0 0.0
  %141 = vmatprep.subr.mxu0 0.0
  %142 = vmatpush1.msra.mxu0 0.0
  %143 = vmatprep.subr.mxu0 0.0
  %144 = vmatpush1.msra.mxu0 0.0
  %145 = vmatprep.subr.mxu0 0.0
  %146 = vmatpush1.msra.mxu0 0.0
  %147 = vmatprep.subr.mxu0 0.0
  %148 = vmatpush1.msra.mxu0 0.0
  %149 = vmatprep.subr.mxu0 0.0
  %150 = vmatpush1.msra.mxu0 0.0
  %151 = vmatprep.subr.mxu0 0.0
  %152 = vmatpush1.msra.mxu0 0.0
  %153 = vmatprep.subr.mxu0 0.0
  %154 = vmatpush1.msra.mxu0 0.0
  %155 = vmatprep.subr.mxu0 0.0
  %156 = vmatpush1.msra.mxu0 0.0
  %157 = vmatprep.subr.mxu0 0.0
  %158 = vmatpush1.msra.mxu0 0.0
  %159 = vmatprep.subr.mxu0 0.0
  %160 = vmatpush1.msra.mxu0 0.0
  %161 = vmatprep.mubr.f32.mxu0 0.0
  %162 = vmatmul.mubr.f32.gmra.mrb[0].mxu0 %v95
  %v163 = vpop.f32.mrb[0].mxu0
  %v164 = vadd.f32 %v84, %v163
  %v165 = vpop.f32.mrb[0].mxu0
  %166 = vdwg.mxu0
  %v167 = vld [vmem:[%s3] sm:$0x1]
  %v169 = vlaneseq
  %v170 = vshrl.u32 %v169, 7
  %v171 = vsub.s32 0, %v170
  %v172 = vrot.slane %v167, %v171
  %v174 = vadd.f32 %v164, %v172
  %v177 = vunpack.c.l.s4 1983009808
  %v178 = vunpack.c.0.s8 %v177
  %v179 = vlaneseq
  %v180 = vshrl.u32 %v179, 7
  %v181 = vsub.s32 %v178, %v180
  %v182 = vrot.slane %v174, %v181
  %v183 = vcombine.high %v182, %v182
  %v186 = vld [vmem:[%s4] sm:$0x3]
  %v187 = vmul.f32 %v182, %v186
  %v188 = vmul.f32 %v183, %v186
  %vm189 = vcmask 58368
  %v190 = vsel %vm189, %v187, 0.0
  %191 = vadd.xlane.f32.xlu0 %v190
  %v192 = vpop.xlane.xlu0 %191
  %v193 = vsel %vm189, %v188, 0.0
  %194 = vadd.xlane.f32.xlu0 %v193
  %v195 = vpop.xlane.xlu0 %194
  %v198 = vlaneseq
  %v199 = vand.u32 %v198, 127
  %v200 = vlaneseq
  %v201 = vshrl.u32 %v200, 7
  %v202 = vsub.s32 %v199, %v201
  %v203 = vrot.slane %v192, %v202
  %v204 = vlaneseq
  %v205 = vshrl.u32 %v204, 7
  %v206 = vsub.s32 %v199, %v205
  %v207 = vrot.slane %v195, %v206
  %vm208 = vcmask 1041409
  %v209 = vsel %vm208, %v207, %v203
  %vm211 = vcmask 9216
  %v212 = vsel %vm211, %v209, 0.0
  %213 = vadd.xlane.f32.xlu0 %v212
  %v214 = vpop.xlane.xlu0 %213
  %v215 = vld [vmem:[#allocation2] sm:$0x1]
  %v217 = vlaneseq
  %v218 = vshrl.u32 %v217, 7
  %v219 = vsub.s32 0, %v218
  %v220 = vrot.slane %v215, %v219
  %v222 = vadd.f32 %v214, %v220
  %vm223 = vcmask 1024
  %224 = vst.msk [vmem:[%s6] sm:$0x3] %vm223, %v222
  // Predicated region
  $region26: #{gumbel_discriminator_forward.9} parent=0 // pred_check
    _
  $region27: #{gumbel_discriminator_forward.9} parent=0 // pred_check_branch
    %226 = sbr.rel (0) target = $region29
  $region28: #{gumbel_discriminator_forward.9} parent=0 // pred_region
    _
  $region29: #{gumbel_discriminator_forward.9} parent=0 // pred_fallthru
    _
  // Predicated region
  $region30: #{gumbel_discriminator_forward.9} parent=0 // pred_check
    _
  $region31: #{gumbel_discriminator_forward.9} parent=0 // pred_check_branch
    %228 = sbr.rel (0) target = $region33
  $region32: #{gumbel_discriminator_forward.9} parent=0 // pred_region
    _
  $region33: #{gumbel_discriminator_forward.9} parent=0 // pred_fallthru
    _

</llo_original>
